<compile_context>
chip_gen: v6e
topology: v6e:2x2x1
jax: 0.10.0
libtpu: 0.0.40
codegen_flags: <defaults>
</compile_context>

<pallas_src>
import functools
import math

import jax
import jax.numpy as jnp
from jax.experimental import pallas as pl
from jax.experimental.pallas import tpu as pltpu


# Order of the per-layer (stacked over L) weight tensors passed to the kernel.
WKEYS = (
    "wq1", "bq1", "wk1", "bk1", "wv1", "bv1", "wo1", "bo1", "g1", "be1",   # self-attn + norm1
    "wq2", "bq2", "wk2", "bk2", "wv2", "bv2", "wo2", "bo2", "g2", "be2",   # cross-attn + norm2
    "w1", "b1", "w2", "b2", "g3", "be3",                                   # FFN + norm3
)

# The reference transformer implementation uses a custom LayerNorm with 1e-12
# (PyTorch nn.LayerNorm default would be 1e-5).
LN_EPS = 1e-12


def _decoder_kernel(x_ref, enc_ref, *rest, n_heads, dh):
    """Fused decoder stack.  Grid = (batch, layer); activation lives in the
    output VMEM block across the (arbitrary) layer axis."""
    out_ref = rest[-1]
    (wq1, bq1, wk1, bk1, wv1, bv1, wo1, bo1, g1, be1,
     wq2, bq2, wk2, bk2, wv2, bv2, wo2, bo2, g2, be2,
     w1, b1, w2, b2, g3, be3) = rest[:-1]

    l = pl.program_id(1)

    # First layer for this batch element: seed the resident activation buffer
    # with the embedded input.  (out block keeps the same index over l, so it
    # is only written back to HBM once per batch element.)
    @pl.when(l == 0)
    def _():
        out_ref[...] = x_ref[...]

    x = out_ref[0]       # (S, D)  f32 current activation
    enc = enc_ref[0]     # (Se, D) f32 encoder output (grid-invariant)

    inv_sqrt_dh = 1.0 / math.sqrt(dh)

    def layernorm(v, g_ref, b_ref):
        mean = jnp.mean(v, axis=-1, keepdims=True)
        var = jnp.mean(jnp.square(v - mean), axis=-1, keepdims=True)  # unbiased=False
        return (v - mean) * jax.lax.rsqrt(var + LN_EPS) * g_ref[0] + b_ref[0]

    def mha(xq, xkv, wq, bq, wk, bk, wv, bv, wo, bo):
        sq, d = xq.shape
        sk = xkv.shape[0]
        xq_b = xq.astype(jnp.bfloat16)
        xkv_b = xkv.astype(jnp.bfloat16)
        q = jnp.dot(xq_b, wq[0], preferred_element_type=jnp.float32) + bq[0]
        k = jnp.dot(xkv_b, wk[0], preferred_element_type=jnp.float32) + bk[0]
        v = jnp.dot(xkv_b, wv[0], preferred_element_type=jnp.float32) + bv[0]
        # Fold the 1/sqrt(dh) scale into q once (S*D elems, not H*S*S per head).
        q = q * inv_sqrt_dh
        # (S, D) -> (H, S, dh): heads become a leading batch dim for the MXU.
        qh = q.reshape(sq, n_heads, dh).transpose(1, 0, 2).astype(jnp.bfloat16)
        kh = k.reshape(sk, n_heads, dh).transpose(1, 0, 2).astype(jnp.bfloat16)
        vh = v.reshape(sk, n_heads, dh).transpose(1, 0, 2).astype(jnp.bfloat16)
        # Batched contraction on the shared dh axis (no explicit .T relayout).
        s = jnp.einsum('hqd,hkd->hqk', qh, kh,
                       preferred_element_type=jnp.float32)
        s = s - jnp.max(s, axis=-1, keepdims=True)
        p = jnp.exp(s)
        denom = jnp.sum(p, axis=-1, keepdims=True)
        p = p * pl.reciprocal(denom, approx=True)          # EUP, not a VALU divide
        ctx = jnp.einsum('hqk,hkd->hqd', p.astype(jnp.bfloat16), vh,
                         preferred_element_type=jnp.float32)
        cat = ctx.transpose(1, 0, 2).reshape(sq, d).astype(jnp.bfloat16)
        return jnp.dot(cat, wo[0], preferred_element_type=jnp.float32) + bo[0]

    # 1) self-attention + add&norm (the reference forward passes no mask)
    a = mha(x, x, wq1, bq1, wk1, bk1, wv1, bv1, wo1, bo1)
    x = layernorm(a + x, g1, be1)
    # 2) encoder-decoder (cross) attention against `target` + add&norm
    a = mha(x, enc, wq2, bq2, wk2, bk2, wv2, bv2, wo2, bo2)
    x = layernorm(a + x, g2, be2)
    # 3) position-wise feed-forward (linear -> relu -> linear) + add&norm
    hdn = jnp.dot(x.astype(jnp.bfloat16), w1[0],
                  preferred_element_type=jnp.float32) + b1[0]
    hdn = jnp.maximum(hdn, 0.0)
    ff = jnp.dot(hdn.astype(jnp.bfloat16), w2[0],
                 preferred_element_type=jnp.float32) + b2[0]
    x = layernorm(ff + x, g3, be3)

    out_ref[0] = x


def decoder_stack(x, enc, stacked, n_heads):
    """Apply the whole N-layer decoder stack with a single fused pallas_call."""
    B, S, D = x.shape
    _, Se, _ = enc.shape
    L = stacked[WKEYS[0]].shape[0]
    F = stacked["w1"].shape[-1]
    dh = D // n_heads
    weights = [stacked[k] for k in WKEYS]

    in_specs = [
        pl.BlockSpec((1, S, D), lambda b, l: (b, 0, 0)),     # x (embedded tokens)
        pl.BlockSpec((1, Se, D), lambda b, l: (b, 0, 0)),    # encoder output
    ] + [
        # stacked per-layer weights: inner grid axis l selects the layer slice
        pl.BlockSpec((1,) + w.shape[1:], lambda b, l: (l, 0, 0)) for w in weights
    ]
    out_spec = pl.BlockSpec((1, S, D), lambda b, l: (b, 0, 0))

    # Advisory roofline hint for XLA's scheduler.
    flops_per_bl = (
        8 * S * D * D          # self-attn q,k,v,o projections
        + 4 * S * S * D        # self-attn scores + context
        + 4 * S * D * D        # cross-attn q,o projections
        + 4 * Se * D * D       # cross-attn k,v projections
        + 4 * S * Se * D       # cross-attn scores + context
        + 4 * S * D * F        # FFN
    )
    weight_bytes = sum(int(w.size) * w.dtype.itemsize for w in weights)
    cost = pl.CostEstimate(
        flops=int(B * L * flops_per_bl),
        transcendentals=int(B * L * n_heads * S * (S + Se)),
        bytes_accessed=int(B * (2 * S * D * 4 + Se * D * 4) + B * weight_bytes),
    )

    kernel = functools.partial(_decoder_kernel, n_heads=n_heads, dh=dh)
    return pl.pallas_call(
        kernel,
        out_shape=jax.ShapeDtypeStruct((B, S, D), jnp.float32),
        grid_spec=pltpu.PrefetchScalarGridSpec(
            num_scalar_prefetch=0,
            grid=(B, L),                   # B parallel (megacore), L sequential
            in_specs=in_specs,
            out_specs=out_spec,
        ),
        compiler_params=pltpu.CompilerParams(
            dimension_semantics=("parallel", "arbitrary"),
            vmem_limit_bytes=48 * 1024 * 1024,   # headroom even on v7x (64 MiB)
        ),
        cost_estimate=cost,
    )(x, enc, *weights)


def sinusoidal_pos_encoding(max_len, d_model):
    pos = jnp.arange(max_len, dtype=jnp.float32)[:, None]          # (L, 1)
    two_i = jnp.arange(0, d_model, 2, dtype=jnp.float32)[None, :]  # (1, D/2)
    angle = pos / jnp.power(10000.0, two_i / d_model)              # (L, D/2)
    pe = jnp.zeros((max_len, d_model), dtype=jnp.float32)
    pe = pe.at[:, 0::2].set(jnp.sin(angle))
    pe = pe.at[:, 1::2].set(jnp.cos(angle))
    return pe


def init_params(key, *, vocab_size, max_len, d_model, ffn_hidden, n_layers):
    kemb, kw = jax.random.split(key)
    emb_table = 0.02 * jax.random.normal(kemb, (vocab_size, d_model), jnp.float32)
    emb_table = emb_table.at[1].set(0.0)   # padding_idx=1 as in nn.Embedding

    D, F, L = d_model, ffn_hidden, n_layers
    ks = jax.random.split(kw, 10)

    def lin(k, din, dout):
        # bf16 weights: full-rate MXU + half the weight DMA / VMEM footprint.
        w = 0.05 * jax.random.normal(k, (L, din, dout), jnp.float32)
        return w.astype(jnp.bfloat16)

    zerosD = jnp.zeros((L, 1, D), jnp.float32)
    onesD = jnp.ones((L, 1, D), jnp.float32)
    stacked = {
        "wq1": lin(ks[0], D, D), "bq1": zerosD,
        "wk1": lin(ks[1], D, D), "bk1": zerosD,
        "wv1": lin(ks[2], D, D), "bv1": zerosD,
        "wo1": lin(ks[3], D, D), "bo1": zerosD,
        "g1": onesD, "be1": zerosD,
        "wq2": lin(ks[4], D, D), "bq2": zerosD,
        "wk2": lin(ks[5], D, D), "bk2": zerosD,
        "wv2": lin(ks[6], D, D), "bv2": zerosD,
        "wo2": lin(ks[7], D, D), "bo2": zerosD,
        "g2": onesD, "be2": zerosD,
        "w1": lin(ks[8], D, F), "b1": jnp.zeros((L, 1, F), jnp.float32),
        "w2": lin(ks[9], F, D), "b2": zerosD,
        "g3": onesD, "be3": zerosD,
    }
    return {
        "emb_table": emb_table,
        "pos_enc": sinusoidal_pos_encoding(max_len, d_model),
        "layers": stacked,
    }


def decoder_forward(token_ids, target, params, *, n_heads):
    """Full Decoder.forward: embedding + positional enc, then the fused stack."""
    B, S = token_ids.shape
    # TODO(synk): embedding gather stays in plain JAX (data-dependent row gather
    # has no clean simple BlockSpec form); dropout is identity in eval mode.
    x = params["emb_table"][token_ids] + params["pos_enc"][:S][None, :, :]
    x = x.astype(jnp.float32)
    return decoder_stack(x, target.astype(jnp.float32), params["layers"], n_heads)


if __name__ == "__main__":
    # Small, lane-dense config consistent with the module (each DecoderLayer is
    # built with ffn_hidden=d_model, as in the reference __init__).
    B, S_DEC, S_ENC = 2, 8, 8
    D_MODEL, N_HEADS = 128, 4          # multiple of 128 -> full-lane vregs/stores
    FFN_HIDDEN = D_MODEL               # DecoderLayer(ffn_hidden=d_model)
    N_LAYERS = 2
    VOCAB, MAX_LEN = 100, 64

    key = jax.random.PRNGKey(0)
    k_tok, k_enc, k_par = jax.random.split(key, 3)

    token_ids = jax.random.randint(k_tok, (B, S_DEC), 0, VOCAB, dtype=jnp.int32)
    target = jax.random.normal(k_enc, (B, S_ENC, D_MODEL), jnp.float32)  # encoder output

    params = init_params(k_par, vocab_size=VOCAB, max_len=MAX_LEN,
                         d_model=D_MODEL, ffn_hidden=FFN_HIDDEN, n_layers=N_LAYERS)

    out = decoder_forward(token_ids, target, params, n_heads=N_HEADS)
    out = jax.block_until_ready(out)

    assert out.shape == (B, S_DEC, D_MODEL), out.shape
    assert jnp.all(jnp.isfinite(out))
    print("KERNEL_OK")
</pallas_src>

<mosaic_0001>
module attributes {stable_mosaic.version = 11 : i64} {
  func.func @_decoder_kernel(%arg0: i32, %arg1: i32, %arg2: memref<1x8x128xf32, #tpu.memory_space<vmem>>, %arg3: memref<1x8x128xf32, #tpu.memory_space<vmem>>, %arg4: memref<1x128x128xbf16, #tpu.memory_space<vmem>>, %arg5: memref<1x1x128xf32, #tpu.memory_space<vmem>>, %arg6: memref<1x128x128xbf16, #tpu.memory_space<vmem>>, %arg7: memref<1x1x128xf32, #tpu.memory_space<vmem>>, %arg8: memref<1x128x128xbf16, #tpu.memory_space<vmem>>, %arg9: memref<1x1x128xf32, #tpu.memory_space<vmem>>, %arg10: memref<1x128x128xbf16, #tpu.memory_space<vmem>>, %arg11: memref<1x1x128xf32, #tpu.memory_space<vmem>>, %arg12: memref<1x1x128xf32, #tpu.memory_space<vmem>>, %arg13: memref<1x1x128xf32, #tpu.memory_space<vmem>>, %arg14: memref<1x128x128xbf16, #tpu.memory_space<vmem>>, %arg15: memref<1x1x128xf32, #tpu.memory_space<vmem>>, %arg16: memref<1x128x128xbf16, #tpu.memory_space<vmem>>, %arg17: memref<1x1x128xf32, #tpu.memory_space<vmem>>, %arg18: memref<1x128x128xbf16, #tpu.memory_space<vmem>>, %arg19: memref<1x1x128xf32, #tpu.memory_space<vmem>>, %arg20: memref<1x128x128xbf16, #tpu.memory_space<vmem>>, %arg21: memref<1x1x128xf32, #tpu.memory_space<vmem>>, %arg22: memref<1x1x128xf32, #tpu.memory_space<vmem>>, %arg23: memref<1x1x128xf32, #tpu.memory_space<vmem>>, %arg24: memref<1x128x128xbf16, #tpu.memory_space<vmem>>, %arg25: memref<1x1x128xf32, #tpu.memory_space<vmem>>, %arg26: memref<1x128x128xbf16, #tpu.memory_space<vmem>>, %arg27: memref<1x1x128xf32, #tpu.memory_space<vmem>>, %arg28: memref<1x1x128xf32, #tpu.memory_space<vmem>>, %arg29: memref<1x1x128xf32, #tpu.memory_space<vmem>>, %arg30: memref<1x8x128xf32, #tpu.memory_space<vmem>>) attributes {dimension_semantics = [#tpu.dimension_semantics<parallel>, #tpu.dimension_semantics<arbitrary>], iteration_bounds = array<i64: 2, 2>, scalar_prefetch = 0 : i64, scratch_operands = 0 : i64, tpu.core_type = #tpu.core_type<tc>, window_params = [{transform_indices = @transform_0, window_bounds = array<i64: 1, 8, 128>}, {transform_indices = @transform_1, window_bounds = array<i64: 1, 8, 128>}, {transform_indices = @transform_2, window_bounds = array<i64: 1, 128, 128>}, {transform_indices = @transform_3, window_bounds = array<i64: 1, 1, 128>}, {transform_indices = @transform_4, window_bounds = array<i64: 1, 128, 128>}, {transform_indices = @transform_5, window_bounds = array<i64: 1, 1, 128>}, {transform_indices = @transform_6, window_bounds = array<i64: 1, 128, 128>}, {transform_indices = @transform_7, window_bounds = array<i64: 1, 1, 128>}, {transform_indices = @transform_8, window_bounds = array<i64: 1, 128, 128>}, {transform_indices = @transform_9, window_bounds = array<i64: 1, 1, 128>}, {transform_indices = @transform_10, window_bounds = array<i64: 1, 1, 128>}, {transform_indices = @transform_11, window_bounds = array<i64: 1, 1, 128>}, {transform_indices = @transform_12, window_bounds = array<i64: 1, 128, 128>}, {transform_indices = @transform_13, window_bounds = array<i64: 1, 1, 128>}, {transform_indices = @transform_14, window_bounds = array<i64: 1, 128, 128>}, {transform_indices = @transform_15, window_bounds = array<i64: 1, 1, 128>}, {transform_indices = @transform_16, window_bounds = array<i64: 1, 128, 128>}, {transform_indices = @transform_17, window_bounds = array<i64: 1, 1, 128>}, {transform_indices = @transform_18, window_bounds = array<i64: 1, 128, 128>}, {transform_indices = @transform_19, window_bounds = array<i64: 1, 1, 128>}, {transform_indices = @transform_20, window_bounds = array<i64: 1, 1, 128>}, {transform_indices = @transform_21, window_bounds = array<i64: 1, 1, 128>}, {transform_indices = @transform_22, window_bounds = array<i64: 1, 128, 128>}, {transform_indices = @transform_23, window_bounds = array<i64: 1, 1, 128>}, {transform_indices = @transform_24, window_bounds = array<i64: 1, 128, 128>}, {transform_indices = @transform_25, window_bounds = array<i64: 1, 1, 128>}, {transform_indices = @transform_26, window_bounds = array<i64: 1, 1, 128>}, {transform_indices = @transform_27, window_bounds = array<i64: 1, 1, 128>}, {transform_indices = @transform_28, window_bounds = array<i64: 1, 8, 128>}]} {
    %c0_i32 = arith.constant 0 : i32
    %0 = arith.cmpi eq, %arg1, %c0_i32 : i32
    %1 = arith.extui %0 : i1 to i32
    %c0_i32_0 = arith.constant 0 : i32
    %2 = arith.cmpi ne, %1, %c0_i32_0 : i32
    scf.if %2 {
      %c0_122 = arith.constant 0 : index
      %c0_123 = arith.constant 0 : index
      %c0_124 = arith.constant 0 : index
      %223 = vector.load %arg2[%c0_122, %c0_123, %c0_124] : memref<1x8x128xf32, #tpu.memory_space<vmem>>, vector<1x8x128xf32>
      %c0_125 = arith.constant 0 : index
      %c0_126 = arith.constant 0 : index
      %c0_127 = arith.constant 0 : index
      %224 = vector.load %arg30[%c0_125, %c0_126, %c0_127] : memref<1x8x128xf32, #tpu.memory_space<vmem>>, vector<1x8x128xf32>
      tpu.vector_store %arg30[%c0_125, %c0_126, %c0_127], %223 {strides = array<i32>} : memref<1x8x128xf32, #tpu.memory_space<vmem>>, vector<1x8x128xf32>,
    } else {
    }
    %c0 = arith.constant 0 : index
    %c0_1 = arith.constant 0 : index
    %c0_2 = arith.constant 0 : index
    %3 = vector.load %arg30[%c0, %c0_1, %c0_2] : memref<1x8x128xf32, #tpu.memory_space<vmem>>, vector<1x8x128xf32>
    %4 = vector.shape_cast %3 : vector<1x8x128xf32> to vector<8x128xf32>
    %c0_3 = arith.constant 0 : index
    %c0_4 = arith.constant 0 : index
    %c0_5 = arith.constant 0 : index
    %5 = vector.load %arg3[%c0_3, %c0_4, %c0_5] : memref<1x8x128xf32, #tpu.memory_space<vmem>>, vector<1x8x128xf32>
    %6 = vector.shape_cast %5 : vector<1x8x128xf32> to vector<8x128xf32>
    %7 = arith.truncf %4 : vector<8x128xf32> to vector<8x128xbf16>
    %8 = arith.truncf %4 : vector<8x128xf32> to vector<8x128xbf16>
    %c0_6 = arith.constant 0 : index
    %c0_7 = arith.constant 0 : index
    %c0_8 = arith.constant 0 : index
    %9 = vector.load %arg4[%c0_6, %c0_7, %c0_8] : memref<1x128x128xbf16, #tpu.memory_space<vmem>>, vector<1x128x128xbf16>
    %10 = vector.shape_cast %9 : vector<1x128x128xbf16> to vector<128x128xbf16>
    %cst = arith.constant dense<0.000000e+00> : vector<8x128xf32>
    %11 = tpu.matmul %7, %10, %cst {dimension_numbers = #tpu.dot_dimension_numbers<[1], [0], [0], [1], [0, 0, 1, 1], [], []>} : vector<8x128xbf16>, vector<128x128xbf16>, vector<8x128xf32> -> vector<8x128xf32>
    %c0_9 = arith.constant 0 : index
    %c0_10 = arith.constant 0 : index
    %c0_11 = arith.constant 0 : index
    %12 = vector.load %arg5[%c0_9, %c0_10, %c0_11] : memref<1x1x128xf32, #tpu.memory_space<vmem>>, vector<1x1x128xf32>
    %13 = vector.shape_cast %12 : vector<1x1x128xf32> to vector<1x128xf32>
    %14 = vector.broadcast %13 : vector<1x128xf32> to vector<8x128xf32>
    %15 = arith.addf %11, %14 : vector<8x128xf32>
    %c0_12 = arith.constant 0 : index
    %c0_13 = arith.constant 0 : index
    %c0_14 = arith.constant 0 : index
    %16 = vector.load %arg6[%c0_12, %c0_13, %c0_14] : memref<1x128x128xbf16, #tpu.memory_space<vmem>>, vector<1x128x128xbf16>
    %17 = vector.shape_cast %16 : vector<1x128x128xbf16> to vector<128x128xbf16>
    %cst_15 = arith.constant dense<0.000000e+00> : vector<8x128xf32>
    %18 = tpu.matmul %8, %17, %cst_15 {dimension_numbers = #tpu.dot_dimension_numbers<[1], [0], [0], [1], [0, 0, 1, 1], [], []>} : vector<8x128xbf16>, vector<128x128xbf16>, vector<8x128xf32> -> vector<8x128xf32>
    %c0_16 = arith.constant 0 : index
    %c0_17 = arith.constant 0 : index
    %c0_18 = arith.constant 0 : index
    %19 = vector.load %arg7[%c0_16, %c0_17, %c0_18] : memref<1x1x128xf32, #tpu.memory_space<vmem>>, vector<1x1x128xf32>
    %20 = vector.shape_cast %19 : vector<1x1x128xf32> to vector<1x128xf32>
    %21 = vector.broadcast %20 : vector<1x128xf32> to vector<8x128xf32>
    %22 = arith.addf %18, %21 : vector<8x128xf32>
    %c0_19 = arith.constant 0 : index
    %c0_20 = arith.constant 0 : index
    %c0_21 = arith.constant 0 : index
    %23 = vector.load %arg8[%c0_19, %c0_20, %c0_21] : memref<1x128x128xbf16, #tpu.memory_space<vmem>>, vector<1x128x128xbf16>
    %24 = vector.shape_cast %23 : vector<1x128x128xbf16> to vector<128x128xbf16>
    %cst_22 = arith.constant dense<0.000000e+00> : vector<8x128xf32>
    %25 = tpu.matmul %8, %24, %cst_22 {dimension_numbers = #tpu.dot_dimension_numbers<[1], [0], [0], [1], [0, 0, 1, 1], [], []>} : vector<8x128xbf16>, vector<128x128xbf16>, vector<8x128xf32> -> vector<8x128xf32>
    %c0_23 = arith.constant 0 : index
    %c0_24 = arith.constant 0 : index
    %c0_25 = arith.constant 0 : index
    %26 = vector.load %arg9[%c0_23, %c0_24, %c0_25] : memref<1x1x128xf32, #tpu.memory_space<vmem>>, vector<1x1x128xf32>
    %27 = vector.shape_cast %26 : vector<1x1x128xf32> to vector<1x128xf32>
    %28 = vector.broadcast %27 : vector<1x128xf32> to vector<8x128xf32>
    %29 = arith.addf %25, %28 : vector<8x128xf32>
    %cst_26 = arith.constant 0.176776692 : f32
    %30 = vector.broadcast %cst_26 : f32 to vector<8x128xf32>
    %31 = arith.mulf %15, %30 : vector<8x128xf32>
    %32 = vector.shape_cast %31 : vector<8x128xf32> to vector<8x4x32xf32>
    %33 = tpu.transpose %32, [1, 0, 2] : vector<8x4x32xf32> -> vector<4x8x32xf32>
    %34 = arith.truncf %33 : vector<4x8x32xf32> to vector<4x8x32xbf16>
    %35 = vector.shape_cast %22 : vector<8x128xf32> to vector<8x4x32xf32>
    %36 = tpu.transpose %35, [1, 0, 2] : vector<8x4x32xf32> -> vector<4x8x32xf32>
    %37 = arith.truncf %36 : vector<4x8x32xf32> to vector<4x8x32xbf16>
    %38 = vector.shape_cast %29 : vector<8x128xf32> to vector<8x4x32xf32>
    %39 = tpu.transpose %38, [1, 0, 2] : vector<8x4x32xf32> -> vector<4x8x32xf32>
    %40 = arith.truncf %39 : vector<4x8x32xf32> to vector<4x8x32xbf16>
    "tpu.trace_start"() <{level = 10 : i32, message = "hqd,hkd->hqk"}> : () -> ()
    %cst_27 = arith.constant dense<0.000000e+00> : vector<4x8x8xf32>
    %41 = tpu.matmul %34, %37, %cst_27 {dimension_numbers = #tpu.dot_dimension_numbers<[2], [2], [1], [1], [0, 0, 0, 1, 1, 1], [0], [0]>} : vector<4x8x32xbf16>, vector<4x8x32xbf16>, vector<4x8x8xf32> -> vector<4x8x8xf32>
    "tpu.trace_stop"() : () -> ()
    %cst_28 = arith.constant dense<0xFF800000> : vector<4x8xf32>
    %42 = vector.multi_reduction <maximumf>, %41, %cst_28 [2] : vector<4x8x8xf32> to vector<4x8xf32>
    %43 = vector.shape_cast %42 : vector<4x8xf32> to vector<4x8x1xf32>
    %44 = vector.broadcast %43 : vector<4x8x1xf32> to vector<4x8x8xf32>
    %45 = arith.subf %41, %44 : vector<4x8x8xf32>
    %46 = math.exp %45 : vector<4x8x8xf32>
    %cst_29 = arith.constant dense<0.000000e+00> : vector<4x8xf32>
    %47 = vector.multi_reduction <add>, %46, %cst_29 [2] : vector<4x8x8xf32> to vector<4x8xf32>
    %48 = vector.shape_cast %47 : vector<4x8xf32> to vector<4x8x1xf32>
    %49 = tpu.reciprocal %48 {approx = true} : vector<4x8x1xf32> -> vector<4x8x1xf32>
    %50 = vector.broadcast %49 : vector<4x8x1xf32> to vector<4x8x8xf32>
    %51 = arith.mulf %46, %50 : vector<4x8x8xf32>
    %52 = arith.truncf %51 : vector<4x8x8xf32> to vector<4x8x8xbf16>
    "tpu.trace_start"() <{level = 10 : i32, message = "hqk,hkd->hqd"}> : () -> ()
    %cst_30 = arith.constant dense<0.000000e+00> : vector<4x8x32xf32>
    %53 = tpu.matmul %52, %40, %cst_30 {dimension_numbers = #tpu.dot_dimension_numbers<[2], [1], [1], [2], [0, 0, 0, 1, 1, 2], [0], [0]>} : vector<4x8x8xbf16>, vector<4x8x32xbf16>, vector<4x8x32xf32> -> vector<4x8x32xf32>
    "tpu.trace_stop"() : () -> ()
    %54 = tpu.transpose %53, [1, 0, 2] : vector<4x8x32xf32> -> vector<8x4x32xf32>
    %55 = vector.shape_cast %54 : vector<8x4x32xf32> to vector<8x128xf32>
    %56 = arith.truncf %55 : vector<8x128xf32> to vector<8x128xbf16>
    %c0_31 = arith.constant 0 : index
    %c0_32 = arith.constant 0 : index
    %c0_33 = arith.constant 0 : index
    %57 = vector.load %arg10[%c0_31, %c0_32, %c0_33] : memref<1x128x128xbf16, #tpu.memory_space<vmem>>, vector<1x128x128xbf16>
    %58 = vector.shape_cast %57 : vector<1x128x128xbf16> to vector<128x128xbf16>
    %cst_34 = arith.constant dense<0.000000e+00> : vector<8x128xf32>
    %59 = tpu.matmul %56, %58, %cst_34 {dimension_numbers = #tpu.dot_dimension_numbers<[1], [0], [0], [1], [0, 0, 1, 1], [], []>} : vector<8x128xbf16>, vector<128x128xbf16>, vector<8x128xf32> -> vector<8x128xf32>
    %c0_35 = arith.constant 0 : index
    %c0_36 = arith.constant 0 : index
    %c0_37 = arith.constant 0 : index
    %60 = vector.load %arg11[%c0_35, %c0_36, %c0_37] : memref<1x1x128xf32, #tpu.memory_space<vmem>>, vector<1x1x128xf32>
    %61 = vector.shape_cast %60 : vector<1x1x128xf32> to vector<1x128xf32>
    %62 = vector.broadcast %61 : vector<1x128xf32> to vector<8x128xf32>
    %63 = arith.addf %59, %62 : vector<8x128xf32>
    %64 = arith.addf %63, %4 : vector<8x128xf32>
    %cst_38 = arith.constant dense<0.000000e+00> : vector<8xf32>
    %65 = vector.multi_reduction <add>, %64, %cst_38 [1] : vector<8x128xf32> to vector<8xf32>
    %66 = vector.shape_cast %65 : vector<8xf32> to vector<8x1xf32>
    %cst_39 = arith.constant 1.280000e+02 : f32
    %67 = vector.broadcast %cst_39 : f32 to vector<8x1xf32>
    %68 = arith.divf %66, %67 : vector<8x1xf32>
    %69 = vector.broadcast %68 : vector<8x1xf32> to vector<8x128xf32>
    %70 = arith.subf %64, %69 : vector<8x128xf32>
    %71 = arith.mulf %70, %70 : vector<8x128xf32>
    %cst_40 = arith.constant dense<0.000000e+00> : vector<8xf32>
    %72 = vector.multi_reduction <add>, %71, %cst_40 [1] : vector<8x128xf32> to vector<8xf32>
    %73 = vector.shape_cast %72 : vector<8xf32> to vector<8x1xf32>
    %cst_41 = arith.constant 1.280000e+02 : f32
    %74 = vector.broadcast %cst_41 : f32 to vector<8x1xf32>
    %75 = arith.divf %73, %74 : vector<8x1xf32>
    %76 = vector.broadcast %68 : vector<8x1xf32> to vector<8x128xf32>
    %77 = arith.subf %64, %76 : vector<8x128xf32>
    %cst_42 = arith.constant 9.99999996E-13 : f32
    %78 = vector.broadcast %cst_42 : f32 to vector<8x1xf32>
    %79 = arith.addf %75, %78 : vector<8x1xf32>
    %80 = math.rsqrt %79 : vector<8x1xf32>
    %81 = vector.broadcast %80 : vector<8x1xf32> to vector<8x128xf32>
    %82 = arith.mulf %77, %81 : vector<8x128xf32>
    %c0_43 = arith.constant 0 : index
    %c0_44 = arith.constant 0 : index
    %c0_45 = arith.constant 0 : index
    %83 = vector.load %arg12[%c0_43, %c0_44, %c0_45] : memref<1x1x128xf32, #tpu.memory_space<vmem>>, vector<1x1x128xf32>
    %84 = vector.shape_cast %83 : vector<1x1x128xf32> to vector<1x128xf32>
    %85 = vector.broadcast %84 : vector<1x128xf32> to vector<8x128xf32>
    %86 = arith.mulf %82, %85 : vector<8x128xf32>
    %c0_46 = arith.constant 0 : index
    %c0_47 = arith.constant 0 : index
    %c0_48 = arith.constant 0 : index
    %87 = vector.load %arg13[%c0_46, %c0_47, %c0_48] : memref<1x1x128xf32, #tpu.memory_space<vmem>>, vector<1x1x128xf32>
    %88 = vector.shape_cast %87 : vector<1x1x128xf32> to vector<1x128xf32>
    %89 = vector.broadcast %88 : vector<1x128xf32> to vector<8x128xf32>
    %90 = arith.addf %86, %89 : vector<8x128xf32>
    %91 = arith.truncf %90 : vector<8x128xf32> to vector<8x128xbf16>
    %92 = arith.truncf %6 : vector<8x128xf32> to vector<8x128xbf16>
    %c0_49 = arith.constant 0 : index
    %c0_50 = arith.constant 0 : index
    %c0_51 = arith.constant 0 : index
    %93 = vector.load %arg14[%c0_49, %c0_50, %c0_51] : memref<1x128x128xbf16, #tpu.memory_space<vmem>>, vector<1x128x128xbf16>
    %94 = vector.shape_cast %93 : vector<1x128x128xbf16> to vector<128x128xbf16>
    %cst_52 = arith.constant dense<0.000000e+00> : vector<8x128xf32>
    %95 = tpu.matmul %91, %94, %cst_52 {dimension_numbers = #tpu.dot_dimension_numbers<[1], [0], [0], [1], [0, 0, 1, 1], [], []>} : vector<8x128xbf16>, vector<128x128xbf16>, vector<8x128xf32> -> vector<8x128xf32>
    %c0_53 = arith.constant 0 : index
    %c0_54 = arith.constant 0 : index
    %c0_55 = arith.constant 0 : index
    %96 = vector.load %arg15[%c0_53, %c0_54, %c0_55] : memref<1x1x128xf32, #tpu.memory_space<vmem>>, vector<1x1x128xf32>
    %97 = vector.shape_cast %96 : vector<1x1x128xf32> to vector<1x128xf32>
    %98 = vector.broadcast %97 : vector<1x128xf32> to vector<8x128xf32>
    %99 = arith.addf %95, %98 : vector<8x128xf32>
    %c0_56 = arith.constant 0 : index
    %c0_57 = arith.constant 0 : index
    %c0_58 = arith.constant 0 : index
    %100 = vector.load %arg16[%c0_56, %c0_57, %c0_58] : memref<1x128x128xbf16, #tpu.memory_space<vmem>>, vector<1x128x128xbf16>
    %101 = vector.shape_cast %100 : vector<1x128x128xbf16> to vector<128x128xbf16>
    %cst_59 = arith.constant dense<0.000000e+00> : vector<8x128xf32>
    %102 = tpu.matmul %92, %101, %cst_59 {dimension_numbers = #tpu.dot_dimension_numbers<[1], [0], [0], [1], [0, 0, 1, 1], [], []>} : vector<8x128xbf16>, vector<128x128xbf16>, vector<8x128xf32> -> vector<8x128xf32>
    %c0_60 = arith.constant 0 : index
    %c0_61 = arith.constant 0 : index
    %c0_62 = arith.constant 0 : index
    %103 = vector.load %arg17[%c0_60, %c0_61, %c0_62] : memref<1x1x128xf32, #tpu.memory_space<vmem>>, vector<1x1x128xf32>
    %104 = vector.shape_cast %103 : vector<1x1x128xf32> to vector<1x128xf32>
    %105 = vector.broadcast %104 : vector<1x128xf32> to vector<8x128xf32>
    %106 = arith.addf %102, %105 : vector<8x128xf32>
    %c0_63 = arith.constant 0 : index
    %c0_64 = arith.constant 0 : index
    %c0_65 = arith.constant 0 : index
    %107 = vector.load %arg18[%c0_63, %c0_64, %c0_65] : memref<1x128x128xbf16, #tpu.memory_space<vmem>>, vector<1x128x128xbf16>
    %108 = vector.shape_cast %107 : vector<1x128x128xbf16> to vector<128x128xbf16>
    %cst_66 = arith.constant dense<0.000000e+00> : vector<8x128xf32>
    %109 = tpu.matmul %92, %108, %cst_66 {dimension_numbers = #tpu.dot_dimension_numbers<[1], [0], [0], [1], [0, 0, 1, 1], [], []>} : vector<8x128xbf16>, vector<128x128xbf16>, vector<8x128xf32> -> vector<8x128xf32>
    %c0_67 = arith.constant 0 : index
    %c0_68 = arith.constant 0 : index
    %c0_69 = arith.constant 0 : index
    %110 = vector.load %arg19[%c0_67, %c0_68, %c0_69] : memref<1x1x128xf32, #tpu.memory_space<vmem>>, vector<1x1x128xf32>
    %111 = vector.shape_cast %110 : vector<1x1x128xf32> to vector<1x128xf32>
    %112 = vector.broadcast %111 : vector<1x128xf32> to vector<8x128xf32>
    %113 = arith.addf %109, %112 : vector<8x128xf32>
    %cst_70 = arith.constant 0.176776692 : f32
    %114 = vector.broadcast %cst_70 : f32 to vector<8x128xf32>
    %115 = arith.mulf %99, %114 : vector<8x128xf32>
    %116 = vector.shape_cast %115 : vector<8x128xf32> to vector<8x4x32xf32>
    %117 = tpu.transpose %116, [1, 0, 2] : vector<8x4x32xf32> -> vector<4x8x32xf32>
    %118 = arith.truncf %117 : vector<4x8x32xf32> to vector<4x8x32xbf16>
    %119 = vector.shape_cast %106 : vector<8x128xf32> to vector<8x4x32xf32>
    %120 = tpu.transpose %119, [1, 0, 2] : vector<8x4x32xf32> -> vector<4x8x32xf32>
    %121 = arith.truncf %120 : vector<4x8x32xf32> to vector<4x8x32xbf16>
    %122 = vector.shape_cast %113 : vector<8x128xf32> to vector<8x4x32xf32>
    %123 = tpu.transpose %122, [1, 0, 2] : vector<8x4x32xf32> -> vector<4x8x32xf32>
    %124 = arith.truncf %123 : vector<4x8x32xf32> to vector<4x8x32xbf16>
    "tpu.trace_start"() <{level = 10 : i32, message = "hqd,hkd->hqk"}> : () -> ()
    %cst_71 = arith.constant dense<0.000000e+00> : vector<4x8x8xf32>
    %125 = tpu.matmul %118, %121, %cst_71 {dimension_numbers = #tpu.dot_dimension_numbers<[2], [2], [1], [1], [0, 0, 0, 1, 1, 1], [0], [0]>} : vector<4x8x32xbf16>, vector<4x8x32xbf16>, vector<4x8x8xf32> -> vector<4x8x8xf32>
    "tpu.trace_stop"() : () -> ()
    %cst_72 = arith.constant dense<0xFF800000> : vector<4x8xf32>
    %126 = vector.multi_reduction <maximumf>, %125, %cst_72 [2] : vector<4x8x8xf32> to vector<4x8xf32>
    %127 = vector.shape_cast %126 : vector<4x8xf32> to vector<4x8x1xf32>
    %128 = vector.broadcast %127 : vector<4x8x1xf32> to vector<4x8x8xf32>
    %129 = arith.subf %125, %128 : vector<4x8x8xf32>
    %130 = math.exp %129 : vector<4x8x8xf32>
    %cst_73 = arith.constant dense<0.000000e+00> : vector<4x8xf32>
    %131 = vector.multi_reduction <add>, %130, %cst_73 [2] : vector<4x8x8xf32> to vector<4x8xf32>
    %132 = vector.shape_cast %131 : vector<4x8xf32> to vector<4x8x1xf32>
    %133 = tpu.reciprocal %132 {approx = true} : vector<4x8x1xf32> -> vector<4x8x1xf32>
    %134 = vector.broadcast %133 : vector<4x8x1xf32> to vector<4x8x8xf32>
    %135 = arith.mulf %130, %134 : vector<4x8x8xf32>
    %136 = arith.truncf %135 : vector<4x8x8xf32> to vector<4x8x8xbf16>
    "tpu.trace_start"() <{level = 10 : i32, message = "hqk,hkd->hqd"}> : () -> ()
    %cst_74 = arith.constant dense<0.000000e+00> : vector<4x8x32xf32>
    %137 = tpu.matmul %136, %124, %cst_74 {dimension_numbers = #tpu.dot_dimension_numbers<[2], [1], [1], [2], [0, 0, 0, 1, 1, 2], [0], [0]>} : vector<4x8x8xbf16>, vector<4x8x32xbf16>, vector<4x8x32xf32> -> vector<4x8x32xf32>
    "tpu.trace_stop"() : () -> ()
    %138 = tpu.transpose %137, [1, 0, 2] : vector<4x8x32xf32> -> vector<8x4x32xf32>
    %139 = vector.shape_cast %138 : vector<8x4x32xf32> to vector<8x128xf32>
    %140 = arith.truncf %139 : vector<8x128xf32> to vector<8x128xbf16>
    %c0_75 = arith.constant 0 : index
    %c0_76 = arith.constant 0 : index
    %c0_77 = arith.constant 0 : index
    %141 = vector.load %arg20[%c0_75, %c0_76, %c0_77] : memref<1x128x128xbf16, #tpu.memory_space<vmem>>, vector<1x128x128xbf16>
    %142 = vector.shape_cast %141 : vector<1x128x128xbf16> to vector<128x128xbf16>
    %cst_78 = arith.constant dense<0.000000e+00> : vector<8x128xf32>
    %143 = tpu.matmul %140, %142, %cst_78 {dimension_numbers = #tpu.dot_dimension_numbers<[1], [0], [0], [1], [0, 0, 1, 1], [], []>} : vector<8x128xbf16>, vector<128x128xbf16>, vector<8x128xf32> -> vector<8x128xf32>
    %c0_79 = arith.constant 0 : index
    %c0_80 = arith.constant 0 : index
    %c0_81 = arith.constant 0 : index
    %144 = vector.load %arg21[%c0_79, %c0_80, %c0_81] : memref<1x1x128xf32, #tpu.memory_space<vmem>>, vector<1x1x128xf32>
    %145 = vector.shape_cast %144 : vector<1x1x128xf32> to vector<1x128xf32>
    %146 = vector.broadcast %145 : vector<1x128xf32> to vector<8x128xf32>
    %147 = arith.addf %143, %146 : vector<8x128xf32>
    %148 = arith.addf %147, %90 : vector<8x128xf32>
    %cst_82 = arith.constant dense<0.000000e+00> : vector<8xf32>
    %149 = vector.multi_reduction <add>, %148, %cst_82 [1] : vector<8x128xf32> to vector<8xf32>
    %150 = vector.shape_cast %149 : vector<8xf32> to vector<8x1xf32>
    %cst_83 = arith.constant 1.280000e+02 : f32
    %151 = vector.broadcast %cst_83 : f32 to vector<8x1xf32>
    %152 = arith.divf %150, %151 : vector<8x1xf32>
    %153 = vector.broadcast %152 : vector<8x1xf32> to vector<8x128xf32>
    %154 = arith.subf %148, %153 : vector<8x128xf32>
    %155 = arith.mulf %154, %154 : vector<8x128xf32>
    %cst_84 = arith.constant dense<0.000000e+00> : vector<8xf32>
    %156 = vector.multi_reduction <add>, %155, %cst_84 [1] : vector<8x128xf32> to vector<8xf32>
    %157 = vector.shape_cast %156 : vector<8xf32> to vector<8x1xf32>
    %cst_85 = arith.constant 1.280000e+02 : f32
    %158 = vector.broadcast %cst_85 : f32 to vector<8x1xf32>
    %159 = arith.divf %157, %158 : vector<8x1xf32>
    %160 = vector.broadcast %152 : vector<8x1xf32> to vector<8x128xf32>
    %161 = arith.subf %148, %160 : vector<8x128xf32>
    %cst_86 = arith.constant 9.99999996E-13 : f32
    %162 = vector.broadcast %cst_86 : f32 to vector<8x1xf32>
    %163 = arith.addf %159, %162 : vector<8x1xf32>
    %164 = math.rsqrt %163 : vector<8x1xf32>
    %165 = vector.broadcast %164 : vector<8x1xf32> to vector<8x128xf32>
    %166 = arith.mulf %161, %165 : vector<8x128xf32>
    %c0_87 = arith.constant 0 : index
    %c0_88 = arith.constant 0 : index
    %c0_89 = arith.constant 0 : index
    %167 = vector.load %arg22[%c0_87, %c0_88, %c0_89] : memref<1x1x128xf32, #tpu.memory_space<vmem>>, vector<1x1x128xf32>
    %168 = vector.shape_cast %167 : vector<1x1x128xf32> to vector<1x128xf32>
    %169 = vector.broadcast %168 : vector<1x128xf32> to vector<8x128xf32>
    %170 = arith.mulf %166, %169 : vector<8x128xf32>
    %c0_90 = arith.constant 0 : index
    %c0_91 = arith.constant 0 : index
    %c0_92 = arith.constant 0 : index
    %171 = vector.load %arg23[%c0_90, %c0_91, %c0_92] : memref<1x1x128xf32, #tpu.memory_space<vmem>>, vector<1x1x128xf32>
    %172 = vector.shape_cast %171 : vector<1x1x128xf32> to vector<1x128xf32>
    %173 = vector.broadcast %172 : vector<1x128xf32> to vector<8x128xf32>
    %174 = arith.addf %170, %173 : vector<8x128xf32>
    %175 = arith.truncf %174 : vector<8x128xf32> to vector<8x128xbf16>
    %c0_93 = arith.constant 0 : index
    %c0_94 = arith.constant 0 : index
    %c0_95 = arith.constant 0 : index
    %176 = vector.load %arg24[%c0_93, %c0_94, %c0_95] : memref<1x128x128xbf16, #tpu.memory_space<vmem>>, vector<1x128x128xbf16>
    %177 = vector.shape_cast %176 : vector<1x128x128xbf16> to vector<128x128xbf16>
    %cst_96 = arith.constant dense<0.000000e+00> : vector<8x128xf32>
    %178 = tpu.matmul %175, %177, %cst_96 {dimension_numbers = #tpu.dot_dimension_numbers<[1], [0], [0], [1], [0, 0, 1, 1], [], []>} : vector<8x128xbf16>, vector<128x128xbf16>, vector<8x128xf32> -> vector<8x128xf32>
    %c0_97 = arith.constant 0 : index
    %c0_98 = arith.constant 0 : index
    %c0_99 = arith.constant 0 : index
    %179 = vector.load %arg25[%c0_97, %c0_98, %c0_99] : memref<1x1x128xf32, #tpu.memory_space<vmem>>, vector<1x1x128xf32>
    %180 = vector.shape_cast %179 : vector<1x1x128xf32> to vector<1x128xf32>
    %181 = vector.broadcast %180 : vector<1x128xf32> to vector<8x128xf32>
    %182 = arith.addf %178, %181 : vector<8x128xf32>
    %cst_100 = arith.constant 0.000000e+00 : f32
    %183 = vector.broadcast %cst_100 : f32 to vector<8x128xf32>
    %184 = arith.maximumf %182, %183 : vector<8x128xf32>
    %185 = arith.truncf %184 : vector<8x128xf32> to vector<8x128xbf16>
    %c0_101 = arith.constant 0 : index
    %c0_102 = arith.constant 0 : index
    %c0_103 = arith.constant 0 : index
    %186 = vector.load %arg26[%c0_101, %c0_102, %c0_103] : memref<1x128x128xbf16, #tpu.memory_space<vmem>>, vector<1x128x128xbf16>
    %187 = vector.shape_cast %186 : vector<1x128x128xbf16> to vector<128x128xbf16>
    %cst_104 = arith.constant dense<0.000000e+00> : vector<8x128xf32>
    %188 = tpu.matmul %185, %187, %cst_104 {dimension_numbers = #tpu.dot_dimension_numbers<[1], [0], [0], [1], [0, 0, 1, 1], [], []>} : vector<8x128xbf16>, vector<128x128xbf16>, vector<8x128xf32> -> vector<8x128xf32>
    %c0_105 = arith.constant 0 : index
    %c0_106 = arith.constant 0 : index
    %c0_107 = arith.constant 0 : index
    %189 = vector.load %arg27[%c0_105, %c0_106, %c0_107] : memref<1x1x128xf32, #tpu.memory_space<vmem>>, vector<1x1x128xf32>
    %190 = vector.shape_cast %189 : vector<1x1x128xf32> to vector<1x128xf32>
    %191 = vector.broadcast %190 : vector<1x128xf32> to vector<8x128xf32>
    %192 = arith.addf %188, %191 : vector<8x128xf32>
    %193 = arith.addf %192, %174 : vector<8x128xf32>
    %cst_108 = arith.constant dense<0.000000e+00> : vector<8xf32>
    %194 = vector.multi_reduction <add>, %193, %cst_108 [1] : vector<8x128xf32> to vector<8xf32>
    %195 = vector.shape_cast %194 : vector<8xf32> to vector<8x1xf32>
    %cst_109 = arith.constant 1.280000e+02 : f32
    %196 = vector.broadcast %cst_109 : f32 to vector<8x1xf32>
    %197 = arith.divf %195, %196 : vector<8x1xf32>
    %198 = vector.broadcast %197 : vector<8x1xf32> to vector<8x128xf32>
    %199 = arith.subf %193, %198 : vector<8x128xf32>
    %200 = arith.mulf %199, %199 : vector<8x128xf32>
    %cst_110 = arith.constant dense<0.000000e+00> : vector<8xf32>
    %201 = vector.multi_reduction <add>, %200, %cst_110 [1] : vector<8x128xf32> to vector<8xf32>
    %202 = vector.shape_cast %201 : vector<8xf32> to vector<8x1xf32>
    %cst_111 = arith.constant 1.280000e+02 : f32
    %203 = vector.broadcast %cst_111 : f32 to vector<8x1xf32>
    %204 = arith.divf %202, %203 : vector<8x1xf32>
    %205 = vector.broadcast %197 : vector<8x1xf32> to vector<8x128xf32>
    %206 = arith.subf %193, %205 : vector<8x128xf32>
    %cst_112 = arith.constant 9.99999996E-13 : f32
    %207 = vector.broadcast %cst_112 : f32 to vector<8x1xf32>
    %208 = arith.addf %204, %207 : vector<8x1xf32>
    %209 = math.rsqrt %208 : vector<8x1xf32>
    %210 = vector.broadcast %209 : vector<8x1xf32> to vector<8x128xf32>
    %211 = arith.mulf %206, %210 : vector<8x128xf32>
    %c0_113 = arith.constant 0 : index
    %c0_114 = arith.constant 0 : index
    %c0_115 = arith.constant 0 : index
    %212 = vector.load %arg28[%c0_113, %c0_114, %c0_115] : memref<1x1x128xf32, #tpu.memory_space<vmem>>, vector<1x1x128xf32>
    %213 = vector.shape_cast %212 : vector<1x1x128xf32> to vector<1x128xf32>
    %214 = vector.broadcast %213 : vector<1x128xf32> to vector<8x128xf32>
    %215 = arith.mulf %211, %214 : vector<8x128xf32>
    %c0_116 = arith.constant 0 : index
    %c0_117 = arith.constant 0 : index
    %c0_118 = arith.constant 0 : index
    %216 = vector.load %arg29[%c0_116, %c0_117, %c0_118] : memref<1x1x128xf32, #tpu.memory_space<vmem>>, vector<1x1x128xf32>
    %217 = vector.shape_cast %216 : vector<1x1x128xf32> to vector<1x128xf32>
    %218 = vector.broadcast %217 : vector<1x128xf32> to vector<8x128xf32>
    %219 = arith.addf %215, %218 : vector<8x128xf32>
    %c0_119 = arith.constant 0 : index
    %c0_120 = arith.constant 0 : index
    %c0_121 = arith.constant 0 : index
    %220 = vector.load %arg30[%c0_119, %c0_120, %c0_121] : memref<1x8x128xf32, #tpu.memory_space<vmem>>, vector<1x8x128xf32>
    %221 = vector.shape_cast %220 : vector<1x8x128xf32> to vector<8x128xf32>
    %222 = vector.shape_cast %219 : vector<8x128xf32> to vector<1x8x128xf32>
    tpu.vector_store %arg30[%c0_119, %c0_120, %c0_121], %222 {strides = array<i32>} : memref<1x8x128xf32, #tpu.memory_space<vmem>>, vector<1x8x128xf32>,
    return
  }
  func.func @transform_0(%arg0: i32, %arg1: i32) -> (i32, i32, i32) {
    %c0_i32 = arith.constant 0 : i32
    %c0_i32_0 = arith.constant 0 : i32
    %c0_i32_1 = arith.constant 0 : i32
    return %arg0, %c0_i32, %c0_i32_0 : i32, i32, i32
  }
  func.func @transform_1(%arg0: i32, %arg1: i32) -> (i32, i32, i32) {
    %c0_i32 = arith.constant 0 : i32
    %c0_i32_0 = arith.constant 0 : i32
    %c0_i32_1 = arith.constant 0 : i32
    return %arg0, %c0_i32, %c0_i32_0 : i32, i32, i32
  }
  func.func @transform_2(%arg0: i32, %arg1: i32) -> (i32, i32, i32) {
    %c0_i32 = arith.constant 0 : i32
    %c0_i32_0 = arith.constant 0 : i32
    %c0_i32_1 = arith.constant 0 : i32
    return %arg1, %c0_i32, %c0_i32_0 : i32, i32, i32
  }
  func.func @transform_3(%arg0: i32, %arg1: i32) -> (i32, i32, i32) {
    %c0_i32 = arith.constant 0 : i32
    %c0_i32_0 = arith.constant 0 : i32
    %c0_i32_1 = arith.constant 0 : i32
    return %arg1, %c0_i32, %c0_i32_0 : i32, i32, i32
  }
  func.func @transform_4(%arg0: i32, %arg1: i32) -> (i32, i32, i32) {
    %c0_i32 = arith.constant 0 : i32
    %c0_i32_0 = arith.constant 0 : i32
    %c0_i32_1 = arith.constant 0 : i32
    return %arg1, %c0_i32, %c0_i32_0 : i32, i32, i32
  }
  func.func @transform_5(%arg0: i32, %arg1: i32) -> (i32, i32, i32) {
    %c0_i32 = arith.constant 0 : i32
    %c0_i32_0 = arith.constant 0 : i32
    %c0_i32_1 = arith.constant 0 : i32
    return %arg1, %c0_i32, %c0_i32_0 : i32, i32, i32
  }
  func.func @transform_6(%arg0: i32, %arg1: i32) -> (i32, i32, i32) {
    %c0_i32 = arith.constant 0 : i32
    %c0_i32_0 = arith.constant 0 : i32
    %c0_i32_1 = arith.constant 0 : i32
    return %arg1, %c0_i32, %c0_i32_0 : i32, i32, i32
  }
  func.func @transform_7(%arg0: i32, %arg1: i32) -> (i32, i32, i32) {
    %c0_i32 = arith.constant 0 : i32
    %c0_i32_0 = arith.constant 0 : i32
    %c0_i32_1 = arith.constant 0 : i32
    return %arg1, %c0_i32, %c0_i32_0 : i32, i32, i32
  }
  func.func @transform_8(%arg0: i32, %arg1: i32) -> (i32, i32, i32) {
    %c0_i32 = arith.constant 0 : i32
    %c0_i32_0 = arith.constant 0 : i32
    %c0_i32_1 = arith.constant 0 : i32
    return %arg1, %c0_i32, %c0_i32_0 : i32, i32, i32
  }
  func.func @transform_9(%arg0: i32, %arg1: i32) -> (i32, i32, i32) {
    %c0_i32 = arith.constant 0 : i32
    %c0_i32_0 = arith.constant 0 : i32
    %c0_i32_1 = arith.constant 0 : i32
    return %arg1, %c0_i32, %c0_i32_0 : i32, i32, i32
  }
  func.func @transform_10(%arg0: i32, %arg1: i32) -> (i32, i32, i32) {
    %c0_i32 = arith.constant 0 : i32
    %c0_i32_0 = arith.constant 0 : i32
    %c0_i32_1 = arith.constant 0 : i32
    return %arg1, %c0_i32, %c0_i32_0 : i32, i32, i32
  }
  func.func @transform_11(%arg0: i32, %arg1: i32) -> (i32, i32, i32) {
    %c0_i32 = arith.constant 0 : i32
    %c0_i32_0 = arith.constant 0 : i32
    %c0_i32_1 = arith.constant 0 : i32
    return %arg1, %c0_i32, %c0_i32_0 : i32, i32, i32
  }
  func.func @transform_12(%arg0: i32, %arg1: i32) -> (i32, i32, i32) {
    %c0_i32 = arith.constant 0 : i32
    %c0_i32_0 = arith.constant 0 : i32
    %c0_i32_1 = arith.constant 0 : i32
    return %arg1, %c0_i32, %c0_i32_0 : i32, i32, i32
  }
  func.func @transform_13(%arg0: i32, %arg1: i32) -> (i32, i32, i32) {
    %c0_i32 = arith.constant 0 : i32
    %c0_i32_0 = arith.constant 0 : i32
    %c0_i32_1 = arith.constant 0 : i32
    return %arg1, %c0_i32, %c0_i32_0 : i32, i32, i32
  }
  func.func @transform_14(%arg0: i32, %arg1: i32) -> (i32, i32, i32) {
    %c0_i32 = arith.constant 0 : i32
    %c0_i32_0 = arith.constant 0 : i32
    %c0_i32_1 = arith.constant 0 : i32
    return %arg1, %c0_i32, %c0_i32_0 : i32, i32, i32
  }
  func.func @transform_15(%arg0: i32, %arg1: i32) -> (i32, i32, i32) {
    %c0_i32 = arith.constant 0 : i32
    %c0_i32_0 = arith.constant 0 : i32
    %c0_i32_1 = arith.constant 0 : i32
    return %arg1, %c0_i32, %c0_i32_0 : i32, i32, i32
  }
  func.func @transform_16(%arg0: i32, %arg1: i32) -> (i32, i32, i32) {
    %c0_i32 = arith.constant 0 : i32
    %c0_i32_0 = arith.constant 0 : i32
    %c0_i32_1 = arith.constant 0 : i32
    return %arg1, %c0_i32, %c0_i32_0 : i32, i32, i32
  }
  func.func @transform_17(%arg0: i32, %arg1: i32) -> (i32, i32, i32) {
    %c0_i32 = arith.constant 0 : i32
    %c0_i32_0 = arith.constant 0 : i32
    %c0_i32_1 = arith.constant 0 : i32
    return %arg1, %c0_i32, %c0_i32_0 : i32, i32, i32
  }
  func.func @transform_18(%arg0: i32, %arg1: i32) -> (i32, i32, i32) {
    %c0_i32 = arith.constant 0 : i32
    %c0_i32_0 = arith.constant 0 : i32
    %c0_i32_1 = arith.constant 0 : i32
    return %arg1, %c0_i32, %c0_i32_0 : i32, i32, i32
  }
  func.func @transform_19(%arg0: i32, %arg1: i32) -> (i32, i32, i32) {
    %c0_i32 = arith.constant 0 : i32
    %c0_i32_0 = arith.constant 0 : i32
    %c0_i32_1 = arith.constant 0 : i32
    return %arg1, %c0_i32, %c0_i32_0 : i32, i32, i32
  }
  func.func @transform_20(%arg0: i32, %arg1: i32) -> (i32, i32, i32) {
    %c0_i32 = arith.constant 0 : i32
    %c0_i32_0 = arith.constant 0 : i32
    %c0_i32_1 = arith.constant 0 : i32
    return %arg1, %c0_i32, %c0_i32_0 : i32, i32, i32
  }
  func.func @transform_21(%arg0: i32, %arg1: i32) -> (i32, i32, i32) {
    %c0_i32 = arith.constant 0 : i32
    %c0_i32_0 = arith.constant 0 : i32
    %c0_i32_1 = arith.constant 0 : i32
    return %arg1, %c0_i32, %c0_i32_0 : i32, i32, i32
  }
  func.func @transform_22(%arg0: i32, %arg1: i32) -> (i32, i32, i32) {
    %c0_i32 = arith.constant 0 : i32
    %c0_i32_0 = arith.constant 0 : i32
    %c0_i32_1 = arith.constant 0 : i32
    return %arg1, %c0_i32, %c0_i32_0 : i32, i32, i32
  }
  func.func @transform_23(%arg0: i32, %arg1: i32) -> (i32, i32, i32) {
    %c0_i32 = arith.constant 0 : i32
    %c0_i32_0 = arith.constant 0 : i32
    %c0_i32_1 = arith.constant 0 : i32
    return %arg1, %c0_i32, %c0_i32_0 : i32, i32, i32
  }
  func.func @transform_24(%arg0: i32, %arg1: i32) -> (i32, i32, i32) {
    %c0_i32 = arith.constant 0 : i32
    %c0_i32_0 = arith.constant 0 : i32
    %c0_i32_1 = arith.constant 0 : i32
    return %arg1, %c0_i32, %c0_i32_0 : i32, i32, i32
  }
  func.func @transform_25(%arg0: i32, %arg1: i32) -> (i32, i32, i32) {
    %c0_i32 = arith.constant 0 : i32
    %c0_i32_0 = arith.constant 0 : i32
    %c0_i32_1 = arith.constant 0 : i32
    return %arg1, %c0_i32, %c0_i32_0 : i32, i32, i32
  }
  func.func @transform_26(%arg0: i32, %arg1: i32) -> (i32, i32, i32) {
    %c0_i32 = arith.constant 0 : i32
    %c0_i32_0 = arith.constant 0 : i32
    %c0_i32_1 = arith.constant 0 : i32
    return %arg1, %c0_i32, %c0_i32_0 : i32, i32, i32
  }
  func.func @transform_27(%arg0: i32, %arg1: i32) -> (i32, i32, i32) {
    %c0_i32 = arith.constant 0 : i32
    %c0_i32_0 = arith.constant 0 : i32
    %c0_i32_1 = arith.constant 0 : i32
    return %arg1, %c0_i32, %c0_i32_0 : i32, i32, i32
  }
  func.func @transform_28(%arg0: i32, %arg1: i32) -> (i32, i32, i32) {
    %c0_i32 = arith.constant 0 : i32
    %c0_i32_0 = arith.constant 0 : i32
    %c0_i32_1 = arith.constant 0 : i32
    return %arg0, %c0_i32, %c0_i32_0 : i32, i32, i32
  }
}

</mosaic_0001>

<llo_original>
// kernel: tpu_custom_call.1
$region0: #{tpu_custom_call.1}
  #allocation0 [shape = 'u32[]', space=smem, size = 0x4, offset = 0x4, fixed_abs, tag = 'smem constant byte address 0x4 - core index']
  #allocation1 [shape = 'u32[144,128]{1,0:T(1,128)}', space=vmem, size = 0x12000, scoped, tag = 'internal scratch']
  %s0 = inlined_call_operand.hbm [shape: f32[2,8,128], index: 0, kind: input, shape index: {}]
  %s1 = inlined_call_operand.hbm [shape: f32[2,8,128], index: 1, kind: input, shape index: {}]
  %s2 = inlined_call_operand.hbm [shape: bf16[2,128,128], index: 2, kind: input, shape index: {}]
  %s3 = inlined_call_operand.vmem [shape: f32[2,1,128], index: 3, kind: input, shape index: {}]
  %s4 = inlined_call_operand.hbm [shape: bf16[2,128,128], index: 4, kind: input, shape index: {}]
  %s5 = inlined_call_operand.vmem [shape: f32[2,1,128], index: 5, kind: input, shape index: {}]
  %s6 = inlined_call_operand.hbm [shape: bf16[2,128,128], index: 6, kind: input, shape index: {}]
  %s7 = inlined_call_operand.vmem [shape: f32[2,1,128], index: 7, kind: input, shape index: {}]
  %s8 = inlined_call_operand.hbm [shape: bf16[2,128,128], index: 8, kind: input, shape index: {}]
  %s9 = inlined_call_operand.vmem [shape: f32[2,1,128], index: 9, kind: input, shape index: {}]
  %s10 = inlined_call_operand.vmem [shape: f32[2,1,128], index: 10, kind: input, shape index: {}]
  %s11 = inlined_call_operand.vmem [shape: f32[2,1,128], index: 11, kind: input, shape index: {}]
  %s12 = inlined_call_operand.hbm [shape: bf16[2,128,128], index: 12, kind: input, shape index: {}]
  %s13 = inlined_call_operand.vmem [shape: f32[2,1,128], index: 13, kind: input, shape index: {}]
  %s14 = inlined_call_operand.hbm [shape: bf16[2,128,128], index: 14, kind: input, shape index: {}]
  %s15 = inlined_call_operand.vmem [shape: f32[2,1,128], index: 15, kind: input, shape index: {}]
  %s16 = inlined_call_operand.hbm [shape: bf16[2,128,128], index: 16, kind: input, shape index: {}]
  %s17 = inlined_call_operand.vmem [shape: f32[2,1,128], index: 17, kind: input, shape index: {}]
  %s18 = inlined_call_operand.hbm [shape: bf16[2,128,128], index: 18, kind: input, shape index: {}]
  %s19 = inlined_call_operand.vmem [shape: f32[2,1,128], index: 19, kind: input, shape index: {}]
  %s20 = inlined_call_operand.vmem [shape: f32[2,1,128], index: 20, kind: input, shape index: {}]
  %s21 = inlined_call_operand.vmem [shape: f32[2,1,128], index: 21, kind: input, shape index: {}]
  %s22 = inlined_call_operand.hbm [shape: bf16[2,128,128], index: 22, kind: input, shape index: {}]
  %s23 = inlined_call_operand.vmem [shape: f32[2,1,128], index: 23, kind: input, shape index: {}]
  %s24 = inlined_call_operand.hbm [shape: bf16[2,128,128], index: 24, kind: input, shape index: {}]
  %s25 = inlined_call_operand.vmem [shape: f32[2,1,128], index: 25, kind: input, shape index: {}]
  %s26 = inlined_call_operand.vmem [shape: f32[2,1,128], index: 26, kind: input, shape index: {}]
  %s27 = inlined_call_operand.vmem [shape: f32[2,1,128], index: 27, kind: input, shape index: {}]
  %s28 = inlined_call_operand.hbm [shape: f32[2,8,128], index: 28, kind: output, shape index: {}]
  %s29 = sld [smem:[#allocation0]]
  $region197: #{tpu_custom_call.1} parent=0
    _
  %s31 = ssub.s32 1, %s29
  %s32 = scalar_select 0, %s31, %s29
  $region1: #{tpu_custom_call.1} parent=0
    #allocation2 [shape = 'u8[8192]{0}', space=vmem, size = 0x2000, scoped, tag = 'input window, operand 0']
    #allocation3 [shape = 's32[2]{0}', space=sflag, size = 0x8, scoped, tag = 'scoped memory for tpu_custom_call.1']
    #allocation4 [shape = 's32[2]{0}', space=sflag, size = 0x8, scoped, tag = 'scoped memory for tpu_custom_call.1']
    #allocation5 [shape = 'u8[8192]{0}', space=vmem, size = 0x2000, scoped, tag = 'input window, operand 1']
    #allocation6 [shape = 's32[2]{0}', space=sflag, size = 0x8, scoped, tag = 'scoped memory for tpu_custom_call.1']
    #allocation7 [shape = 'u8[65536]{0}', space=vmem, size = 0x10000, scoped, tag = 'input window, operand 2']
    #allocation8 [shape = 'u8[65536]{0}', space=vmem, size = 0x10000, scoped, tag = 'input window, operand 4']
    #allocation9 [shape = 's32[2]{0}', space=sflag, size = 0x8, scoped, tag = 'scoped memory for tpu_custom_call.1']
    #allocation10 [shape = 'u8[65536]{0}', space=vmem, size = 0x10000, scoped, tag = 'input window, operand 6']
    #allocation11 [shape = 'u8[65536]{0}', space=vmem, size = 0x10000, scoped, tag = 'input window, operand 8']
    #allocation12 [shape = 's32[2]{0}', space=sflag, size = 0x8, scoped, tag = 'scoped memory for tpu_custom_call.1']
    #allocation13 [shape = 'u8[65536]{0}', space=vmem, size = 0x10000, scoped, tag = 'input window, operand 12']
    #allocation14 [shape = 'u8[65536]{0}', space=vmem, size = 0x10000, scoped, tag = 'input window, operand 14']
    #allocation15 [shape = 's32[2]{0}', space=sflag, size = 0x8, scoped, tag = 'scoped memory for tpu_custom_call.1']
    #allocation16 [shape = 'u8[65536]{0}', space=vmem, size = 0x10000, scoped, tag = 'input window, operand 16']
    #allocation17 [shape = 'u8[65536]{0}', space=vmem, size = 0x10000, scoped, tag = 'input window, operand 18']
    #allocation18 [shape = 's32[2]{0}', space=sflag, size = 0x8, scoped, tag = 'scoped memory for tpu_custom_call.1']
    #allocation19 [shape = 'u8[65536]{0}', space=vmem, size = 0x10000, scoped, tag = 'input window, operand 22']
    #allocation20 [shape = 'u8[65536]{0}', space=vmem, size = 0x10000, scoped, tag = 'input window, operand 24']
    #allocation21 [shape = 's32[2]{0}', space=sflag, size = 0x8, scoped, tag = 'scoped memory for tpu_custom_call.1']
    #allocation22 [shape = 'u8[8192]{0}', space=vmem, size = 0x2000, scoped, tag = 'output window, operand 0']
    %33 = vsyncpa [#allocation3], 0
    %s34 = scalar_lea.sflag [#allocation3], 1
    %35 = vsyncpa %s34, 0
    %36 = vsyncpa [#allocation6], 0
    %s37 = scalar_lea.sflag [#allocation6], 1
    %38 = vsyncpa %s37, 0
    %39 = vsyncpa [#allocation9], 0
    %s40 = scalar_lea.sflag [#allocation9], 1
    %41 = vsyncpa %s40, 0
    %42 = vsyncpa [#allocation12], 0
    %s43 = scalar_lea.sflag [#allocation12], 1
    %44 = vsyncpa %s43, 0
    %45 = vsyncpa [#allocation15], 0
    %s46 = scalar_lea.sflag [#allocation15], 1
    %47 = vsyncpa %s46, 0
    %48 = vsyncpa [#allocation18], 0
    %s49 = scalar_lea.sflag [#allocation18], 1
    %50 = vsyncpa %s49, 0
    %51 = vsyncpa [#allocation21], 0
    %s52 = scalar_lea.sflag [#allocation21], 1
    %53 = vsyncpa %s52, 0
    %54 = vsyncpa [#allocation4], 0
    %s55 = scalar_lea.sflag [#allocation4], 1
    %56 = vsyncpa %s55, 0
    loop: start=0, step=1, limit=6
    $region2: #{tpu_custom_call.1} parent=1 // loop_pre_header
      _
    $region3: #{tpu_custom_call.1} parent=1 // loop_header
      %s58 = sphi 0, %s62
      %p59 = scmp.ge.s32.totalorder %s58, 6
      %s65 = sphi 0, %s77
      %s66 = sphi 0, %s73
      %s67 = sphi 0, %s65
      %s68 = sphi 0, %s66
      %s69 = sphi 0, %s67
      %s70 = sphi 0, %s68
      %s80 = sphi 0, %s82
      %s83 = sphi 0, %s80
      %s84 = sphi 0, %s83
      %s100 = sphi 0, %s84
      %s106 = sphi 0, %s108
      %s109 = sphi 0, %s106
      %s110 = sphi 0, %s109
      %s126 = sphi 0, %s110
      %s132 = sphi 0, %s134
      %s135 = sphi 0, %s132
      %s136 = sphi 0, %s135
      %s152 = sphi 0, %s136
      %s158 = sphi 0, %s160
      %s161 = sphi 0, %s158
      %s162 = sphi 0, %s161
      %s178 = sphi 0, %s162
      %s184 = sphi 0, %s186
      %s187 = sphi 0, %s184
      %s188 = sphi 0, %s187
      %s204 = sphi 0, %s188
      %s210 = sphi 0, %s212
      %s213 = sphi 0, %s210
      %s214 = sphi 0, %s213
      %s230 = sphi 0, %s214
      %s236 = sphi 0, %s238
      %s239 = sphi 0, %s236
      %s240 = sphi 0, %s239
      %s256 = sphi 0, %s240
      %s262 = sphi 0, %s264
      %s265 = sphi 0, %s262
      %s266 = sphi 0, %s265
      %s282 = sphi 0, %s266
      %s288 = sphi 0, %s290
      %s291 = sphi 0, %s288
      %s292 = sphi 0, %s291
      %s308 = sphi 0, %s292
      %s314 = sphi 0, %s316
      %s317 = sphi 0, %s314
      %s318 = sphi 0, %s317
      %s334 = sphi 0, %s318
      %s340 = sphi 0, %s342
      %s343 = sphi 0, %s340
      %s344 = sphi 0, %s343
      %s360 = sphi 0, %s344
      %s366 = sphi 0, %s368
      %s369 = sphi 0, %s366
      %s370 = sphi 0, %s369
      %s386 = sphi 0, %s370
      %s392 = sphi 0, %s394
      %s395 = sphi 0, %s392
      %s396 = sphi 0, %s395
      %s412 = sphi 0, %s396
      %s418 = sphi 0, %s420
      %s421 = sphi 0, %s418
      %s422 = sphi 0, %s421
      %s438 = sphi 0, %s422
      %s444 = sphi 0, %s446
      %s447 = sphi 0, %s444
      %s448 = sphi 0, %s447
      %s464 = sphi 0, %s448
      %s470 = sphi 0, %s472
      %s473 = sphi 0, %s470
      %s474 = sphi 0, %s473
      %s490 = sphi 0, %s474
      %s496 = sphi 0, %s498
      %s499 = sphi 0, %s496
      %s500 = sphi 0, %s499
      %s516 = sphi 0, %s500
      %s522 = sphi 0, %s524
      %s525 = sphi 0, %s522
      %s526 = sphi 0, %s525
      %s542 = sphi 0, %s526
      %s548 = sphi 0, %s550
      %s551 = sphi 0, %s548
      %s552 = sphi 0, %s551
      %s568 = sphi 0, %s552
      %s574 = sphi 0, %s576
      %s577 = sphi 0, %s574
      %s578 = sphi 0, %s577
      %s594 = sphi 0, %s578
      %s600 = sphi 0, %s602
      %s603 = sphi 0, %s600
      %s604 = sphi 0, %s603
      %s620 = sphi 0, %s604
      %s626 = sphi 0, %s628
      %s629 = sphi 0, %s626
      %s630 = sphi 0, %s629
      %s646 = sphi 0, %s630
      %s652 = sphi 0, %s654
      %s655 = sphi 0, %s652
      %s656 = sphi 0, %s655
      %s672 = sphi 0, %s656
      %s678 = sphi 0, %s680
      %s681 = sphi 0, %s678
      %s682 = sphi 0, %s681
      %s698 = sphi 0, %s682
      %s704 = sphi 0, %s706
      %s707 = sphi 0, %s704
      %s708 = sphi 0, %s707
      %s724 = sphi 0, %s708
      %s730 = sphi 0, %s732
      %s733 = sphi 0, %s730
      %s734 = sphi 0, %s733
      %s750 = sphi 0, %s734
      %s756 = sphi 0, %s758
      %s759 = sphi 0, %s756
      %s760 = sphi 0, %s759
      %s776 = sphi 0, %s760
      %s782 = sphi 0, %s784
      %s785 = sphi 0, %s782
      %s786 = sphi 0, %s785
      %s802 = sphi 0, %s786
      %s808 = sphi 0, %s810
      %s811 = sphi 0, %s808
      %s812 = sphi 0, %s811
      %s828 = sphi 0, %s812
    $region4: #{tpu_custom_call.1} parent=1 // loop_header_branch
      %61 = sbr.rel (%p59) target = $region8
    $region5: #{tpu_custom_call.1} parent=1 // loop_body
      %s63 = ssub.s32 %s58, 1
      %s64 = ssub.s32 %s58, 2
      %s71 = sadd.s32 1, %s66
      %p72 = scmp.ge.s32.totalorder %s71, 2
      %s73 = scalar_select %p72, 0, %s71
      %s74 = sadd.s32 1, %s65
      %s75 = scalar_select %p72, %s74, %s65
      %p76 = scmp.ge.s32.totalorder %s75, 2
      %s77 = scalar_select %p76, 0, %s75
      %s78 = ssub.s32 %s65, %s77
      %p79 = scmp.eq.s32.totalorder %s78, 0
      %s81 = sadd.s32 %s80, 1
      %s82 = scalar_select %p79, %s80, %s81
      %p85 = pneg %p79
      %p86 = scmp.eq.s32.totalorder %s58, 3
      %p87 = por %p85, %p86
      %p88 = scmp.ne.s32.totalorder %s80, %s83
      %p89 = scmp.eq.s32.totalorder %s58, 0
      %p90 = por %p88, %p89
      %p91 = scmp.ne.s32.totalorder %s80, %s83
      %p92 = scmp.eq.s32.totalorder %s63, 3
      %p93 = por %p91, %p92
      %p94 = scmp.ne.s32.totalorder %s83, %s84
      %p95 = scmp.eq.s32.totalorder %s63, 0
      %p96 = por %p94, %p95
      %p97 = scmp.ne.s32.totalorder %s83, %s84
      %p98 = scmp.eq.s32.totalorder %s64, 3
      %p99 = por %p97, %p98
      %p101 = scmp.ne.s32.totalorder %s84, %s100
      %p102 = scmp.eq.s32.totalorder %s64, 0
      %p103 = por %p101, %p102
      %s104 = ssub.s32 %s65, %s77
      %p105 = scmp.eq.s32.totalorder %s104, 0
      %s107 = sadd.s32 %s106, 1
      %s108 = scalar_select %p105, %s106, %s107
      %p111 = pneg %p105
      %p112 = scmp.eq.s32.totalorder %s58, 3
      %p113 = por %p111, %p112
      %p114 = scmp.ne.s32.totalorder %s106, %s109
      %p115 = scmp.eq.s32.totalorder %s58, 0
      %p116 = por %p114, %p115
      %p117 = scmp.ne.s32.totalorder %s106, %s109
      %p118 = scmp.eq.s32.totalorder %s63, 3
      %p119 = por %p117, %p118
      %p120 = scmp.ne.s32.totalorder %s109, %s110
      %p121 = scmp.eq.s32.totalorder %s63, 0
      %p122 = por %p120, %p121
      %p123 = scmp.ne.s32.totalorder %s109, %s110
      %p124 = scmp.eq.s32.totalorder %s64, 3
      %p125 = por %p123, %p124
      %p127 = scmp.ne.s32.totalorder %s110, %s126
      %p128 = scmp.eq.s32.totalorder %s64, 0
      %p129 = por %p127, %p128
      %s130 = ssub.s32 %s66, %s73
      %p131 = scmp.eq.s32.totalorder %s130, 0
      %s133 = sadd.s32 %s132, 1
      %s134 = scalar_select %p131, %s132, %s133
      %p137 = pneg %p131
      %p138 = scmp.eq.s32.totalorder %s58, 3
      %p139 = por %p137, %p138
      %p140 = scmp.ne.s32.totalorder %s132, %s135
      %p141 = scmp.eq.s32.totalorder %s58, 0
      %p142 = por %p140, %p141
      %p143 = scmp.ne.s32.totalorder %s132, %s135
      %p144 = scmp.eq.s32.totalorder %s63, 3
      %p145 = por %p143, %p144
      %p146 = scmp.ne.s32.totalorder %s135, %s136
      %p147 = scmp.eq.s32.totalorder %s63, 0
      %p148 = por %p146, %p147
      %p149 = scmp.ne.s32.totalorder %s135, %s136
      %p150 = scmp.eq.s32.totalorder %s64, 3
      %p151 = por %p149, %p150
      %p153 = scmp.ne.s32.totalorder %s136, %s152
      %p154 = scmp.eq.s32.totalorder %s64, 0
      %p155 = por %p153, %p154
      %s156 = ssub.s32 %s66, %s73
      %p157 = scmp.eq.s32.totalorder %s156, 0
      %s159 = sadd.s32 %s158, 1
      %s160 = scalar_select %p157, %s158, %s159
      %p163 = pneg %p157
      %p164 = scmp.eq.s32.totalorder %s58, 3
      %p165 = por %p163, %p164
      %p166 = scmp.ne.s32.totalorder %s158, %s161
      %p167 = scmp.eq.s32.totalorder %s58, 0
      %p168 = por %p166, %p167
      %p169 = scmp.ne.s32.totalorder %s158, %s161
      %p170 = scmp.eq.s32.totalorder %s63, 3
      %p171 = por %p169, %p170
      %p172 = scmp.ne.s32.totalorder %s161, %s162
      %p173 = scmp.eq.s32.totalorder %s63, 0
      %p174 = por %p172, %p173
      %p175 = scmp.ne.s32.totalorder %s161, %s162
      %p176 = scmp.eq.s32.totalorder %s64, 3
      %p177 = por %p175, %p176
      %p179 = scmp.ne.s32.totalorder %s162, %s178
      %p180 = scmp.eq.s32.totalorder %s64, 0
      %p181 = por %p179, %p180
      %s182 = ssub.s32 %s66, %s73
      %p183 = scmp.eq.s32.totalorder %s182, 0
      %s185 = sadd.s32 %s184, 1
      %s186 = scalar_select %p183, %s184, %s185
      %p189 = pneg %p183
      %p190 = scmp.eq.s32.totalorder %s58, 3
      %p191 = por %p189, %p190
      %p192 = scmp.ne.s32.totalorder %s184, %s187
      %p193 = scmp.eq.s32.totalorder %s58, 0
      %p194 = por %p192, %p193
      %p195 = scmp.ne.s32.totalorder %s184, %s187
      %p196 = scmp.eq.s32.totalorder %s63, 3
      %p197 = por %p195, %p196
      %p198 = scmp.ne.s32.totalorder %s187, %s188
      %p199 = scmp.eq.s32.totalorder %s63, 0
      %p200 = por %p198, %p199
      %p201 = scmp.ne.s32.totalorder %s187, %s188
      %p202 = scmp.eq.s32.totalorder %s64, 3
      %p203 = por %p201, %p202
      %p205 = scmp.ne.s32.totalorder %s188, %s204
      %p206 = scmp.eq.s32.totalorder %s64, 0
      %p207 = por %p205, %p206
      %s208 = ssub.s32 %s66, %s73
      %p209 = scmp.eq.s32.totalorder %s208, 0
      %s211 = sadd.s32 %s210, 1
      %s212 = scalar_select %p209, %s210, %s211
      %p215 = pneg %p209
      %p216 = scmp.eq.s32.totalorder %s58, 3
      %p217 = por %p215, %p216
      %p218 = scmp.ne.s32.totalorder %s210, %s213
      %p219 = scmp.eq.s32.totalorder %s58, 0
      %p220 = por %p218, %p219
      %p221 = scmp.ne.s32.totalorder %s210, %s213
      %p222 = scmp.eq.s32.totalorder %s63, 3
      %p223 = por %p221, %p222
      %p224 = scmp.ne.s32.totalorder %s213, %s214
      %p225 = scmp.eq.s32.totalorder %s63, 0
      %p226 = por %p224, %p225
      %p227 = scmp.ne.s32.totalorder %s213, %s214
      %p228 = scmp.eq.s32.totalorder %s64, 3
      %p229 = por %p227, %p228
      %p231 = scmp.ne.s32.totalorder %s214, %s230
      %p232 = scmp.eq.s32.totalorder %s64, 0
      %p233 = por %p231, %p232
      %s234 = ssub.s32 %s66, %s73
      %p235 = scmp.eq.s32.totalorder %s234, 0
      %s237 = sadd.s32 %s236, 1
      %s238 = scalar_select %p235, %s236, %s237
      %p241 = pneg %p235
      %p242 = scmp.eq.s32.totalorder %s58, 3
      %p243 = por %p241, %p242
      %p244 = scmp.ne.s32.totalorder %s236, %s239
      %p245 = scmp.eq.s32.totalorder %s58, 0
      %p246 = por %p244, %p245
      %p247 = scmp.ne.s32.totalorder %s236, %s239
      %p248 = scmp.eq.s32.totalorder %s63, 3
      %p249 = por %p247, %p248
      %p250 = scmp.ne.s32.totalorder %s239, %s240
      %p251 = scmp.eq.s32.totalorder %s63, 0
      %p252 = por %p250, %p251
      %p253 = scmp.ne.s32.totalorder %s239, %s240
      %p254 = scmp.eq.s32.totalorder %s64, 3
      %p255 = por %p253, %p254
      %p257 = scmp.ne.s32.totalorder %s240, %s256
      %p258 = scmp.eq.s32.totalorder %s64, 0
      %p259 = por %p257, %p258
      %s260 = ssub.s32 %s66, %s73
      %p261 = scmp.eq.s32.totalorder %s260, 0
      %s263 = sadd.s32 %s262, 1
      %s264 = scalar_select %p261, %s262, %s263
      %p267 = pneg %p261
      %p268 = scmp.eq.s32.totalorder %s58, 3
      %p269 = por %p267, %p268
      %p270 = scmp.ne.s32.totalorder %s262, %s265
      %p271 = scmp.eq.s32.totalorder %s58, 0
      %p272 = por %p270, %p271
      %p273 = scmp.ne.s32.totalorder %s262, %s265
      %p274 = scmp.eq.s32.totalorder %s63, 3
      %p275 = por %p273, %p274
      %p276 = scmp.ne.s32.totalorder %s265, %s266
      %p277 = scmp.eq.s32.totalorder %s63, 0
      %p278 = por %p276, %p277
      %p279 = scmp.ne.s32.totalorder %s265, %s266
      %p280 = scmp.eq.s32.totalorder %s64, 3
      %p281 = por %p279, %p280
      %p283 = scmp.ne.s32.totalorder %s266, %s282
      %p284 = scmp.eq.s32.totalorder %s64, 0
      %p285 = por %p283, %p284
      %s286 = ssub.s32 %s66, %s73
      %p287 = scmp.eq.s32.totalorder %s286, 0
      %s289 = sadd.s32 %s288, 1
      %s290 = scalar_select %p287, %s288, %s289
      %p293 = pneg %p287
      %p294 = scmp.eq.s32.totalorder %s58, 3
      %p295 = por %p293, %p294
      %p296 = scmp.ne.s32.totalorder %s288, %s291
      %p297 = scmp.eq.s32.totalorder %s58, 0
      %p298 = por %p296, %p297
      %p299 = scmp.ne.s32.totalorder %s288, %s291
      %p300 = scmp.eq.s32.totalorder %s63, 3
      %p301 = por %p299, %p300
      %p302 = scmp.ne.s32.totalorder %s291, %s292
      %p303 = scmp.eq.s32.totalorder %s63, 0
      %p304 = por %p302, %p303
      %p305 = scmp.ne.s32.totalorder %s291, %s292
      %p306 = scmp.eq.s32.totalorder %s64, 3
      %p307 = por %p305, %p306
      %p309 = scmp.ne.s32.totalorder %s292, %s308
      %p310 = scmp.eq.s32.totalorder %s64, 0
      %p311 = por %p309, %p310
      %s312 = ssub.s32 %s66, %s73
      %p313 = scmp.eq.s32.totalorder %s312, 0
      %s315 = sadd.s32 %s314, 1
      %s316 = scalar_select %p313, %s314, %s315
      %p319 = pneg %p313
      %p320 = scmp.eq.s32.totalorder %s58, 3
      %p321 = por %p319, %p320
      %p322 = scmp.ne.s32.totalorder %s314, %s317
      %p323 = scmp.eq.s32.totalorder %s58, 0
      %p324 = por %p322, %p323
      %p325 = scmp.ne.s32.totalorder %s314, %s317
      %p326 = scmp.eq.s32.totalorder %s63, 3
      %p327 = por %p325, %p326
      %p328 = scmp.ne.s32.totalorder %s317, %s318
      %p329 = scmp.eq.s32.totalorder %s63, 0
      %p330 = por %p328, %p329
      %p331 = scmp.ne.s32.totalorder %s317, %s318
      %p332 = scmp.eq.s32.totalorder %s64, 3
      %p333 = por %p331, %p332
      %p335 = scmp.ne.s32.totalorder %s318, %s334
      %p336 = scmp.eq.s32.totalorder %s64, 0
      %p337 = por %p335, %p336
      %s338 = ssub.s32 %s66, %s73
      %p339 = scmp.eq.s32.totalorder %s338, 0
      %s341 = sadd.s32 %s340, 1
      %s342 = scalar_select %p339, %s340, %s341
      %p345 = pneg %p339
      %p346 = scmp.eq.s32.totalorder %s58, 3
      %p347 = por %p345, %p346
      %p348 = scmp.ne.s32.totalorder %s340, %s343
      %p349 = scmp.eq.s32.totalorder %s58, 0
      %p350 = por %p348, %p349
      %p351 = scmp.ne.s32.totalorder %s340, %s343
      %p352 = scmp.eq.s32.totalorder %s63, 3
      %p353 = por %p351, %p352
      %p354 = scmp.ne.s32.totalorder %s343, %s344
      %p355 = scmp.eq.s32.totalorder %s63, 0
      %p356 = por %p354, %p355
      %p357 = scmp.ne.s32.totalorder %s343, %s344
      %p358 = scmp.eq.s32.totalorder %s64, 3
      %p359 = por %p357, %p358
      %p361 = scmp.ne.s32.totalorder %s344, %s360
      %p362 = scmp.eq.s32.totalorder %s64, 0
      %p363 = por %p361, %p362
      %s364 = ssub.s32 %s66, %s73
      %p365 = scmp.eq.s32.totalorder %s364, 0
      %s367 = sadd.s32 %s366, 1
      %s368 = scalar_select %p365, %s366, %s367
      %p371 = pneg %p365
      %p372 = scmp.eq.s32.totalorder %s58, 3
      %p373 = por %p371, %p372
      %p374 = scmp.ne.s32.totalorder %s366, %s369
      %p375 = scmp.eq.s32.totalorder %s58, 0
      %p376 = por %p374, %p375
      %p377 = scmp.ne.s32.totalorder %s366, %s369
      %p378 = scmp.eq.s32.totalorder %s63, 3
      %p379 = por %p377, %p378
      %p380 = scmp.ne.s32.totalorder %s369, %s370
      %p381 = scmp.eq.s32.totalorder %s63, 0
      %p382 = por %p380, %p381
      %p383 = scmp.ne.s32.totalorder %s369, %s370
      %p384 = scmp.eq.s32.totalorder %s64, 3
      %p385 = por %p383, %p384
      %p387 = scmp.ne.s32.totalorder %s370, %s386
      %p388 = scmp.eq.s32.totalorder %s64, 0
      %p389 = por %p387, %p388
      %s390 = ssub.s32 %s66, %s73
      %p391 = scmp.eq.s32.totalorder %s390, 0
      %s393 = sadd.s32 %s392, 1
      %s394 = scalar_select %p391, %s392, %s393
      %p397 = pneg %p391
      %p398 = scmp.eq.s32.totalorder %s58, 3
      %p399 = por %p397, %p398
      %p400 = scmp.ne.s32.totalorder %s392, %s395
      %p401 = scmp.eq.s32.totalorder %s58, 0
      %p402 = por %p400, %p401
      %p403 = scmp.ne.s32.totalorder %s392, %s395
      %p404 = scmp.eq.s32.totalorder %s63, 3
      %p405 = por %p403, %p404
      %p406 = scmp.ne.s32.totalorder %s395, %s396
      %p407 = scmp.eq.s32.totalorder %s63, 0
      %p408 = por %p406, %p407
      %p409 = scmp.ne.s32.totalorder %s395, %s396
      %p410 = scmp.eq.s32.totalorder %s64, 3
      %p411 = por %p409, %p410
      %p413 = scmp.ne.s32.totalorder %s396, %s412
      %p414 = scmp.eq.s32.totalorder %s64, 0
      %p415 = por %p413, %p414
      %s416 = ssub.s32 %s66, %s73
      %p417 = scmp.eq.s32.totalorder %s416, 0
      %s419 = sadd.s32 %s418, 1
      %s420 = scalar_select %p417, %s418, %s419
      %p423 = pneg %p417
      %p424 = scmp.eq.s32.totalorder %s58, 3
      %p425 = por %p423, %p424
      %p426 = scmp.ne.s32.totalorder %s418, %s421
      %p427 = scmp.eq.s32.totalorder %s58, 0
      %p428 = por %p426, %p427
      %p429 = scmp.ne.s32.totalorder %s418, %s421
      %p430 = scmp.eq.s32.totalorder %s63, 3
      %p431 = por %p429, %p430
      %p432 = scmp.ne.s32.totalorder %s421, %s422
      %p433 = scmp.eq.s32.totalorder %s63, 0
      %p434 = por %p432, %p433
      %p435 = scmp.ne.s32.totalorder %s421, %s422
      %p436 = scmp.eq.s32.totalorder %s64, 3
      %p437 = por %p435, %p436
      %p439 = scmp.ne.s32.totalorder %s422, %s438
      %p440 = scmp.eq.s32.totalorder %s64, 0
      %p441 = por %p439, %p440
      %s442 = ssub.s32 %s66, %s73
      %p443 = scmp.eq.s32.totalorder %s442, 0
      %s445 = sadd.s32 %s444, 1
      %s446 = scalar_select %p443, %s444, %s445
      %p449 = pneg %p443
      %p450 = scmp.eq.s32.totalorder %s58, 3
      %p451 = por %p449, %p450
      %p452 = scmp.ne.s32.totalorder %s444, %s447
      %p453 = scmp.eq.s32.totalorder %s58, 0
      %p454 = por %p452, %p453
      %p455 = scmp.ne.s32.totalorder %s444, %s447
      %p456 = scmp.eq.s32.totalorder %s63, 3
      %p457 = por %p455, %p456
      %p458 = scmp.ne.s32.totalorder %s447, %s448
      %p459 = scmp.eq.s32.totalorder %s63, 0
      %p460 = por %p458, %p459
      %p461 = scmp.ne.s32.totalorder %s447, %s448
      %p462 = scmp.eq.s32.totalorder %s64, 3
      %p463 = por %p461, %p462
      %p465 = scmp.ne.s32.totalorder %s448, %s464
      %p466 = scmp.eq.s32.totalorder %s64, 0
      %p467 = por %p465, %p466
      %s468 = ssub.s32 %s66, %s73
      %p469 = scmp.eq.s32.totalorder %s468, 0
      %s471 = sadd.s32 %s470, 1
      %s472 = scalar_select %p469, %s470, %s471
      %p475 = pneg %p469
      %p476 = scmp.eq.s32.totalorder %s58, 3
      %p477 = por %p475, %p476
      %p478 = scmp.ne.s32.totalorder %s470, %s473
      %p479 = scmp.eq.s32.totalorder %s58, 0
      %p480 = por %p478, %p479
      %p481 = scmp.ne.s32.totalorder %s470, %s473
      %p482 = scmp.eq.s32.totalorder %s63, 3
      %p483 = por %p481, %p482
      %p484 = scmp.ne.s32.totalorder %s473, %s474
      %p485 = scmp.eq.s32.totalorder %s63, 0
      %p486 = por %p484, %p485
      %p487 = scmp.ne.s32.totalorder %s473, %s474
      %p488 = scmp.eq.s32.totalorder %s64, 3
      %p489 = por %p487, %p488
      %p491 = scmp.ne.s32.totalorder %s474, %s490
      %p492 = scmp.eq.s32.totalorder %s64, 0
      %p493 = por %p491, %p492
      %s494 = ssub.s32 %s66, %s73
      %p495 = scmp.eq.s32.totalorder %s494, 0
      %s497 = sadd.s32 %s496, 1
      %s498 = scalar_select %p495, %s496, %s497
      %p501 = pneg %p495
      %p502 = scmp.eq.s32.totalorder %s58, 3
      %p503 = por %p501, %p502
      %p504 = scmp.ne.s32.totalorder %s496, %s499
      %p505 = scmp.eq.s32.totalorder %s58, 0
      %p506 = por %p504, %p505
      %p507 = scmp.ne.s32.totalorder %s496, %s499
      %p508 = scmp.eq.s32.totalorder %s63, 3
      %p509 = por %p507, %p508
      %p510 = scmp.ne.s32.totalorder %s499, %s500
      %p511 = scmp.eq.s32.totalorder %s63, 0
      %p512 = por %p510, %p511
      %p513 = scmp.ne.s32.totalorder %s499, %s500
      %p514 = scmp.eq.s32.totalorder %s64, 3
      %p515 = por %p513, %p514
      %p517 = scmp.ne.s32.totalorder %s500, %s516
      %p518 = scmp.eq.s32.totalorder %s64, 0
      %p519 = por %p517, %p518
      %s520 = ssub.s32 %s66, %s73
      %p521 = scmp.eq.s32.totalorder %s520, 0
      %s523 = sadd.s32 %s522, 1
      %s524 = scalar_select %p521, %s522, %s523
      %p527 = pneg %p521
      %p528 = scmp.eq.s32.totalorder %s58, 3
      %p529 = por %p527, %p528
      %p530 = scmp.ne.s32.totalorder %s522, %s525
      %p531 = scmp.eq.s32.totalorder %s58, 0
      %p532 = por %p530, %p531
      %p533 = scmp.ne.s32.totalorder %s522, %s525
      %p534 = scmp.eq.s32.totalorder %s63, 3
      %p535 = por %p533, %p534
      %p536 = scmp.ne.s32.totalorder %s525, %s526
      %p537 = scmp.eq.s32.totalorder %s63, 0
      %p538 = por %p536, %p537
      %p539 = scmp.ne.s32.totalorder %s525, %s526
      %p540 = scmp.eq.s32.totalorder %s64, 3
      %p541 = por %p539, %p540
      %p543 = scmp.ne.s32.totalorder %s526, %s542
      %p544 = scmp.eq.s32.totalorder %s64, 0
      %p545 = por %p543, %p544
      %s546 = ssub.s32 %s66, %s73
      %p547 = scmp.eq.s32.totalorder %s546, 0
      %s549 = sadd.s32 %s548, 1
      %s550 = scalar_select %p547, %s548, %s549
      %p553 = pneg %p547
      %p554 = scmp.eq.s32.totalorder %s58, 3
      %p555 = por %p553, %p554
      %p556 = scmp.ne.s32.totalorder %s548, %s551
      %p557 = scmp.eq.s32.totalorder %s58, 0
      %p558 = por %p556, %p557
      %p559 = scmp.ne.s32.totalorder %s548, %s551
      %p560 = scmp.eq.s32.totalorder %s63, 3
      %p561 = por %p559, %p560
      %p562 = scmp.ne.s32.totalorder %s551, %s552
      %p563 = scmp.eq.s32.totalorder %s63, 0
      %p564 = por %p562, %p563
      %p565 = scmp.ne.s32.totalorder %s551, %s552
      %p566 = scmp.eq.s32.totalorder %s64, 3
      %p567 = por %p565, %p566
      %p569 = scmp.ne.s32.totalorder %s552, %s568
      %p570 = scmp.eq.s32.totalorder %s64, 0
      %p571 = por %p569, %p570
      %s572 = ssub.s32 %s66, %s73
      %p573 = scmp.eq.s32.totalorder %s572, 0
      %s575 = sadd.s32 %s574, 1
      %s576 = scalar_select %p573, %s574, %s575
      %p579 = pneg %p573
      %p580 = scmp.eq.s32.totalorder %s58, 3
      %p581 = por %p579, %p580
      %p582 = scmp.ne.s32.totalorder %s574, %s577
      %p583 = scmp.eq.s32.totalorder %s58, 0
      %p584 = por %p582, %p583
      %p585 = scmp.ne.s32.totalorder %s574, %s577
      %p586 = scmp.eq.s32.totalorder %s63, 3
      %p587 = por %p585, %p586
      %p588 = scmp.ne.s32.totalorder %s577, %s578
      %p589 = scmp.eq.s32.totalorder %s63, 0
      %p590 = por %p588, %p589
      %p591 = scmp.ne.s32.totalorder %s577, %s578
      %p592 = scmp.eq.s32.totalorder %s64, 3
      %p593 = por %p591, %p592
      %p595 = scmp.ne.s32.totalorder %s578, %s594
      %p596 = scmp.eq.s32.totalorder %s64, 0
      %p597 = por %p595, %p596
      %s598 = ssub.s32 %s66, %s73
      %p599 = scmp.eq.s32.totalorder %s598, 0
      %s601 = sadd.s32 %s600, 1
      %s602 = scalar_select %p599, %s600, %s601
      %p605 = pneg %p599
      %p606 = scmp.eq.s32.totalorder %s58, 3
      %p607 = por %p605, %p606
      %p608 = scmp.ne.s32.totalorder %s600, %s603
      %p609 = scmp.eq.s32.totalorder %s58, 0
      %p610 = por %p608, %p609
      %p611 = scmp.ne.s32.totalorder %s600, %s603
      %p612 = scmp.eq.s32.totalorder %s63, 3
      %p613 = por %p611, %p612
      %p614 = scmp.ne.s32.totalorder %s603, %s604
      %p615 = scmp.eq.s32.totalorder %s63, 0
      %p616 = por %p614, %p615
      %p617 = scmp.ne.s32.totalorder %s603, %s604
      %p618 = scmp.eq.s32.totalorder %s64, 3
      %p619 = por %p617, %p618
      %p621 = scmp.ne.s32.totalorder %s604, %s620
      %p622 = scmp.eq.s32.totalorder %s64, 0
      %p623 = por %p621, %p622
      %s624 = ssub.s32 %s66, %s73
      %p625 = scmp.eq.s32.totalorder %s624, 0
      %s627 = sadd.s32 %s626, 1
      %s628 = scalar_select %p625, %s626, %s627
      %p631 = pneg %p625
      %p632 = scmp.eq.s32.totalorder %s58, 3
      %p633 = por %p631, %p632
      %p634 = scmp.ne.s32.totalorder %s626, %s629
      %p635 = scmp.eq.s32.totalorder %s58, 0
      %p636 = por %p634, %p635
      %p637 = scmp.ne.s32.totalorder %s626, %s629
      %p638 = scmp.eq.s32.totalorder %s63, 3
      %p639 = por %p637, %p638
      %p640 = scmp.ne.s32.totalorder %s629, %s630
      %p641 = scmp.eq.s32.totalorder %s63, 0
      %p642 = por %p640, %p641
      %p643 = scmp.ne.s32.totalorder %s629, %s630
      %p644 = scmp.eq.s32.totalorder %s64, 3
      %p645 = por %p643, %p644
      %p647 = scmp.ne.s32.totalorder %s630, %s646
      %p648 = scmp.eq.s32.totalorder %s64, 0
      %p649 = por %p647, %p648
      %s650 = ssub.s32 %s66, %s73
      %p651 = scmp.eq.s32.totalorder %s650, 0
      %s653 = sadd.s32 %s652, 1
      %s654 = scalar_select %p651, %s652, %s653
      %p657 = pneg %p651
      %p658 = scmp.eq.s32.totalorder %s58, 3
      %p659 = por %p657, %p658
      %p660 = scmp.ne.s32.totalorder %s652, %s655
      %p661 = scmp.eq.s32.totalorder %s58, 0
      %p662 = por %p660, %p661
      %p663 = scmp.ne.s32.totalorder %s652, %s655
      %p664 = scmp.eq.s32.totalorder %s63, 3
      %p665 = por %p663, %p664
      %p666 = scmp.ne.s32.totalorder %s655, %s656
      %p667 = scmp.eq.s32.totalorder %s63, 0
      %p668 = por %p666, %p667
      %p669 = scmp.ne.s32.totalorder %s655, %s656
      %p670 = scmp.eq.s32.totalorder %s64, 3
      %p671 = por %p669, %p670
      %p673 = scmp.ne.s32.totalorder %s656, %s672
      %p674 = scmp.eq.s32.totalorder %s64, 0
      %p675 = por %p673, %p674
      %s676 = ssub.s32 %s66, %s73
      %p677 = scmp.eq.s32.totalorder %s676, 0
      %s679 = sadd.s32 %s678, 1
      %s680 = scalar_select %p677, %s678, %s679
      %p683 = pneg %p677
      %p684 = scmp.eq.s32.totalorder %s58, 3
      %p685 = por %p683, %p684
      %p686 = scmp.ne.s32.totalorder %s678, %s681
      %p687 = scmp.eq.s32.totalorder %s58, 0
      %p688 = por %p686, %p687
      %p689 = scmp.ne.s32.totalorder %s678, %s681
      %p690 = scmp.eq.s32.totalorder %s63, 3
      %p691 = por %p689, %p690
      %p692 = scmp.ne.s32.totalorder %s681, %s682
      %p693 = scmp.eq.s32.totalorder %s63, 0
      %p694 = por %p692, %p693
      %p695 = scmp.ne.s32.totalorder %s681, %s682
      %p696 = scmp.eq.s32.totalorder %s64, 3
      %p697 = por %p695, %p696
      %p699 = scmp.ne.s32.totalorder %s682, %s698
      %p700 = scmp.eq.s32.totalorder %s64, 0
      %p701 = por %p699, %p700
      %s702 = ssub.s32 %s66, %s73
      %p703 = scmp.eq.s32.totalorder %s702, 0
      %s705 = sadd.s32 %s704, 1
      %s706 = scalar_select %p703, %s704, %s705
      %p709 = pneg %p703
      %p710 = scmp.eq.s32.totalorder %s58, 3
      %p711 = por %p709, %p710
      %p712 = scmp.ne.s32.totalorder %s704, %s707
      %p713 = scmp.eq.s32.totalorder %s58, 0
      %p714 = por %p712, %p713
      %p715 = scmp.ne.s32.totalorder %s704, %s707
      %p716 = scmp.eq.s32.totalorder %s63, 3
      %p717 = por %p715, %p716
      %p718 = scmp.ne.s32.totalorder %s707, %s708
      %p719 = scmp.eq.s32.totalorder %s63, 0
      %p720 = por %p718, %p719
      %p721 = scmp.ne.s32.totalorder %s707, %s708
      %p722 = scmp.eq.s32.totalorder %s64, 3
      %p723 = por %p721, %p722
      %p725 = scmp.ne.s32.totalorder %s708, %s724
      %p726 = scmp.eq.s32.totalorder %s64, 0
      %p727 = por %p725, %p726
      %s728 = ssub.s32 %s66, %s73
      %p729 = scmp.eq.s32.totalorder %s728, 0
      %s731 = sadd.s32 %s730, 1
      %s732 = scalar_select %p729, %s730, %s731
      %p735 = pneg %p729
      %p736 = scmp.eq.s32.totalorder %s58, 3
      %p737 = por %p735, %p736
      %p738 = scmp.ne.s32.totalorder %s730, %s733
      %p739 = scmp.eq.s32.totalorder %s58, 0
      %p740 = por %p738, %p739
      %p741 = scmp.ne.s32.totalorder %s730, %s733
      %p742 = scmp.eq.s32.totalorder %s63, 3
      %p743 = por %p741, %p742
      %p744 = scmp.ne.s32.totalorder %s733, %s734
      %p745 = scmp.eq.s32.totalorder %s63, 0
      %p746 = por %p744, %p745
      %p747 = scmp.ne.s32.totalorder %s733, %s734
      %p748 = scmp.eq.s32.totalorder %s64, 3
      %p749 = por %p747, %p748
      %p751 = scmp.ne.s32.totalorder %s734, %s750
      %p752 = scmp.eq.s32.totalorder %s64, 0
      %p753 = por %p751, %p752
      %s754 = ssub.s32 %s66, %s73
      %p755 = scmp.eq.s32.totalorder %s754, 0
      %s757 = sadd.s32 %s756, 1
      %s758 = scalar_select %p755, %s756, %s757
      %p761 = pneg %p755
      %p762 = scmp.eq.s32.totalorder %s58, 3
      %p763 = por %p761, %p762
      %p764 = scmp.ne.s32.totalorder %s756, %s759
      %p765 = scmp.eq.s32.totalorder %s58, 0
      %p766 = por %p764, %p765
      %p767 = scmp.ne.s32.totalorder %s756, %s759
      %p768 = scmp.eq.s32.totalorder %s63, 3
      %p769 = por %p767, %p768
      %p770 = scmp.ne.s32.totalorder %s759, %s760
      %p771 = scmp.eq.s32.totalorder %s63, 0
      %p772 = por %p770, %p771
      %p773 = scmp.ne.s32.totalorder %s759, %s760
      %p774 = scmp.eq.s32.totalorder %s64, 3
      %p775 = por %p773, %p774
      %p777 = scmp.ne.s32.totalorder %s760, %s776
      %p778 = scmp.eq.s32.totalorder %s64, 0
      %p779 = por %p777, %p778
      %s780 = ssub.s32 %s66, %s73
      %p781 = scmp.eq.s32.totalorder %s780, 0
      %s783 = sadd.s32 %s782, 1
      %s784 = scalar_select %p781, %s782, %s783
      %p787 = pneg %p781
      %p788 = scmp.eq.s32.totalorder %s58, 3
      %p789 = por %p787, %p788
      %p790 = scmp.ne.s32.totalorder %s782, %s785
      %p791 = scmp.eq.s32.totalorder %s58, 0
      %p792 = por %p790, %p791
      %p793 = scmp.ne.s32.totalorder %s782, %s785
      %p794 = scmp.eq.s32.totalorder %s63, 3
      %p795 = por %p793, %p794
      %p796 = scmp.ne.s32.totalorder %s785, %s786
      %p797 = scmp.eq.s32.totalorder %s63, 0
      %p798 = por %p796, %p797
      %p799 = scmp.ne.s32.totalorder %s785, %s786
      %p800 = scmp.eq.s32.totalorder %s64, 3
      %p801 = por %p799, %p800
      %p803 = scmp.ne.s32.totalorder %s786, %s802
      %p804 = scmp.eq.s32.totalorder %s64, 0
      %p805 = por %p803, %p804
      %s806 = ssub.s32 %s65, %s77
      %p807 = scmp.eq.s32.totalorder %s806, 0
      %s809 = sadd.s32 %s808, 1
      %s810 = scalar_select %p807, %s808, %s809
      %p813 = pneg %p807
      %p814 = scmp.eq.s32.totalorder %s58, 3
      %p815 = por %p813, %p814
      %p816 = scmp.ne.s32.totalorder %s808, %s811
      %p817 = scmp.eq.s32.totalorder %s58, 0
      %p818 = por %p816, %p817
      %p819 = scmp.ne.s32.totalorder %s808, %s811
      %p820 = scmp.eq.s32.totalorder %s63, 3
      %p821 = por %p819, %p820
      %p822 = scmp.ne.s32.totalorder %s811, %s812
      %p823 = scmp.eq.s32.totalorder %s63, 0
      %p824 = por %p822, %p823
      %p825 = scmp.ne.s32.totalorder %s811, %s812
      %p826 = scmp.eq.s32.totalorder %s64, 3
      %p827 = por %p825, %p826
      %p829 = scmp.ne.s32.totalorder %s812, %s828
      %p830 = scmp.eq.s32.totalorder %s64, 0
      %p831 = por %p829, %p830
      %p832 = scmp.le.s32.totalorder 1, %s58
      %p833 = scmp.lt.s32.totalorder %s58, 5
      %p834 = pnand %p832, %p833
      %p835 = pneg %p834
      // Predicated region
      $region9: #{tpu_custom_call.1} parent=5 // pred_check
        _
      $region10: #{tpu_custom_call.1} parent=5 // pred_check_branch
        %837 = sbr.rel (%p834) target = $region12
      $region11: #{tpu_custom_call.1} parent=5 // pred_region
        %s838 = ssub.s32 %s58, 1
      $region12: #{tpu_custom_call.1} parent=5 // pred_fallthru
        _
      %p839 = scmp.lt.s32.totalorder %s58, 4
      // Predicated region
      $region13: #{tpu_custom_call.1} parent=5 // pred_check
        %p840 = pneg %p839
      $region14: #{tpu_custom_call.1} parent=5 // pred_check_branch
        %842 = sbr.rel (%p840) target = $region16
      $region15: #{tpu_custom_call.1} parent=5 // pred_region
        // Predicated region
        $region17: #{tpu_custom_call.1} parent=15 // pred_check
          %p843 = pneg %p90
        $region18: #{tpu_custom_call.1} parent=15 // pred_check_branch
          %845 = sbr.rel (%p843) target = $region20
        $region19: #{tpu_custom_call.1} parent=15 // pred_region
          %s846 = sand.u32 %s80, 1
          %s847 = scalar_lea.sflag [#allocation3], %s846
          %s848 = sand.u32 %s80, 1
          %s849 = smul.addr %s848, 8
          %s850 = scalar_lea.vmem [#allocation2], %s849
          %s852 = ssub.s32 128, 128
          %853 = vsyncadd %s847, %s852
          %s854 = smul.addr %s65, 128
          %s855 = scalar_lea.hbm %s0, %s854
          %s857 = sshll.u32 %s850, 4
          %s858 = int_to_ptr.vmem [resolvable:$true] %s857
          %860 = dma.hbm_to_vmem [thread:$0]  %s855, 128, %s858, %s847
        $region20: #{tpu_custom_call.1} parent=15 // pred_fallthru
          _
        // Predicated region
        $region21: #{tpu_custom_call.1} parent=15 // pred_check
          %p861 = pneg %p116
        $region22: #{tpu_custom_call.1} parent=15 // pred_check_branch
          %863 = sbr.rel (%p861) target = $region24
        $region23: #{tpu_custom_call.1} parent=15 // pred_region
          %s864 = sand.u32 %s58, 1
          %s865 = scalar_lea.sflag [#allocation6], %s864
          %s866 = sand.u32 %s106, 1
          %s867 = smul.addr %s866, 8
          %s868 = scalar_lea.vmem [#allocation5], %s867
          %s870 = ssub.s32 128, 128
          %871 = vsyncadd %s865, %s870
          %s872 = smul.addr %s65, 128
          %s873 = scalar_lea.hbm %s1, %s872
          %s875 = sshll.u32 %s868, 4
          %s876 = int_to_ptr.vmem [resolvable:$true] %s875
          %878 = dma.hbm_to_vmem [thread:$0]  %s873, 128, %s876, %s865
        $region24: #{tpu_custom_call.1} parent=15 // pred_fallthru
          _
        // Predicated region
        $region25: #{tpu_custom_call.1} parent=15 // pred_check
          %p879 = pneg %p142
        $region26: #{tpu_custom_call.1} parent=15 // pred_check_branch
          %881 = sbr.rel (%p879) target = $region28
        $region27: #{tpu_custom_call.1} parent=15 // pred_region
          %s882 = sand.u32 %s58, 1
          %s883 = scalar_lea.sflag [#allocation6], %s882
          %s884 = sand.u32 %s132, 1
          %s885 = smul.addr %s884, 64
          %s886 = scalar_lea.vmem [#allocation7], %s885
          %s888 = ssub.s32 1024, 1024
          %889 = vsyncadd %s883, %s888
          %s890 = smul.addr %s66, 16
          %s891 = smul.addr %s890, 64
          %s892 = scalar_lea.hbm %s2, %s891
          %s893 = sshll.u32 %s886, 4
          %s894 = int_to_ptr.vmem [resolvable:$true] %s893
          %899 = dma.hbm_to_vmem [thread:$0]  %s892, 1024, %s894, %s883, 64, 64, 4
        $region28: #{tpu_custom_call.1} parent=15 // pred_fallthru
          _
        // Predicated region
        $region29: #{tpu_custom_call.1} parent=15 // pred_check
          %p900 = pneg %p168
        $region30: #{tpu_custom_call.1} parent=15 // pred_check_branch
          %902 = sbr.rel (%p900) target = $region32
        $region31: #{tpu_custom_call.1} parent=15 // pred_region
          %p903 = scmp.lt.s32.totalorder %s66, 1
          %s904 = scalar_select %p903, %s66, 1
          %s905 = scalar_lea.vmem %s3, %s904
        $region32: #{tpu_custom_call.1} parent=15 // pred_fallthru
          _
        // Predicated region
        $region33: #{tpu_custom_call.1} parent=15 // pred_check
          %p906 = pneg %p194
        $region34: #{tpu_custom_call.1} parent=15 // pred_check_branch
          %908 = sbr.rel (%p906) target = $region36
        $region35: #{tpu_custom_call.1} parent=15 // pred_region
          %s909 = sand.u32 %s58, 1
          %s910 = scalar_lea.sflag [#allocation9], %s909
          %s911 = sand.u32 %s184, 1
          %s912 = smul.addr %s911, 64
          %s913 = scalar_lea.vmem [#allocation8], %s912
          %s915 = ssub.s32 1024, 1024
          %916 = vsyncadd %s910, %s915
          %s917 = smul.addr %s66, 16
          %s918 = smul.addr %s917, 64
          %s919 = scalar_lea.hbm %s4, %s918
          %s920 = sshll.u32 %s913, 4
          %s921 = int_to_ptr.vmem [resolvable:$true] %s920
          %926 = dma.hbm_to_vmem [thread:$0]  %s919, 1024, %s921, %s910, 64, 64, 4
        $region36: #{tpu_custom_call.1} parent=15 // pred_fallthru
          _
        // Predicated region
        $region37: #{tpu_custom_call.1} parent=15 // pred_check
          %p927 = pneg %p220
        $region38: #{tpu_custom_call.1} parent=15 // pred_check_branch
          %929 = sbr.rel (%p927) target = $region40
        $region39: #{tpu_custom_call.1} parent=15 // pred_region
          %p930 = scmp.lt.s32.totalorder %s66, 1
          %s931 = scalar_select %p930, %s66, 1
          %s932 = scalar_lea.vmem %s5, %s931
        $region40: #{tpu_custom_call.1} parent=15 // pred_fallthru
          _
        // Predicated region
        $region41: #{tpu_custom_call.1} parent=15 // pred_check
          %p933 = pneg %p246
        $region42: #{tpu_custom_call.1} parent=15 // pred_check_branch
          %935 = sbr.rel (%p933) target = $region44
        $region43: #{tpu_custom_call.1} parent=15 // pred_region
          %s936 = sand.u32 %s58, 1
          %s937 = scalar_lea.sflag [#allocation9], %s936
          %s938 = sand.u32 %s236, 1
          %s939 = smul.addr %s938, 64
          %s940 = scalar_lea.vmem [#allocation10], %s939
          %s942 = ssub.s32 1024, 1024
          %943 = vsyncadd %s937, %s942
          %s944 = smul.addr %s66, 16
          %s945 = smul.addr %s944, 64
          %s946 = scalar_lea.hbm %s6, %s945
          %s947 = sshll.u32 %s940, 4
          %s948 = int_to_ptr.vmem [resolvable:$true] %s947
          %953 = dma.hbm_to_vmem [thread:$0]  %s946, 1024, %s948, %s937, 64, 64, 4
        $region44: #{tpu_custom_call.1} parent=15 // pred_fallthru
          _
        // Predicated region
        $region45: #{tpu_custom_call.1} parent=15 // pred_check
          %p954 = pneg %p272
        $region46: #{tpu_custom_call.1} parent=15 // pred_check_branch
          %956 = sbr.rel (%p954) target = $region48
        $region47: #{tpu_custom_call.1} parent=15 // pred_region
          %p957 = scmp.lt.s32.totalorder %s66, 1
          %s958 = scalar_select %p957, %s66, 1
          %s959 = scalar_lea.vmem %s7, %s958
        $region48: #{tpu_custom_call.1} parent=15 // pred_fallthru
          _
        // Predicated region
        $region49: #{tpu_custom_call.1} parent=15 // pred_check
          %p960 = pneg %p298
        $region50: #{tpu_custom_call.1} parent=15 // pred_check_branch
          %962 = sbr.rel (%p960) target = $region52
        $region51: #{tpu_custom_call.1} parent=15 // pred_region
          %s963 = sand.u32 %s58, 1
          %s964 = scalar_lea.sflag [#allocation12], %s963
          %s965 = sand.u32 %s288, 1
          %s966 = smul.addr %s965, 64
          %s967 = scalar_lea.vmem [#allocation11], %s966
          %s969 = ssub.s32 1024, 1024
          %970 = vsyncadd %s964, %s969
          %s971 = smul.addr %s66, 16
          %s972 = smul.addr %s971, 64
          %s973 = scalar_lea.hbm %s8, %s972
          %s974 = sshll.u32 %s967, 4
          %s975 = int_to_ptr.vmem [resolvable:$true] %s974
          %980 = dma.hbm_to_vmem [thread:$0]  %s973, 1024, %s975, %s964, 64, 64, 4
        $region52: #{tpu_custom_call.1} parent=15 // pred_fallthru
          _
        // Predicated region
        $region53: #{tpu_custom_call.1} parent=15 // pred_check
          %p981 = pneg %p324
        $region54: #{tpu_custom_call.1} parent=15 // pred_check_branch
          %983 = sbr.rel (%p981) target = $region56
        $region55: #{tpu_custom_call.1} parent=15 // pred_region
          %p984 = scmp.lt.s32.totalorder %s66, 1
          %s985 = scalar_select %p984, %s66, 1
          %s986 = scalar_lea.vmem %s9, %s985
        $region56: #{tpu_custom_call.1} parent=15 // pred_fallthru
          _
        // Predicated region
        $region57: #{tpu_custom_call.1} parent=15 // pred_check
          %p987 = pneg %p350
        $region58: #{tpu_custom_call.1} parent=15 // pred_check_branch
          %989 = sbr.rel (%p987) target = $region60
        $region59: #{tpu_custom_call.1} parent=15 // pred_region
          %p990 = scmp.lt.s32.totalorder %s66, 1
          %s991 = scalar_select %p990, %s66, 1
          %s992 = scalar_lea.vmem %s10, %s991
        $region60: #{tpu_custom_call.1} parent=15 // pred_fallthru
          _
        // Predicated region
        $region61: #{tpu_custom_call.1} parent=15 // pred_check
          %p993 = pneg %p376
        $region62: #{tpu_custom_call.1} parent=15 // pred_check_branch
          %995 = sbr.rel (%p993) target = $region64
        $region63: #{tpu_custom_call.1} parent=15 // pred_region
          %p996 = scmp.lt.s32.totalorder %s66, 1
          %s997 = scalar_select %p996, %s66, 1
          %s998 = scalar_lea.vmem %s11, %s997
        $region64: #{tpu_custom_call.1} parent=15 // pred_fallthru
          _
        // Predicated region
        $region65: #{tpu_custom_call.1} parent=15 // pred_check
          %p999 = pneg %p402
        $region66: #{tpu_custom_call.1} parent=15 // pred_check_branch
          %1001 = sbr.rel (%p999) target = $region68
        $region67: #{tpu_custom_call.1} parent=15 // pred_region
          %s1002 = sand.u32 %s58, 1
          %s1003 = scalar_lea.sflag [#allocation12], %s1002
          %s1004 = sand.u32 %s392, 1
          %s1005 = smul.addr %s1004, 64
          %s1006 = scalar_lea.vmem [#allocation13], %s1005
          %s1008 = ssub.s32 1024, 1024
          %1009 = vsyncadd %s1003, %s1008
          %s1010 = smul.addr %s66, 16
          %s1011 = smul.addr %s1010, 64
          %s1012 = scalar_lea.hbm %s12, %s1011
          %s1013 = sshll.u32 %s1006, 4
          %s1014 = int_to_ptr.vmem [resolvable:$true] %s1013
          %1019 = dma.hbm_to_vmem [thread:$0]  %s1012, 1024, %s1014, %s1003, 64, 64, 4
        $region68: #{tpu_custom_call.1} parent=15 // pred_fallthru
          _
        // Predicated region
        $region69: #{tpu_custom_call.1} parent=15 // pred_check
          %p1020 = pneg %p428
        $region70: #{tpu_custom_call.1} parent=15 // pred_check_branch
          %1022 = sbr.rel (%p1020) target = $region72
        $region71: #{tpu_custom_call.1} parent=15 // pred_region
          %p1023 = scmp.lt.s32.totalorder %s66, 1
          %s1024 = scalar_select %p1023, %s66, 1
          %s1025 = scalar_lea.vmem %s13, %s1024
        $region72: #{tpu_custom_call.1} parent=15 // pred_fallthru
          _
        // Predicated region
        $region73: #{tpu_custom_call.1} parent=15 // pred_check
          %p1026 = pneg %p454
        $region74: #{tpu_custom_call.1} parent=15 // pred_check_branch
          %1028 = sbr.rel (%p1026) target = $region76
        $region75: #{tpu_custom_call.1} parent=15 // pred_region
          %s1029 = sand.u32 %s58, 1
          %s1030 = scalar_lea.sflag [#allocation15], %s1029
          %s1031 = sand.u32 %s444, 1
          %s1032 = smul.addr %s1031, 64
          %s1033 = scalar_lea.vmem [#allocation14], %s1032
          %s1035 = ssub.s32 1024, 1024
          %1036 = vsyncadd %s1030, %s1035
          %s1037 = smul.addr %s66, 16
          %s1038 = smul.addr %s1037, 64
          %s1039 = scalar_lea.hbm %s14, %s1038
          %s1040 = sshll.u32 %s1033, 4
          %s1041 = int_to_ptr.vmem [resolvable:$true] %s1040
          %1046 = dma.hbm_to_vmem [thread:$0]  %s1039, 1024, %s1041, %s1030, 64, 64, 4
        $region76: #{tpu_custom_call.1} parent=15 // pred_fallthru
          _
        // Predicated region
        $region77: #{tpu_custom_call.1} parent=15 // pred_check
          %p1047 = pneg %p480
        $region78: #{tpu_custom_call.1} parent=15 // pred_check_branch
          %1049 = sbr.rel (%p1047) target = $region80
        $region79: #{tpu_custom_call.1} parent=15 // pred_region
          %p1050 = scmp.lt.s32.totalorder %s66, 1
          %s1051 = scalar_select %p1050, %s66, 1
          %s1052 = scalar_lea.vmem %s15, %s1051
        $region80: #{tpu_custom_call.1} parent=15 // pred_fallthru
          _
        // Predicated region
        $region81: #{tpu_custom_call.1} parent=15 // pred_check
          %p1053 = pneg %p506
        $region82: #{tpu_custom_call.1} parent=15 // pred_check_branch
          %1055 = sbr.rel (%p1053) target = $region84
        $region83: #{tpu_custom_call.1} parent=15 // pred_region
          %s1056 = sand.u32 %s58, 1
          %s1057 = scalar_lea.sflag [#allocation15], %s1056
          %s1058 = sand.u32 %s496, 1
          %s1059 = smul.addr %s1058, 64
          %s1060 = scalar_lea.vmem [#allocation16], %s1059
          %s1062 = ssub.s32 1024, 1024
          %1063 = vsyncadd %s1057, %s1062
          %s1064 = smul.addr %s66, 16
          %s1065 = smul.addr %s1064, 64
          %s1066 = scalar_lea.hbm %s16, %s1065
          %s1067 = sshll.u32 %s1060, 4
          %s1068 = int_to_ptr.vmem [resolvable:$true] %s1067
          %1073 = dma.hbm_to_vmem [thread:$0]  %s1066, 1024, %s1068, %s1057, 64, 64, 4
        $region84: #{tpu_custom_call.1} parent=15 // pred_fallthru
          _
        // Predicated region
        $region85: #{tpu_custom_call.1} parent=15 // pred_check
          %p1074 = pneg %p532
        $region86: #{tpu_custom_call.1} parent=15 // pred_check_branch
          %1076 = sbr.rel (%p1074) target = $region88
        $region87: #{tpu_custom_call.1} parent=15 // pred_region
          %p1077 = scmp.lt.s32.totalorder %s66, 1
          %s1078 = scalar_select %p1077, %s66, 1
          %s1079 = scalar_lea.vmem %s17, %s1078
        $region88: #{tpu_custom_call.1} parent=15 // pred_fallthru
          _
        // Predicated region
        $region89: #{tpu_custom_call.1} parent=15 // pred_check
          %p1080 = pneg %p558
        $region90: #{tpu_custom_call.1} parent=15 // pred_check_branch
          %1082 = sbr.rel (%p1080) target = $region92
        $region91: #{tpu_custom_call.1} parent=15 // pred_region
          %s1083 = sand.u32 %s58, 1
          %s1084 = scalar_lea.sflag [#allocation18], %s1083
          %s1085 = sand.u32 %s548, 1
          %s1086 = smul.addr %s1085, 64
          %s1087 = scalar_lea.vmem [#allocation17], %s1086
          %s1089 = ssub.s32 1024, 1024
          %1090 = vsyncadd %s1084, %s1089
          %s1091 = smul.addr %s66, 16
          %s1092 = smul.addr %s1091, 64
          %s1093 = scalar_lea.hbm %s18, %s1092
          %s1094 = sshll.u32 %s1087, 4
          %s1095 = int_to_ptr.vmem [resolvable:$true] %s1094
          %1100 = dma.hbm_to_vmem [thread:$0]  %s1093, 1024, %s1095, %s1084, 64, 64, 4
        $region92: #{tpu_custom_call.1} parent=15 // pred_fallthru
          _
        // Predicated region
        $region93: #{tpu_custom_call.1} parent=15 // pred_check
          %p1101 = pneg %p584
        $region94: #{tpu_custom_call.1} parent=15 // pred_check_branch
          %1103 = sbr.rel (%p1101) target = $region96
        $region95: #{tpu_custom_call.1} parent=15 // pred_region
          %p1104 = scmp.lt.s32.totalorder %s66, 1
          %s1105 = scalar_select %p1104, %s66, 1
          %s1106 = scalar_lea.vmem %s19, %s1105
        $region96: #{tpu_custom_call.1} parent=15 // pred_fallthru
          _
        // Predicated region
        $region97: #{tpu_custom_call.1} parent=15 // pred_check
          %p1107 = pneg %p610
        $region98: #{tpu_custom_call.1} parent=15 // pred_check_branch
          %1109 = sbr.rel (%p1107) target = $region100
        $region99: #{tpu_custom_call.1} parent=15 // pred_region
          %p1110 = scmp.lt.s32.totalorder %s66, 1
          %s1111 = scalar_select %p1110, %s66, 1
          %s1112 = scalar_lea.vmem %s20, %s1111
        $region100: #{tpu_custom_call.1} parent=15 // pred_fallthru
          _
        // Predicated region
        $region101: #{tpu_custom_call.1} parent=15 // pred_check
          %p1113 = pneg %p636
        $region102: #{tpu_custom_call.1} parent=15 // pred_check_branch
          %1115 = sbr.rel (%p1113) target = $region104
        $region103: #{tpu_custom_call.1} parent=15 // pred_region
          %p1116 = scmp.lt.s32.totalorder %s66, 1
          %s1117 = scalar_select %p1116, %s66, 1
          %s1118 = scalar_lea.vmem %s21, %s1117
        $region104: #{tpu_custom_call.1} parent=15 // pred_fallthru
          _
        // Predicated region
        $region105: #{tpu_custom_call.1} parent=15 // pred_check
          %p1119 = pneg %p662
        $region106: #{tpu_custom_call.1} parent=15 // pred_check_branch
          %1121 = sbr.rel (%p1119) target = $region108
        $region107: #{tpu_custom_call.1} parent=15 // pred_region
          %s1122 = sand.u32 %s58, 1
          %s1123 = scalar_lea.sflag [#allocation18], %s1122
          %s1124 = sand.u32 %s652, 1
          %s1125 = smul.addr %s1124, 64
          %s1126 = scalar_lea.vmem [#allocation19], %s1125
          %s1128 = ssub.s32 1024, 1024
          %1129 = vsyncadd %s1123, %s1128
          %s1130 = smul.addr %s66, 16
          %s1131 = smul.addr %s1130, 64
          %s1132 = scalar_lea.hbm %s22, %s1131
          %s1133 = sshll.u32 %s1126, 4
          %s1134 = int_to_ptr.vmem [resolvable:$true] %s1133
          %1139 = dma.hbm_to_vmem [thread:$0]  %s1132, 1024, %s1134, %s1123, 64, 64, 4
        $region108: #{tpu_custom_call.1} parent=15 // pred_fallthru
          _
        // Predicated region
        $region109: #{tpu_custom_call.1} parent=15 // pred_check
          %p1140 = pneg %p688
        $region110: #{tpu_custom_call.1} parent=15 // pred_check_branch
          %1142 = sbr.rel (%p1140) target = $region112
        $region111: #{tpu_custom_call.1} parent=15 // pred_region
          %p1143 = scmp.lt.s32.totalorder %s66, 1
          %s1144 = scalar_select %p1143, %s66, 1
          %s1145 = scalar_lea.vmem %s23, %s1144
        $region112: #{tpu_custom_call.1} parent=15 // pred_fallthru
          _
        // Predicated region
        $region113: #{tpu_custom_call.1} parent=15 // pred_check
          %p1146 = pneg %p714
        $region114: #{tpu_custom_call.1} parent=15 // pred_check_branch
          %1148 = sbr.rel (%p1146) target = $region116
        $region115: #{tpu_custom_call.1} parent=15 // pred_region
          %s1149 = sand.u32 %s704, 1
          %s1150 = scalar_lea.sflag [#allocation21], %s1149
          %s1151 = sand.u32 %s704, 1
          %s1152 = smul.addr %s1151, 64
          %s1153 = scalar_lea.vmem [#allocation20], %s1152
          %s1155 = ssub.s32 1024, 1024
          %1156 = vsyncadd %s1150, %s1155
          %s1157 = smul.addr %s66, 16
          %s1158 = smul.addr %s1157, 64
          %s1159 = scalar_lea.hbm %s24, %s1158
          %s1160 = sshll.u32 %s1153, 4
          %s1161 = int_to_ptr.vmem [resolvable:$true] %s1160
          %1166 = dma.hbm_to_vmem [thread:$0]  %s1159, 1024, %s1161, %s1150, 64, 64, 4
        $region116: #{tpu_custom_call.1} parent=15 // pred_fallthru
          _
        // Predicated region
        $region117: #{tpu_custom_call.1} parent=15 // pred_check
          %p1167 = pneg %p740
        $region118: #{tpu_custom_call.1} parent=15 // pred_check_branch
          %1169 = sbr.rel (%p1167) target = $region120
        $region119: #{tpu_custom_call.1} parent=15 // pred_region
          %p1170 = scmp.lt.s32.totalorder %s66, 1
          %s1171 = scalar_select %p1170, %s66, 1
          %s1172 = scalar_lea.vmem %s25, %s1171
        $region120: #{tpu_custom_call.1} parent=15 // pred_fallthru
          _
        // Predicated region
        $region121: #{tpu_custom_call.1} parent=15 // pred_check
          %p1173 = pneg %p766
        $region122: #{tpu_custom_call.1} parent=15 // pred_check_branch
          %1175 = sbr.rel (%p1173) target = $region124
        $region123: #{tpu_custom_call.1} parent=15 // pred_region
          %p1176 = scmp.lt.s32.totalorder %s66, 1
          %s1177 = scalar_select %p1176, %s66, 1
          %s1178 = scalar_lea.vmem %s26, %s1177
        $region124: #{tpu_custom_call.1} parent=15 // pred_fallthru
          _
        // Predicated region
        $region125: #{tpu_custom_call.1} parent=15 // pred_check
          %p1179 = pneg %p792
        $region126: #{tpu_custom_call.1} parent=15 // pred_check_branch
          %1181 = sbr.rel (%p1179) target = $region128
        $region127: #{tpu_custom_call.1} parent=15 // pred_region
          %p1182 = scmp.lt.s32.totalorder %s66, 1
          %s1183 = scalar_select %p1182, %s66, 1
          %s1184 = scalar_lea.vmem %s27, %s1183
        $region128: #{tpu_custom_call.1} parent=15 // pred_fallthru
          _
      $region16: #{tpu_custom_call.1} parent=5 // pred_fallthru
        _
      %p1185 = scmp.le.s32.totalorder 1, %s58
      %p1186 = scmp.lt.s32.totalorder %s58, 5
      %p1187 = pnand %p1185, %p1186
      %p1188 = pneg %p1187
      // Predicated region
      $region129: #{tpu_custom_call.1} parent=5 // pred_check
        _
      $region130: #{tpu_custom_call.1} parent=5 // pred_check_branch
        %1190 = sbr.rel (%p1187) target = $region132
      $region131: #{tpu_custom_call.1} parent=5 // pred_region
        %s1191 = ssub.s32 %s58, 1
        %s1192 = sand.u32 %s83, 1
        %s1193 = scalar_lea.sflag [#allocation3], %s1192
        %s1194 = sand.u32 %s83, 1
        %s1195 = smul.addr %s1194, 8
        %s1196 = scalar_lea.vmem [#allocation2], %s1195
        // Predicated region
        $region133: #{tpu_custom_call.1} parent=131 // pred_check
          %p1197 = pneg %p96
        $region134: #{tpu_custom_call.1} parent=131 // pred_check_branch
          %1199 = sbr.rel (%p1197) target = $region136
        $region135: #{tpu_custom_call.1} parent=131 // pred_region
          %1200 = dma.done %s1193, 128
        $region136: #{tpu_custom_call.1} parent=131 // pred_fallthru
          _
        %s1201 = sand.u32 %s63, 1
        %s1202 = scalar_lea.sflag [#allocation6], %s1201
        %s1203 = sand.u32 %s109, 1
        %s1204 = smul.addr %s1203, 8
        %s1205 = scalar_lea.vmem [#allocation5], %s1204
        // Predicated region
        $region137: #{tpu_custom_call.1} parent=131 // pred_check
          %p1206 = pneg %p122
        $region138: #{tpu_custom_call.1} parent=131 // pred_check_branch
          %1208 = sbr.rel (%p1206) target = $region140
        $region139: #{tpu_custom_call.1} parent=131 // pred_region
          %1209 = dma.done %s1202, 128
        $region140: #{tpu_custom_call.1} parent=131 // pred_fallthru
          _
        %s1210 = sand.u32 %s63, 1
        %s1211 = scalar_lea.sflag [#allocation6], %s1210
        %s1212 = sand.u32 %s135, 1
        %s1213 = smul.addr %s1212, 64
        %s1214 = scalar_lea.vmem [#allocation7], %s1213
        // Predicated region
        $region141: #{tpu_custom_call.1} parent=131 // pred_check
          %p1215 = pneg %p148
        $region142: #{tpu_custom_call.1} parent=131 // pred_check_branch
          %1217 = sbr.rel (%p1215) target = $region144
        $region143: #{tpu_custom_call.1} parent=131 // pred_region
          %1218 = dma.done %s1211, 1024
        $region144: #{tpu_custom_call.1} parent=131 // pred_fallthru
          _
        %s1219 = sand.u32 %s63, 1
        %s1220 = scalar_lea.sflag [#allocation9], %s1219
        %s1221 = sand.u32 %s187, 1
        %s1222 = smul.addr %s1221, 64
        %s1223 = scalar_lea.vmem [#allocation8], %s1222
        // Predicated region
        $region145: #{tpu_custom_call.1} parent=131 // pred_check
          %p1224 = pneg %p200
        $region146: #{tpu_custom_call.1} parent=131 // pred_check_branch
          %1226 = sbr.rel (%p1224) target = $region148
        $region147: #{tpu_custom_call.1} parent=131 // pred_region
          %1227 = dma.done %s1220, 1024
        $region148: #{tpu_custom_call.1} parent=131 // pred_fallthru
          _
        %s1228 = sand.u32 %s63, 1
        %s1229 = scalar_lea.sflag [#allocation9], %s1228
        %s1230 = sand.u32 %s239, 1
        %s1231 = smul.addr %s1230, 64
        %s1232 = scalar_lea.vmem [#allocation10], %s1231
        // Predicated region
        $region149: #{tpu_custom_call.1} parent=131 // pred_check
          %p1233 = pneg %p252
        $region150: #{tpu_custom_call.1} parent=131 // pred_check_branch
          %1235 = sbr.rel (%p1233) target = $region152
        $region151: #{tpu_custom_call.1} parent=131 // pred_region
          %1236 = dma.done %s1229, 1024
        $region152: #{tpu_custom_call.1} parent=131 // pred_fallthru
          _
        %s1237 = sand.u32 %s63, 1
        %s1238 = scalar_lea.sflag [#allocation12], %s1237
        %s1239 = sand.u32 %s291, 1
        %s1240 = smul.addr %s1239, 64
        %s1241 = scalar_lea.vmem [#allocation11], %s1240
        // Predicated region
        $region153: #{tpu_custom_call.1} parent=131 // pred_check
          %p1242 = pneg %p304
        $region154: #{tpu_custom_call.1} parent=131 // pred_check_branch
          %1244 = sbr.rel (%p1242) target = $region156
        $region155: #{tpu_custom_call.1} parent=131 // pred_region
          %1245 = dma.done %s1238, 1024
        $region156: #{tpu_custom_call.1} parent=131 // pred_fallthru
          _
        %s1246 = sand.u32 %s63, 1
        %s1247 = scalar_lea.sflag [#allocation12], %s1246
        %s1248 = sand.u32 %s395, 1
        %s1249 = smul.addr %s1248, 64
        %s1250 = scalar_lea.vmem [#allocation13], %s1249
        // Predicated region
        $region157: #{tpu_custom_call.1} parent=131 // pred_check
          %p1251 = pneg %p408
        $region158: #{tpu_custom_call.1} parent=131 // pred_check_branch
          %1253 = sbr.rel (%p1251) target = $region160
        $region159: #{tpu_custom_call.1} parent=131 // pred_region
          %1254 = dma.done %s1247, 1024
        $region160: #{tpu_custom_call.1} parent=131 // pred_fallthru
          _
        %s1255 = sand.u32 %s63, 1
        %s1256 = scalar_lea.sflag [#allocation15], %s1255
        %s1257 = sand.u32 %s447, 1
        %s1258 = smul.addr %s1257, 64
        %s1259 = scalar_lea.vmem [#allocation14], %s1258
        // Predicated region
        $region161: #{tpu_custom_call.1} parent=131 // pred_check
          %p1260 = pneg %p460
        $region162: #{tpu_custom_call.1} parent=131 // pred_check_branch
          %1262 = sbr.rel (%p1260) target = $region164
        $region163: #{tpu_custom_call.1} parent=131 // pred_region
          %1263 = dma.done %s1256, 1024
        $region164: #{tpu_custom_call.1} parent=131 // pred_fallthru
          _
        %s1264 = sand.u32 %s63, 1
        %s1265 = scalar_lea.sflag [#allocation15], %s1264
        %s1266 = sand.u32 %s499, 1
        %s1267 = smul.addr %s1266, 64
        %s1268 = scalar_lea.vmem [#allocation16], %s1267
        // Predicated region
        $region165: #{tpu_custom_call.1} parent=131 // pred_check
          %p1269 = pneg %p512
        $region166: #{tpu_custom_call.1} parent=131 // pred_check_branch
          %1271 = sbr.rel (%p1269) target = $region168
        $region167: #{tpu_custom_call.1} parent=131 // pred_region
          %1272 = dma.done %s1265, 1024
        $region168: #{tpu_custom_call.1} parent=131 // pred_fallthru
          _
        %s1273 = sand.u32 %s63, 1
        %s1274 = scalar_lea.sflag [#allocation18], %s1273
        %s1275 = sand.u32 %s551, 1
        %s1276 = smul.addr %s1275, 64
        %s1277 = scalar_lea.vmem [#allocation17], %s1276
        // Predicated region
        $region169: #{tpu_custom_call.1} parent=131 // pred_check
          %p1278 = pneg %p564
        $region170: #{tpu_custom_call.1} parent=131 // pred_check_branch
          %1280 = sbr.rel (%p1278) target = $region172
        $region171: #{tpu_custom_call.1} parent=131 // pred_region
          %1281 = dma.done %s1274, 1024
        $region172: #{tpu_custom_call.1} parent=131 // pred_fallthru
          _
        %s1282 = sand.u32 %s63, 1
        %s1283 = scalar_lea.sflag [#allocation18], %s1282
        %s1284 = sand.u32 %s655, 1
        %s1285 = smul.addr %s1284, 64
        %s1286 = scalar_lea.vmem [#allocation19], %s1285
        // Predicated region
        $region173: #{tpu_custom_call.1} parent=131 // pred_check
          %p1287 = pneg %p668
        $region174: #{tpu_custom_call.1} parent=131 // pred_check_branch
          %1289 = sbr.rel (%p1287) target = $region176
        $region175: #{tpu_custom_call.1} parent=131 // pred_region
          %1290 = dma.done %s1283, 1024
        $region176: #{tpu_custom_call.1} parent=131 // pred_fallthru
          _
        %s1291 = sand.u32 %s707, 1
        %s1292 = scalar_lea.sflag [#allocation21], %s1291
        %s1293 = sand.u32 %s707, 1
        %s1294 = smul.addr %s1293, 64
        %s1295 = scalar_lea.vmem [#allocation20], %s1294
        // Predicated region
        $region177: #{tpu_custom_call.1} parent=131 // pred_check
          %p1296 = pneg %p720
        $region178: #{tpu_custom_call.1} parent=131 // pred_check_branch
          %1298 = sbr.rel (%p1296) target = $region180
        $region179: #{tpu_custom_call.1} parent=131 // pred_region
          %1299 = dma.done %s1292, 1024
        $region180: #{tpu_custom_call.1} parent=131 // pred_fallthru
          _
        %s1300 = sand.u32 %s83, 1
        %s1301 = scalar_lea.sflag [#allocation3], %s1300
        %s1302 = sand.u32 %s83, 1
        %s1303 = smul.addr %s1302, 8
        %s1304 = scalar_lea.vmem [#allocation2], %s1303
        %p1305 = pneg %p96
        %p1306 = pneg %p93
        %s1307 = sand.u32 %s63, 1
        %s1308 = scalar_lea.sflag [#allocation6], %s1307
        %s1309 = sand.u32 %s109, 1
        %s1310 = smul.addr %s1309, 8
        %s1311 = scalar_lea.vmem [#allocation5], %s1310
        %p1312 = pneg %p122
        %p1313 = pneg %p119
        %s1314 = sand.u32 %s63, 1
        %s1315 = scalar_lea.sflag [#allocation6], %s1314
        %s1316 = sand.u32 %s135, 1
        %s1317 = smul.addr %s1316, 64
        %s1318 = scalar_lea.vmem [#allocation7], %s1317
        %p1319 = pneg %p148
        %p1320 = pneg %p145
        %p1321 = scmp.lt.s32.totalorder %s68, 1
        %s1322 = scalar_select %p1321, %s68, 1
        %s1323 = scalar_lea.vmem %s3, %s1322
        %p1324 = pneg %p174
        %p1325 = pneg %p171
        %s1326 = sand.u32 %s63, 1
        %s1327 = scalar_lea.sflag [#allocation9], %s1326
        %s1328 = sand.u32 %s187, 1
        %s1329 = smul.addr %s1328, 64
        %s1330 = scalar_lea.vmem [#allocation8], %s1329
        %p1331 = pneg %p200
        %p1332 = pneg %p197
        %p1333 = scmp.lt.s32.totalorder %s68, 1
        %s1334 = scalar_select %p1333, %s68, 1
        %s1335 = scalar_lea.vmem %s5, %s1334
        %p1336 = pneg %p226
        %p1337 = pneg %p223
        %s1338 = sand.u32 %s63, 1
        %s1339 = scalar_lea.sflag [#allocation9], %s1338
        %s1340 = sand.u32 %s239, 1
        %s1341 = smul.addr %s1340, 64
        %s1342 = scalar_lea.vmem [#allocation10], %s1341
        %p1343 = pneg %p252
        %p1344 = pneg %p249
        %p1345 = scmp.lt.s32.totalorder %s68, 1
        %s1346 = scalar_select %p1345, %s68, 1
        %s1347 = scalar_lea.vmem %s7, %s1346
        %p1348 = pneg %p278
        %p1349 = pneg %p275
        %s1350 = sand.u32 %s63, 1
        %s1351 = scalar_lea.sflag [#allocation12], %s1350
        %s1352 = sand.u32 %s291, 1
        %s1353 = smul.addr %s1352, 64
        %s1354 = scalar_lea.vmem [#allocation11], %s1353
        %p1355 = pneg %p304
        %p1356 = pneg %p301
        %p1357 = scmp.lt.s32.totalorder %s68, 1
        %s1358 = scalar_select %p1357, %s68, 1
        %s1359 = scalar_lea.vmem %s9, %s1358
        %p1360 = pneg %p330
        %p1361 = pneg %p327
        %p1362 = scmp.lt.s32.totalorder %s68, 1
        %s1363 = scalar_select %p1362, %s68, 1
        %s1364 = scalar_lea.vmem %s10, %s1363
        %p1365 = pneg %p356
        %p1366 = pneg %p353
        %p1367 = scmp.lt.s32.totalorder %s68, 1
        %s1368 = scalar_select %p1367, %s68, 1
        %s1369 = scalar_lea.vmem %s11, %s1368
        %p1370 = pneg %p382
        %p1371 = pneg %p379
        %s1372 = sand.u32 %s63, 1
        %s1373 = scalar_lea.sflag [#allocation12], %s1372
        %s1374 = sand.u32 %s395, 1
        %s1375 = smul.addr %s1374, 64
        %s1376 = scalar_lea.vmem [#allocation13], %s1375
        %p1377 = pneg %p408
        %p1378 = pneg %p405
        %p1379 = scmp.lt.s32.totalorder %s68, 1
        %s1380 = scalar_select %p1379, %s68, 1
        %s1381 = scalar_lea.vmem %s13, %s1380
        %p1382 = pneg %p434
        %p1383 = pneg %p431
        %s1384 = sand.u32 %s63, 1
        %s1385 = scalar_lea.sflag [#allocation15], %s1384
        %s1386 = sand.u32 %s447, 1
        %s1387 = smul.addr %s1386, 64
        %s1388 = scalar_lea.vmem [#allocation14], %s1387
        %p1389 = pneg %p460
        %p1390 = pneg %p457
        %p1391 = scmp.lt.s32.totalorder %s68, 1
        %s1392 = scalar_select %p1391, %s68, 1
        %s1393 = scalar_lea.vmem %s15, %s1392
        %p1394 = pneg %p486
        %p1395 = pneg %p483
        %s1396 = sand.u32 %s63, 1
        %s1397 = scalar_lea.sflag [#allocation15], %s1396
        %s1398 = sand.u32 %s499, 1
        %s1399 = smul.addr %s1398, 64
        %s1400 = scalar_lea.vmem [#allocation16], %s1399
        %p1401 = pneg %p512
        %p1402 = pneg %p509
        %p1403 = scmp.lt.s32.totalorder %s68, 1
        %s1404 = scalar_select %p1403, %s68, 1
        %s1405 = scalar_lea.vmem %s17, %s1404
        %p1406 = pneg %p538
        %p1407 = pneg %p535
        %s1408 = sand.u32 %s63, 1
        %s1409 = scalar_lea.sflag [#allocation18], %s1408
        %s1410 = sand.u32 %s551, 1
        %s1411 = smul.addr %s1410, 64
        %s1412 = scalar_lea.vmem [#allocation17], %s1411
        %p1413 = pneg %p564
        %p1414 = pneg %p561
        %p1415 = scmp.lt.s32.totalorder %s68, 1
        %s1416 = scalar_select %p1415, %s68, 1
        %s1417 = scalar_lea.vmem %s19, %s1416
        %p1418 = pneg %p590
        %p1419 = pneg %p587
        %p1420 = scmp.lt.s32.totalorder %s68, 1
        %s1421 = scalar_select %p1420, %s68, 1
        %s1422 = scalar_lea.vmem %s20, %s1421
        %p1423 = pneg %p616
        %p1424 = pneg %p613
        %p1425 = scmp.lt.s32.totalorder %s68, 1
        %s1426 = scalar_select %p1425, %s68, 1
        %s1427 = scalar_lea.vmem %s21, %s1426
        %p1428 = pneg %p642
        %p1429 = pneg %p639
        %s1430 = sand.u32 %s63, 1
        %s1431 = scalar_lea.sflag [#allocation18], %s1430
        %s1432 = sand.u32 %s655, 1
        %s1433 = smul.addr %s1432, 64
        %s1434 = scalar_lea.vmem [#allocation19], %s1433
        %p1435 = pneg %p668
        %p1436 = pneg %p665
        %p1437 = scmp.lt.s32.totalorder %s68, 1
        %s1438 = scalar_select %p1437, %s68, 1
        %s1439 = scalar_lea.vmem %s23, %s1438
        %p1440 = pneg %p694
        %p1441 = pneg %p691
        %s1442 = sand.u32 %s707, 1
        %s1443 = scalar_lea.sflag [#allocation21], %s1442
        %s1444 = sand.u32 %s707, 1
        %s1445 = smul.addr %s1444, 64
        %s1446 = scalar_lea.vmem [#allocation20], %s1445
        %p1447 = pneg %p720
        %p1448 = pneg %p717
        %p1449 = scmp.lt.s32.totalorder %s68, 1
        %s1450 = scalar_select %p1449, %s68, 1
        %s1451 = scalar_lea.vmem %s25, %s1450
        %p1452 = pneg %p746
        %p1453 = pneg %p743
        %p1454 = scmp.lt.s32.totalorder %s68, 1
        %s1455 = scalar_select %p1454, %s68, 1
        %s1456 = scalar_lea.vmem %s26, %s1455
        %p1457 = pneg %p772
        %p1458 = pneg %p769
        %p1459 = scmp.lt.s32.totalorder %s68, 1
        %s1460 = scalar_select %p1459, %s68, 1
        %s1461 = scalar_lea.vmem %s27, %s1460
        %p1462 = pneg %p798
        %p1463 = pneg %p795
        %p1464 = pneg %p824
        %p1465 = pneg %p821
        %s1466 = sand.u32 %s811, 1
        %s1467 = scalar_lea.sflag [#allocation4], %s1466
        %s1468 = sand.u32 %s811, 1
        %s1469 = smul.addr %s1468, 8
        %s1470 = scalar_lea.vmem [#allocation22], %s1469
        %p1471 = scmp.lt.s32.totalorder %s68, 1
        %s1472 = scalar_select %p1471, %s68, 1
        %s1473 = scalar_lea.vmem %s3, %s1472
        %p1474 = scmp.lt.s32.totalorder %s68, 1
        %s1475 = scalar_select %p1474, %s68, 1
        %s1476 = scalar_lea.vmem %s5, %s1475
        %p1477 = scmp.lt.s32.totalorder %s68, 1
        %s1478 = scalar_select %p1477, %s68, 1
        %s1479 = scalar_lea.vmem %s7, %s1478
        %p1480 = scmp.lt.s32.totalorder %s68, 1
        %s1481 = scalar_select %p1480, %s68, 1
        %s1482 = scalar_lea.vmem %s9, %s1481
        %p1483 = scmp.lt.s32.totalorder %s68, 1
        %s1484 = scalar_select %p1483, %s68, 1
        %s1485 = scalar_lea.vmem %s10, %s1484
        %p1486 = scmp.lt.s32.totalorder %s68, 1
        %s1487 = scalar_select %p1486, %s68, 1
        %s1488 = scalar_lea.vmem %s11, %s1487
        %p1489 = scmp.lt.s32.totalorder %s68, 1
        %s1490 = scalar_select %p1489, %s68, 1
        %s1491 = scalar_lea.vmem %s13, %s1490
        %p1492 = scmp.lt.s32.totalorder %s68, 1
        %s1493 = scalar_select %p1492, %s68, 1
        %s1494 = scalar_lea.vmem %s15, %s1493
        %p1495 = scmp.lt.s32.totalorder %s68, 1
        %s1496 = scalar_select %p1495, %s68, 1
        %s1497 = scalar_lea.vmem %s17, %s1496
        %p1498 = scmp.lt.s32.totalorder %s68, 1
        %s1499 = scalar_select %p1498, %s68, 1
        %s1500 = scalar_lea.vmem %s19, %s1499
        %p1501 = scmp.lt.s32.totalorder %s68, 1
        %s1502 = scalar_select %p1501, %s68, 1
        %s1503 = scalar_lea.vmem %s20, %s1502
        %p1504 = scmp.lt.s32.totalorder %s68, 1
        %s1505 = scalar_select %p1504, %s68, 1
        %s1506 = scalar_lea.vmem %s21, %s1505
        %p1507 = scmp.lt.s32.totalorder %s68, 1
        %s1508 = scalar_select %p1507, %s68, 1
        %s1509 = scalar_lea.vmem %s23, %s1508
        %p1510 = scmp.lt.s32.totalorder %s68, 1
        %s1511 = scalar_select %p1510, %s68, 1
        %s1512 = scalar_lea.vmem %s25, %s1511
        %p1513 = scmp.lt.s32.totalorder %s68, 1
        %s1514 = scalar_select %p1513, %s68, 1
        %s1515 = scalar_lea.vmem %s26, %s1514
        %p1516 = scmp.lt.s32.totalorder %s68, 1
        %s1517 = scalar_select %p1516, %s68, 1
        %s1518 = scalar_lea.vmem %s27, %s1517
        %p1520 = scmp.eq.s32.totalorder %s68, 0
        // Predicated region
        $region181: #{tpu_custom_call.1} parent=131 // pred_check
          %p1521 = pneg %p1520
        $region182: #{tpu_custom_call.1} parent=131 // pred_check_branch
          %1523 = sbr.rel (%p1521) target = $region184
        $region183: #{tpu_custom_call.1} parent=131 // pred_region
          %v1524 = vld [vmem:[%s1196] sm:$0xff]
          %1525 = vst [vmem:[%s1470] sm:$0xff] %v1524
        $region184: #{tpu_custom_call.1} parent=131 // pred_fallthru
          _
        %v1526 = vld [vmem:[%s1470] sm:$0xff]
        %v1527 = vld [vmem:[%s1205] sm:$0xff]
        %v1528 = vpack.c.bf16 %v1526, %v1526
        %v1529 = vld [vmem:[%s1214] sm:$0xf]
        %v1530 = vld [vmem:[%s1214 + $0x4] sm:$0xf]
        %v1531 = vld [vmem:[%s1214 + $0x8] sm:$0xf]
        %v1532 = vld [vmem:[%s1214 + $0xc] sm:$0xf]
        %v1533 = vld [vmem:[%s1214 + $0x10] sm:$0xf]
        %v1534 = vld [vmem:[%s1214 + $0x14] sm:$0xf]
        %v1535 = vld [vmem:[%s1214 + $0x18] sm:$0xf]
        %v1536 = vld [vmem:[%s1214 + $0x1c] sm:$0xf]
        %v1537 = vld [vmem:[%s1214 + $0x20] sm:$0xf]
        %v1538 = vld [vmem:[%s1214 + $0x24] sm:$0xf]
        %v1539 = vld [vmem:[%s1214 + $0x28] sm:$0xf]
        %v1540 = vld [vmem:[%s1214 + $0x2c] sm:$0xf]
        %v1541 = vld [vmem:[%s1214 + $0x30] sm:$0xf]
        %v1542 = vld [vmem:[%s1214 + $0x34] sm:$0xf]
        %v1543 = vld [vmem:[%s1214 + $0x38] sm:$0xf]
        %v1544 = vld [vmem:[%s1214 + $0x3c] sm:$0xf]
        %v1545 = vld [vmem:[%s1473] sm:$0x1]
        %v1547 = vlaneseq
        %v1548 = vshrl.u32 %v1547, 7
        %v1549 = vsub.s32 0, %v1548
        %v1550 = vrot.slane %v1545, %v1549
        %v1568 = vunpack.c.l.b16 %v1529
        %v1569 = vunpack.c.l.b16 %v1530
        %v1570 = vunpack.c.l.b16 %v1531
        %v1571 = vunpack.c.l.b16 %v1532
        %v1572 = vunpack.c.l.b16 %v1533
        %v1573 = vunpack.c.l.b16 %v1534
        %v1574 = vunpack.c.l.b16 %v1535
        %v1575 = vunpack.c.l.b16 %v1536
        %v1576 = vunpack.c.l.b16 %v1537
        %v1577 = vunpack.c.l.b16 %v1538
        %v1578 = vunpack.c.l.b16 %v1539
        %v1579 = vunpack.c.l.b16 %v1540
        %v1580 = vunpack.c.l.b16 %v1541
        %v1581 = vunpack.c.l.b16 %v1542
        %v1582 = vunpack.c.l.b16 %v1543
        %v1583 = vunpack.c.l.b16 %v1544
        %v1584 = vpack.c.b16 %v1569, %v1568
        %v1585 = vpack.c.b16 %v1571, %v1570
        %v1586 = vpack.c.b16 %v1573, %v1572
        %v1587 = vpack.c.b16 %v1575, %v1574
        %v1588 = vpack.c.b16 %v1577, %v1576
        %v1589 = vpack.c.b16 %v1579, %v1578
        %v1590 = vpack.c.b16 %v1581, %v1580
        %v1591 = vpack.c.b16 %v1583, %v1582
        %1600 = vmatprep.subr.bf16.mxu0 0
        %1601 = vmatpush1.bf16.msra.mxu0 %v1591
        %1602 = vmatprep.subr.bf16.mxu0 0
        %1603 = vmatpush1.bf16.msra.mxu0 %v1590
        %1604 = vmatprep.subr.bf16.mxu0 0
        %1605 = vmatpush1.bf16.msra.mxu0 %v1589
        %1606 = vmatprep.subr.bf16.mxu0 0
        %1607 = vmatpush1.bf16.msra.mxu0 %v1588
        %1608 = vmatprep.subr.bf16.mxu0 0
        %1609 = vmatpush1.bf16.msra.mxu0 %v1587
        %1610 = vmatprep.subr.bf16.mxu0 0
        %1611 = vmatpush1.bf16.msra.mxu0 %v1586
        %1612 = vmatprep.subr.bf16.mxu0 0
        %1613 = vmatpush1.bf16.msra.mxu0 %v1585
        %1614 = vmatprep.subr.bf16.mxu0 0
        %1615 = vmatpush1.bf16.msra.mxu0 %v1584
        %1616 = vmatprep.subr.bf16.mxu0 0
        %1617 = vmatpush2.bf16.msra.mxu0 0
        %1618 = vmatprep.subr.bf16.mxu0 0
        %1619 = vmatpush2.bf16.msra.mxu0 0
        %1620 = vmatprep.subr.bf16.mxu0 0
        %1621 = vmatpush2.bf16.msra.mxu0 0
        %1622 = vmatprep.subr.bf16.mxu0 0
        %1623 = vmatpush2.bf16.msra.mxu0 0
        %1624 = vmatprep.subr.bf16.mxu0 0
        %1625 = vmatpush2.bf16.msra.mxu0 0
        %1626 = vmatprep.subr.bf16.mxu0 0
        %1627 = vmatpush2.bf16.msra.mxu0 0
        %1628 = vmatprep.subr.bf16.mxu0 0
        %1629 = vmatpush2.bf16.msra.mxu0 0
        %1630 = vmatprep.subr.bf16.mxu0 0
        %1631 = vmatpush2.bf16.msra.mxu0 0
        %1632 = vmatprep.mubr.bf16.mxu0 0
        %1633 = vmatmul.mubr.bf16.gmra.mxu0 %v1528
        %v1634 = vpop.f32.mrf.mxu0
        %v1635 = vadd.f32 %v1550, %v1634
        %v1636 = vpop.f32.mrf.mxu0
        %v1637 = vpop.f32.mrf.mxu0
        %v1638 = vpop.f32.mrf.mxu0
        %1639 = vdwg.mxu0
        %v1640 = vld [vmem:[%s1223] sm:$0xf]
        %v1641 = vld [vmem:[%s1223 + $0x4] sm:$0xf]
        %v1642 = vld [vmem:[%s1223 + $0x8] sm:$0xf]
        %v1643 = vld [vmem:[%s1223 + $0xc] sm:$0xf]
        %v1644 = vld [vmem:[%s1223 + $0x10] sm:$0xf]
        %v1645 = vld [vmem:[%s1223 + $0x14] sm:$0xf]
        %v1646 = vld [vmem:[%s1223 + $0x18] sm:$0xf]
        %v1647 = vld [vmem:[%s1223 + $0x1c] sm:$0xf]
        %v1648 = vld [vmem:[%s1223 + $0x20] sm:$0xf]
        %v1649 = vld [vmem:[%s1223 + $0x24] sm:$0xf]
        %v1650 = vld [vmem:[%s1223 + $0x28] sm:$0xf]
        %v1651 = vld [vmem:[%s1223 + $0x2c] sm:$0xf]
        %v1652 = vld [vmem:[%s1223 + $0x30] sm:$0xf]
        %v1653 = vld [vmem:[%s1223 + $0x34] sm:$0xf]
        %v1654 = vld [vmem:[%s1223 + $0x38] sm:$0xf]
        %v1655 = vld [vmem:[%s1223 + $0x3c] sm:$0xf]
        %v1656 = vld [vmem:[%s1476] sm:$0x1]
        %v1658 = vlaneseq
        %v1659 = vshrl.u32 %v1658, 7
        %v1660 = vsub.s32 0, %v1659
        %v1661 = vrot.slane %v1656, %v1660
        %v1679 = vunpack.c.l.b16 %v1640
        %v1680 = vunpack.c.l.b16 %v1641
        %v1681 = vunpack.c.l.b16 %v1642
        %v1682 = vunpack.c.l.b16 %v1643
        %v1683 = vunpack.c.l.b16 %v1644
        %v1684 = vunpack.c.l.b16 %v1645
        %v1685 = vunpack.c.l.b16 %v1646
        %v1686 = vunpack.c.l.b16 %v1647
        %v1687 = vunpack.c.l.b16 %v1648
        %v1688 = vunpack.c.l.b16 %v1649
        %v1689 = vunpack.c.l.b16 %v1650
        %v1690 = vunpack.c.l.b16 %v1651
        %v1691 = vunpack.c.l.b16 %v1652
        %v1692 = vunpack.c.l.b16 %v1653
        %v1693 = vunpack.c.l.b16 %v1654
        %v1694 = vunpack.c.l.b16 %v1655
        %v1695 = vpack.c.b16 %v1680, %v1679
        %v1696 = vpack.c.b16 %v1682, %v1681
        %v1697 = vpack.c.b16 %v1684, %v1683
        %v1698 = vpack.c.b16 %v1686, %v1685
        %v1699 = vpack.c.b16 %v1688, %v1687
        %v1700 = vpack.c.b16 %v1690, %v1689
        %v1701 = vpack.c.b16 %v1692, %v1691
        %v1702 = vpack.c.b16 %v1694, %v1693
        %1711 = vmatprep.subr.bf16.mxu0 0
        %1712 = vmatpush1.bf16.msra.mxu0 %v1702
        %1713 = vmatprep.subr.bf16.mxu0 0
        %1714 = vmatpush1.bf16.msra.mxu0 %v1701
        %1715 = vmatprep.subr.bf16.mxu0 0
        %1716 = vmatpush1.bf16.msra.mxu0 %v1700
        %1717 = vmatprep.subr.bf16.mxu0 0
        %1718 = vmatpush1.bf16.msra.mxu0 %v1699
        %1719 = vmatprep.subr.bf16.mxu0 0
        %1720 = vmatpush1.bf16.msra.mxu0 %v1698
        %1721 = vmatprep.subr.bf16.mxu0 0
        %1722 = vmatpush1.bf16.msra.mxu0 %v1697
        %1723 = vmatprep.subr.bf16.mxu0 0
        %1724 = vmatpush1.bf16.msra.mxu0 %v1696
        %1725 = vmatprep.subr.bf16.mxu0 0
        %1726 = vmatpush1.bf16.msra.mxu0 %v1695
        %1727 = vmatprep.subr.bf16.mxu0 0
        %1728 = vmatpush2.bf16.msra.mxu0 0
        %1729 = vmatprep.subr.bf16.mxu0 0
        %1730 = vmatpush2.bf16.msra.mxu0 0
        %1731 = vmatprep.subr.bf16.mxu0 0
        %1732 = vmatpush2.bf16.msra.mxu0 0
        %1733 = vmatprep.subr.bf16.mxu0 0
        %1734 = vmatpush2.bf16.msra.mxu0 0
        %1735 = vmatprep.subr.bf16.mxu0 0
        %1736 = vmatpush2.bf16.msra.mxu0 0
        %1737 = vmatprep.subr.bf16.mxu0 0
        %1738 = vmatpush2.bf16.msra.mxu0 0
        %1739 = vmatprep.subr.bf16.mxu0 0
        %1740 = vmatpush2.bf16.msra.mxu0 0
        %1741 = vmatprep.subr.bf16.mxu0 0
        %1742 = vmatpush2.bf16.msra.mxu0 0
        %1743 = vmatprep.mubr.bf16.mxu0 0
        %1744 = vmatmul.mubr.bf16.gmra.mxu0 %v1528
        %v1745 = vpop.f32.mrf.mxu0
        %v1746 = vadd.f32 %v1661, %v1745
        %v1747 = vpop.f32.mrf.mxu0
        %v1748 = vpop.f32.mrf.mxu0
        %v1749 = vpop.f32.mrf.mxu0
        %1750 = vdwg.mxu0
        %v1751 = vld [vmem:[%s1232] sm:$0xf]
        %v1752 = vld [vmem:[%s1232 + $0x4] sm:$0xf]
        %v1753 = vld [vmem:[%s1232 + $0x8] sm:$0xf]
        %v1754 = vld [vmem:[%s1232 + $0xc] sm:$0xf]
        %v1755 = vld [vmem:[%s1232 + $0x10] sm:$0xf]
        %v1756 = vld [vmem:[%s1232 + $0x14] sm:$0xf]
        %v1757 = vld [vmem:[%s1232 + $0x18] sm:$0xf]
        %v1758 = vld [vmem:[%s1232 + $0x1c] sm:$0xf]
        %v1759 = vld [vmem:[%s1232 + $0x20] sm:$0xf]
        %v1760 = vld [vmem:[%s1232 + $0x24] sm:$0xf]
        %v1761 = vld [vmem:[%s1232 + $0x28] sm:$0xf]
        %v1762 = vld [vmem:[%s1232 + $0x2c] sm:$0xf]
        %v1763 = vld [vmem:[%s1232 + $0x30] sm:$0xf]
        %v1764 = vld [vmem:[%s1232 + $0x34] sm:$0xf]
        %v1765 = vld [vmem:[%s1232 + $0x38] sm:$0xf]
        %v1766 = vld [vmem:[%s1232 + $0x3c] sm:$0xf]
        %v1767 = vld [vmem:[%s1479] sm:$0x1]
        %v1769 = vlaneseq
        %v1770 = vshrl.u32 %v1769, 7
        %v1771 = vsub.s32 0, %v1770
        %v1772 = vrot.slane %v1767, %v1771
        %v1790 = vunpack.c.l.b16 %v1751
        %v1791 = vunpack.c.l.b16 %v1752
        %v1792 = vunpack.c.l.b16 %v1753
        %v1793 = vunpack.c.l.b16 %v1754
        %v1794 = vunpack.c.l.b16 %v1755
        %v1795 = vunpack.c.l.b16 %v1756
        %v1796 = vunpack.c.l.b16 %v1757
        %v1797 = vunpack.c.l.b16 %v1758
        %v1798 = vunpack.c.l.b16 %v1759
        %v1799 = vunpack.c.l.b16 %v1760
        %v1800 = vunpack.c.l.b16 %v1761
        %v1801 = vunpack.c.l.b16 %v1762
        %v1802 = vunpack.c.l.b16 %v1763
        %v1803 = vunpack.c.l.b16 %v1764
        %v1804 = vunpack.c.l.b16 %v1765
        %v1805 = vunpack.c.l.b16 %v1766
        %v1806 = vpack.c.b16 %v1791, %v1790
        %v1807 = vpack.c.b16 %v1793, %v1792
        %v1808 = vpack.c.b16 %v1795, %v1794
        %v1809 = vpack.c.b16 %v1797, %v1796
        %v1810 = vpack.c.b16 %v1799, %v1798
        %v1811 = vpack.c.b16 %v1801, %v1800
        %v1812 = vpack.c.b16 %v1803, %v1802
        %v1813 = vpack.c.b16 %v1805, %v1804
        %1822 = vmatprep.subr.bf16.mxu0 0
        %1823 = vmatpush1.bf16.msra.mxu0 %v1813
        %1824 = vmatprep.subr.bf16.mxu0 0
        %1825 = vmatpush1.bf16.msra.mxu0 %v1812
        %1826 = vmatprep.subr.bf16.mxu0 0
        %1827 = vmatpush1.bf16.msra.mxu0 %v1811
        %1828 = vmatprep.subr.bf16.mxu0 0
        %1829 = vmatpush1.bf16.msra.mxu0 %v1810
        %1830 = vmatprep.subr.bf16.mxu0 0
        %1831 = vmatpush1.bf16.msra.mxu0 %v1809
        %1832 = vmatprep.subr.bf16.mxu0 0
        %1833 = vmatpush1.bf16.msra.mxu0 %v1808
        %1834 = vmatprep.subr.bf16.mxu0 0
        %1835 = vmatpush1.bf16.msra.mxu0 %v1807
        %1836 = vmatprep.subr.bf16.mxu0 0
        %1837 = vmatpush1.bf16.msra.mxu0 %v1806
        %1838 = vmatprep.subr.bf16.mxu0 0
        %1839 = vmatpush2.bf16.msra.mxu0 0
        %1840 = vmatprep.subr.bf16.mxu0 0
        %1841 = vmatpush2.bf16.msra.mxu0 0
        %1842 = vmatprep.subr.bf16.mxu0 0
        %1843 = vmatpush2.bf16.msra.mxu0 0
        %1844 = vmatprep.subr.bf16.mxu0 0
        %1845 = vmatpush2.bf16.msra.mxu0 0
        %1846 = vmatprep.subr.bf16.mxu0 0
        %1847 = vmatpush2.bf16.msra.mxu0 0
        %1848 = vmatprep.subr.bf16.mxu0 0
        %1849 = vmatpush2.bf16.msra.mxu0 0
        %1850 = vmatprep.subr.bf16.mxu0 0
        %1851 = vmatpush2.bf16.msra.mxu0 0
        %1852 = vmatprep.subr.bf16.mxu0 0
        %1853 = vmatpush2.bf16.msra.mxu0 0
        %1854 = vmatprep.mubr.bf16.mxu0 0
        %1855 = vmatmul.mubr.bf16.gmra.mxu0 %v1528
        %v1856 = vpop.f32.mrf.mxu0
        %v1857 = vadd.f32 %v1772, %v1856
        %v1858 = vpop.f32.mrf.mxu0
        %v1859 = vpop.f32.mrf.mxu0
        %v1860 = vpop.f32.mrf.mxu0
        %1861 = vdwg.mxu0
        %v1862 = vmul.f32 %v1635, 0.17677669
        %1864 = vrot.lane.b32.xlu0 %v1862, 96
        %v1865 = vpop.permute.xlu0 %1864
        %1867 = vrot.lane.b32.xlu0 %v1862, 64
        %v1868 = vpop.permute.xlu0 %1867
        %1870 = vrot.lane.b32.xlu0 %v1862, 32
        %v1871 = vpop.permute.xlu0 %1870
        %v1873 = vcombine.low %v1862, %v1868
        %v1874 = vcombine.high %v1862, %v1868
        %v1876 = vunpack.c.l.s4 1983009808
        %v1877 = vunpack.c.0.s8 %v1876
        %v1878 = vlaneseq
        %v1879 = vshrl.u32 %v1878, 7
        %v1880 = vsub.s32 %v1877, %v1879
        %v1881 = vrot.slane %v1873, %v1880
        %v1883 = vunpack.c.l.s4 1983009808
        %v1884 = vunpack.c.0.s8 %v1883
        %v1885 = vlaneseq
        %v1886 = vshrl.u32 %v1885, 7
        %v1887 = vsub.s32 %v1884, %v1886
        %v1888 = vrot.slane %v1874, %v1887
        %v1889 = vcombine.low %v1865, %v1871
        %v1890 = vcombine.high %v1865, %v1871
        %v1892 = vunpack.c.l.s4 1983009808
        %v1893 = vunpack.c.0.s8 %v1892
        %v1894 = vlaneseq
        %v1895 = vshrl.u32 %v1894, 7
        %v1896 = vsub.s32 %v1893, %v1895
        %v1897 = vrot.slane %v1889, %v1896
        %v1899 = vunpack.c.l.s4 1983009808
        %v1900 = vunpack.c.0.s8 %v1899
        %v1901 = vlaneseq
        %v1902 = vshrl.u32 %v1901, 7
        %v1903 = vsub.s32 %v1900, %v1902
        %v1904 = vrot.slane %v1890, %v1903
        %v1905 = vcombine.low %v1881, %v1897
        %v1906 = vcombine.high %v1881, %v1897
        %v1908 = vunpack.c.l.s4 1934713408
        %v1909 = vunpack.c.0.s8 %v1908
        %v1910 = vlaneseq
        %v1911 = vshrl.u32 %v1910, 7
        %v1912 = vsub.s32 %v1909, %v1911
        %v1913 = vrot.slane %v1905, %v1912
        %v1915 = vunpack.c.l.s4 1934713408
        %v1916 = vunpack.c.0.s8 %v1915
        %v1917 = vlaneseq
        %v1918 = vshrl.u32 %v1917, 7
        %v1919 = vsub.s32 %v1916, %v1918
        %v1920 = vrot.slane %v1906, %v1919
        %v1921 = vcombine.low %v1888, %v1904
        %v1922 = vcombine.high %v1888, %v1904
        %v1924 = vunpack.c.l.s4 1934713408
        %v1925 = vunpack.c.0.s8 %v1924
        %v1926 = vlaneseq
        %v1927 = vshrl.u32 %v1926, 7
        %v1928 = vsub.s32 %v1925, %v1927
        %v1929 = vrot.slane %v1921, %v1928
        %v1931 = vunpack.c.l.s4 1934713408
        %v1932 = vunpack.c.0.s8 %v1931
        %v1933 = vlaneseq
        %v1934 = vshrl.u32 %v1933, 7
        %v1935 = vsub.s32 %v1932, %v1934
        %v1936 = vrot.slane %v1922, %v1935
        %v1937 = vcombine.high %v1913, 0.0
        %v1938 = vcombine.high %v1920, 0.0
        %v1939 = vcombine.high %v1929, 0.0
        %v1940 = vcombine.high %v1936, 0.0
        %v1941 = vcombine.low %v1913, %v1920
        %v1943 = vunpack.c.l.s4 1983009808
        %v1944 = vunpack.c.0.s8 %v1943
        %v1945 = vlaneseq
        %v1946 = vshrl.u32 %v1945, 7
        %v1947 = vsub.s32 %v1944, %v1946
        %v1948 = vrot.slane %v1941, %v1947
        %v1949 = vcombine.low %v1937, %v1938
        %v1951 = vunpack.c.l.s4 1983009808
        %v1952 = vunpack.c.0.s8 %v1951
        %v1953 = vlaneseq
        %v1954 = vshrl.u32 %v1953, 7
        %v1955 = vsub.s32 %v1952, %v1954
        %v1956 = vrot.slane %v1949, %v1955
        %v1957 = vcombine.low %v1929, %v1936
        %v1959 = vunpack.c.l.s4 1983009808
        %v1960 = vunpack.c.0.s8 %v1959
        %v1961 = vlaneseq
        %v1962 = vshrl.u32 %v1961, 7
        %v1963 = vsub.s32 %v1960, %v1962
        %v1964 = vrot.slane %v1957, %v1963
        %v1965 = vcombine.low %v1939, %v1940
        %v1967 = vunpack.c.l.s4 1983009808
        %v1968 = vunpack.c.0.s8 %v1967
        %v1969 = vlaneseq
        %v1970 = vshrl.u32 %v1969, 7
        %v1971 = vsub.s32 %v1968, %v1970
        %v1972 = vrot.slane %v1965, %v1971
        %v1973 = vcombine.low %v1948, %v1956
        %v1974 = vcombine.high %v1948, %v1956
        %v1976 = vunpack.c.l.s4 1934713408
        %v1977 = vunpack.c.0.s8 %v1976
        %v1978 = vlaneseq
        %v1979 = vshrl.u32 %v1978, 7
        %v1980 = vsub.s32 %v1977, %v1979
        %v1981 = vrot.slane %v1973, %v1980
        %v1983 = vunpack.c.l.s4 1934713408
        %v1984 = vunpack.c.0.s8 %v1983
        %v1985 = vlaneseq
        %v1986 = vshrl.u32 %v1985, 7
        %v1987 = vsub.s32 %v1984, %v1986
        %v1988 = vrot.slane %v1974, %v1987
        %v1989 = vcombine.low %v1964, %v1972
        %v1990 = vcombine.high %v1964, %v1972
        %v1992 = vunpack.c.l.s4 1934713408
        %v1993 = vunpack.c.0.s8 %v1992
        %v1994 = vlaneseq
        %v1995 = vshrl.u32 %v1994, 7
        %v1996 = vsub.s32 %v1993, %v1995
        %v1997 = vrot.slane %v1989, %v1996
        %v1999 = vunpack.c.l.s4 1934713408
        %v2000 = vunpack.c.0.s8 %v1999
        %v2001 = vlaneseq
        %v2002 = vshrl.u32 %v2001, 7
        %v2003 = vsub.s32 %v2000, %v2002
        %v2004 = vrot.slane %v1990, %v2003
        %v2005 = vcombine.low %v1981, %v1997
        %v2006 = vcombine.high %v1981, %v1997
        %v2007 = vcombine.low %v1988, %v2004
        %v2008 = vcombine.high %v1988, %v2004
        %v2009 = vpack.c.bf16 %v2005, %v2005
        %v2010 = vpack.c.bf16 %v2006, %v2006
        %v2011 = vpack.c.bf16 %v2007, %v2007
        %v2012 = vpack.c.bf16 %v2008, %v2008
        %2014 = vrot.lane.b32.xlu0 %v1746, 96
        %v2015 = vpop.permute.xlu0 %2014
        %2017 = vrot.lane.b32.xlu0 %v1746, 64
        %v2018 = vpop.permute.xlu0 %2017
        %2020 = vrot.lane.b32.xlu0 %v1746, 32
        %v2021 = vpop.permute.xlu0 %2020
        %v2023 = vcombine.low %v1746, %v2018
        %v2024 = vcombine.high %v1746, %v2018
        %v2026 = vunpack.c.l.s4 1983009808
        %v2027 = vunpack.c.0.s8 %v2026
        %v2028 = vlaneseq
        %v2029 = vshrl.u32 %v2028, 7
        %v2030 = vsub.s32 %v2027, %v2029
        %v2031 = vrot.slane %v2023, %v2030
        %v2033 = vunpack.c.l.s4 1983009808
        %v2034 = vunpack.c.0.s8 %v2033
        %v2035 = vlaneseq
        %v2036 = vshrl.u32 %v2035, 7
        %v2037 = vsub.s32 %v2034, %v2036
        %v2038 = vrot.slane %v2024, %v2037
        %v2039 = vcombine.low %v2015, %v2021
        %v2040 = vcombine.high %v2015, %v2021
        %v2042 = vunpack.c.l.s4 1983009808
        %v2043 = vunpack.c.0.s8 %v2042
        %v2044 = vlaneseq
        %v2045 = vshrl.u32 %v2044, 7
        %v2046 = vsub.s32 %v2043, %v2045
        %v2047 = vrot.slane %v2039, %v2046
        %v2049 = vunpack.c.l.s4 1983009808
        %v2050 = vunpack.c.0.s8 %v2049
        %v2051 = vlaneseq
        %v2052 = vshrl.u32 %v2051, 7
        %v2053 = vsub.s32 %v2050, %v2052
        %v2054 = vrot.slane %v2040, %v2053
        %v2055 = vcombine.low %v2031, %v2047
        %v2056 = vcombine.high %v2031, %v2047
        %v2058 = vunpack.c.l.s4 1934713408
        %v2059 = vunpack.c.0.s8 %v2058
        %v2060 = vlaneseq
        %v2061 = vshrl.u32 %v2060, 7
        %v2062 = vsub.s32 %v2059, %v2061
        %v2063 = vrot.slane %v2055, %v2062
        %v2065 = vunpack.c.l.s4 1934713408
        %v2066 = vunpack.c.0.s8 %v2065
        %v2067 = vlaneseq
        %v2068 = vshrl.u32 %v2067, 7
        %v2069 = vsub.s32 %v2066, %v2068
        %v2070 = vrot.slane %v2056, %v2069
        %v2071 = vcombine.low %v2038, %v2054
        %v2072 = vcombine.high %v2038, %v2054
        %v2074 = vunpack.c.l.s4 1934713408
        %v2075 = vunpack.c.0.s8 %v2074
        %v2076 = vlaneseq
        %v2077 = vshrl.u32 %v2076, 7
        %v2078 = vsub.s32 %v2075, %v2077
        %v2079 = vrot.slane %v2071, %v2078
        %v2081 = vunpack.c.l.s4 1934713408
        %v2082 = vunpack.c.0.s8 %v2081
        %v2083 = vlaneseq
        %v2084 = vshrl.u32 %v2083, 7
        %v2085 = vsub.s32 %v2082, %v2084
        %v2086 = vrot.slane %v2072, %v2085
        %v2087 = vcombine.high %v2063, 0.0
        %v2088 = vcombine.high %v2070, 0.0
        %v2089 = vcombine.high %v2079, 0.0
        %v2090 = vcombine.high %v2086, 0.0
        %v2091 = vcombine.low %v2063, %v2070
        %v2093 = vunpack.c.l.s4 1983009808
        %v2094 = vunpack.c.0.s8 %v2093
        %v2095 = vlaneseq
        %v2096 = vshrl.u32 %v2095, 7
        %v2097 = vsub.s32 %v2094, %v2096
        %v2098 = vrot.slane %v2091, %v2097
        %v2099 = vcombine.low %v2087, %v2088
        %v2101 = vunpack.c.l.s4 1983009808
        %v2102 = vunpack.c.0.s8 %v2101
        %v2103 = vlaneseq
        %v2104 = vshrl.u32 %v2103, 7
        %v2105 = vsub.s32 %v2102, %v2104
        %v2106 = vrot.slane %v2099, %v2105
        %v2107 = vcombine.low %v2079, %v2086
        %v2109 = vunpack.c.l.s4 1983009808
        %v2110 = vunpack.c.0.s8 %v2109
        %v2111 = vlaneseq
        %v2112 = vshrl.u32 %v2111, 7
        %v2113 = vsub.s32 %v2110, %v2112
        %v2114 = vrot.slane %v2107, %v2113
        %v2115 = vcombine.low %v2089, %v2090
        %v2117 = vunpack.c.l.s4 1983009808
        %v2118 = vunpack.c.0.s8 %v2117
        %v2119 = vlaneseq
        %v2120 = vshrl.u32 %v2119, 7
        %v2121 = vsub.s32 %v2118, %v2120
        %v2122 = vrot.slane %v2115, %v2121
        %v2123 = vcombine.low %v2098, %v2106
        %v2124 = vcombine.high %v2098, %v2106
        %v2126 = vunpack.c.l.s4 1934713408
        %v2127 = vunpack.c.0.s8 %v2126
        %v2128 = vlaneseq
        %v2129 = vshrl.u32 %v2128, 7
        %v2130 = vsub.s32 %v2127, %v2129
        %v2131 = vrot.slane %v2123, %v2130
        %v2133 = vunpack.c.l.s4 1934713408
        %v2134 = vunpack.c.0.s8 %v2133
        %v2135 = vlaneseq
        %v2136 = vshrl.u32 %v2135, 7
        %v2137 = vsub.s32 %v2134, %v2136
        %v2138 = vrot.slane %v2124, %v2137
        %v2139 = vcombine.low %v2114, %v2122
        %v2140 = vcombine.high %v2114, %v2122
        %v2142 = vunpack.c.l.s4 1934713408
        %v2143 = vunpack.c.0.s8 %v2142
        %v2144 = vlaneseq
        %v2145 = vshrl.u32 %v2144, 7
        %v2146 = vsub.s32 %v2143, %v2145
        %v2147 = vrot.slane %v2139, %v2146
        %v2149 = vunpack.c.l.s4 1934713408
        %v2150 = vunpack.c.0.s8 %v2149
        %v2151 = vlaneseq
        %v2152 = vshrl.u32 %v2151, 7
        %v2153 = vsub.s32 %v2150, %v2152
        %v2154 = vrot.slane %v2140, %v2153
        %v2155 = vcombine.low %v2131, %v2147
        %v2156 = vcombine.high %v2131, %v2147
        %v2157 = vcombine.low %v2138, %v2154
        %v2158 = vcombine.high %v2138, %v2154
        %v2159 = vpack.c.bf16 %v2155, %v2155
        %v2160 = vpack.c.bf16 %v2156, %v2156
        %v2161 = vpack.c.bf16 %v2157, %v2157
        %v2162 = vpack.c.bf16 %v2158, %v2158
        %2164 = vrot.lane.b32.xlu0 %v1857, 96
        %v2165 = vpop.permute.xlu0 %2164
        %2167 = vrot.lane.b32.xlu0 %v1857, 64
        %v2168 = vpop.permute.xlu0 %2167
        %2170 = vrot.lane.b32.xlu0 %v1857, 32
        %v2171 = vpop.permute.xlu0 %2170
        %v2173 = vcombine.low %v1857, %v2168
        %v2174 = vcombine.high %v1857, %v2168
        %v2176 = vunpack.c.l.s4 1983009808
        %v2177 = vunpack.c.0.s8 %v2176
        %v2178 = vlaneseq
        %v2179 = vshrl.u32 %v2178, 7
        %v2180 = vsub.s32 %v2177, %v2179
        %v2181 = vrot.slane %v2173, %v2180
        %v2183 = vunpack.c.l.s4 1983009808
        %v2184 = vunpack.c.0.s8 %v2183
        %v2185 = vlaneseq
        %v2186 = vshrl.u32 %v2185, 7
        %v2187 = vsub.s32 %v2184, %v2186
        %v2188 = vrot.slane %v2174, %v2187
        %v2189 = vcombine.low %v2165, %v2171
        %v2190 = vcombine.high %v2165, %v2171
        %v2192 = vunpack.c.l.s4 1983009808
        %v2193 = vunpack.c.0.s8 %v2192
        %v2194 = vlaneseq
        %v2195 = vshrl.u32 %v2194, 7
        %v2196 = vsub.s32 %v2193, %v2195
        %v2197 = vrot.slane %v2189, %v2196
        %v2199 = vunpack.c.l.s4 1983009808
        %v2200 = vunpack.c.0.s8 %v2199
        %v2201 = vlaneseq
        %v2202 = vshrl.u32 %v2201, 7
        %v2203 = vsub.s32 %v2200, %v2202
        %v2204 = vrot.slane %v2190, %v2203
        %v2205 = vcombine.low %v2181, %v2197
        %v2206 = vcombine.high %v2181, %v2197
        %v2208 = vunpack.c.l.s4 1934713408
        %v2209 = vunpack.c.0.s8 %v2208
        %v2210 = vlaneseq
        %v2211 = vshrl.u32 %v2210, 7
        %v2212 = vsub.s32 %v2209, %v2211
        %v2213 = vrot.slane %v2205, %v2212
        %v2215 = vunpack.c.l.s4 1934713408
        %v2216 = vunpack.c.0.s8 %v2215
        %v2217 = vlaneseq
        %v2218 = vshrl.u32 %v2217, 7
        %v2219 = vsub.s32 %v2216, %v2218
        %v2220 = vrot.slane %v2206, %v2219
        %v2221 = vcombine.low %v2188, %v2204
        %v2222 = vcombine.high %v2188, %v2204
        %v2224 = vunpack.c.l.s4 1934713408
        %v2225 = vunpack.c.0.s8 %v2224
        %v2226 = vlaneseq
        %v2227 = vshrl.u32 %v2226, 7
        %v2228 = vsub.s32 %v2225, %v2227
        %v2229 = vrot.slane %v2221, %v2228
        %v2231 = vunpack.c.l.s4 1934713408
        %v2232 = vunpack.c.0.s8 %v2231
        %v2233 = vlaneseq
        %v2234 = vshrl.u32 %v2233, 7
        %v2235 = vsub.s32 %v2232, %v2234
        %v2236 = vrot.slane %v2222, %v2235
        %v2237 = vcombine.high %v2213, 0.0
        %v2238 = vcombine.high %v2220, 0.0
        %v2239 = vcombine.high %v2229, 0.0
        %v2240 = vcombine.high %v2236, 0.0
        %v2241 = vcombine.low %v2213, %v2220
        %v2243 = vunpack.c.l.s4 1983009808
        %v2244 = vunpack.c.0.s8 %v2243
        %v2245 = vlaneseq
        %v2246 = vshrl.u32 %v2245, 7
        %v2247 = vsub.s32 %v2244, %v2246
        %v2248 = vrot.slane %v2241, %v2247
        %v2249 = vcombine.low %v2237, %v2238
        %v2251 = vunpack.c.l.s4 1983009808
        %v2252 = vunpack.c.0.s8 %v2251
        %v2253 = vlaneseq
        %v2254 = vshrl.u32 %v2253, 7
        %v2255 = vsub.s32 %v2252, %v2254
        %v2256 = vrot.slane %v2249, %v2255
        %v2257 = vcombine.low %v2229, %v2236
        %v2259 = vunpack.c.l.s4 1983009808
        %v2260 = vunpack.c.0.s8 %v2259
        %v2261 = vlaneseq
        %v2262 = vshrl.u32 %v2261, 7
        %v2263 = vsub.s32 %v2260, %v2262
        %v2264 = vrot.slane %v2257, %v2263
        %v2265 = vcombine.low %v2239, %v2240
        %v2267 = vunpack.c.l.s4 1983009808
        %v2268 = vunpack.c.0.s8 %v2267
        %v2269 = vlaneseq
        %v2270 = vshrl.u32 %v2269, 7
        %v2271 = vsub.s32 %v2268, %v2270
        %v2272 = vrot.slane %v2265, %v2271
        %v2273 = vcombine.low %v2248, %v2256
        %v2274 = vcombine.high %v2248, %v2256
        %v2276 = vunpack.c.l.s4 1934713408
        %v2277 = vunpack.c.0.s8 %v2276
        %v2278 = vlaneseq
        %v2279 = vshrl.u32 %v2278, 7
        %v2280 = vsub.s32 %v2277, %v2279
        %v2281 = vrot.slane %v2273, %v2280
        %v2283 = vunpack.c.l.s4 1934713408
        %v2284 = vunpack.c.0.s8 %v2283
        %v2285 = vlaneseq
        %v2286 = vshrl.u32 %v2285, 7
        %v2287 = vsub.s32 %v2284, %v2286
        %v2288 = vrot.slane %v2274, %v2287
        %v2289 = vcombine.low %v2264, %v2272
        %v2290 = vcombine.high %v2264, %v2272
        %v2292 = vunpack.c.l.s4 1934713408
        %v2293 = vunpack.c.0.s8 %v2292
        %v2294 = vlaneseq
        %v2295 = vshrl.u32 %v2294, 7
        %v2296 = vsub.s32 %v2293, %v2295
        %v2297 = vrot.slane %v2289, %v2296
        %v2299 = vunpack.c.l.s4 1934713408
        %v2300 = vunpack.c.0.s8 %v2299
        %v2301 = vlaneseq
        %v2302 = vshrl.u32 %v2301, 7
        %v2303 = vsub.s32 %v2300, %v2302
        %v2304 = vrot.slane %v2290, %v2303
        %v2305 = vcombine.low %v2281, %v2297
        %v2306 = vcombine.high %v2281, %v2297
        %v2307 = vcombine.low %v2288, %v2304
        %v2308 = vcombine.high %v2288, %v2304
        %v2309 = vpack.c.bf16 %v2305, %v2305
        %v2310 = vpack.c.bf16 %v2306, %v2306
        %v2311 = vpack.c.bf16 %v2307, %v2307
        %v2312 = vpack.c.bf16 %v2308, %v2308
        %vm2313 = vcmask 261120
        %v2315 = vsel %vm2313, %v2009, 0
        %v2318 = vsel %vm2313, %v2159, 0
        %2320 = vmatprep.subr.bf16.mxu0 0
        %2321 = vmatpush1.bf16.xpose.msra.mxu0 0
        %2322 = vmatprep.subr.bf16.mxu0 0
        %2323 = vmatpush1.bf16.xpose.msra.mxu0 0
        %2324 = vmatprep.subr.bf16.mxu0 0
        %2325 = vmatpush1.bf16.xpose.msra.mxu0 0
        %2326 = vmatprep.subr.bf16.mxu0 0
        %2327 = vmatpush1.bf16.xpose.msra.mxu0 0
        %2328 = vmatprep.subr.bf16.mxu0 0
        %2329 = vmatpush1.bf16.xpose.msra.mxu0 0
        %2330 = vmatprep.subr.bf16.mxu0 0
        %2331 = vmatpush1.bf16.xpose.msra.mxu0 0
        %2332 = vmatprep.subr.bf16.mxu0 0
        %2333 = vmatpush1.bf16.xpose.msra.mxu0 0
        %2334 = vmatprep.subr.bf16.mxu0 0
        %2335 = vmatpush1.bf16.xpose.msra.mxu0 %v2318
        %2336 = vmatprep.subr.bf16.mxu0 0
        %2337 = vmatpush2.bf16.xpose.msra.mxu0 0
        %2338 = vmatprep.subr.bf16.mxu0 0
        %2339 = vmatpush2.bf16.xpose.msra.mxu0 0
        %2340 = vmatprep.subr.bf16.mxu0 0
        %2341 = vmatpush2.bf16.xpose.msra.mxu0 0
        %2342 = vmatprep.subr.bf16.mxu0 0
        %2343 = vmatpush2.bf16.xpose.msra.mxu0 0
        %2344 = vmatprep.subr.bf16.mxu0 0
        %2345 = vmatpush2.bf16.xpose.msra.mxu0 0
        %2346 = vmatprep.subr.bf16.mxu0 0
        %2347 = vmatpush2.bf16.xpose.msra.mxu0 0
        %2348 = vmatprep.subr.bf16.mxu0 0
        %2349 = vmatpush2.bf16.xpose.msra.mxu0 0
        %2350 = vmatprep.subr.bf16.mxu0 0
        %2351 = vmatpush2.bf16.xpose.msra.mxu0 0
        %2352 = vmatprep.mubr.bf16.mxu0 0
        %2353 = vmatmul.mubr.bf16.gmra.mxu0 %v2315
        %v2354 = vpop.f32.mrf.mxu0
        %v2355 = vadd.f32 0.0, %v2354
        %v2356 = vpop.f32.mrf.mxu0
        %v2357 = vpop.f32.mrf.mxu0
        %v2358 = vpop.f32.mrf.mxu0
        %2359 = vdwg.mxu0
        %v2361 = vsel %vm2313, %v2010, 0
        %v2364 = vsel %vm2313, %v2160, 0
        %2366 = vmatprep.subr.bf16.mxu0 0
        %2367 = vmatpush1.bf16.xpose.msra.mxu0 0
        %2368 = vmatprep.subr.bf16.mxu0 0
        %2369 = vmatpush1.bf16.xpose.msra.mxu0 0
        %2370 = vmatprep.subr.bf16.mxu0 0
        %2371 = vmatpush1.bf16.xpose.msra.mxu0 0
        %2372 = vmatprep.subr.bf16.mxu0 0
        %2373 = vmatpush1.bf16.xpose.msra.mxu0 0
        %2374 = vmatprep.subr.bf16.mxu0 0
        %2375 = vmatpush1.bf16.xpose.msra.mxu0 0
        %2376 = vmatprep.subr.bf16.mxu0 0
        %2377 = vmatpush1.bf16.xpose.msra.mxu0 0
        %2378 = vmatprep.subr.bf16.mxu0 0
        %2379 = vmatpush1.bf16.xpose.msra.mxu0 0
        %2380 = vmatprep.subr.bf16.mxu0 0
        %2381 = vmatpush1.bf16.xpose.msra.mxu0 %v2364
        %2382 = vmatprep.subr.bf16.mxu0 0
        %2383 = vmatpush2.bf16.xpose.msra.mxu0 0
        %2384 = vmatprep.subr.bf16.mxu0 0
        %2385 = vmatpush2.bf16.xpose.msra.mxu0 0
        %2386 = vmatprep.subr.bf16.mxu0 0
        %2387 = vmatpush2.bf16.xpose.msra.mxu0 0
        %2388 = vmatprep.subr.bf16.mxu0 0
        %2389 = vmatpush2.bf16.xpose.msra.mxu0 0
        %2390 = vmatprep.subr.bf16.mxu0 0
        %2391 = vmatpush2.bf16.xpose.msra.mxu0 0
        %2392 = vmatprep.subr.bf16.mxu0 0
        %2393 = vmatpush2.bf16.xpose.msra.mxu0 0
        %2394 = vmatprep.subr.bf16.mxu0 0
        %2395 = vmatpush2.bf16.xpose.msra.mxu0 0
        %2396 = vmatprep.subr.bf16.mxu0 0
        %2397 = vmatpush2.bf16.xpose.msra.mxu0 0
        %2398 = vmatprep.mubr.bf16.mxu0 0
        %2399 = vmatmul.mubr.bf16.gmra.mxu0 %v2361
        %v2400 = vpop.f32.mrf.mxu0
        %v2401 = vadd.f32 0.0, %v2400
        %v2402 = vpop.f32.mrf.mxu0
        %v2403 = vpop.f32.mrf.mxu0
        %v2404 = vpop.f32.mrf.mxu0
        %2405 = vdwg.mxu0
        %v2407 = vsel %vm2313, %v2011, 0
        %v2410 = vsel %vm2313, %v2161, 0
        %2412 = vmatprep.subr.bf16.mxu0 0
        %2413 = vmatpush1.bf16.xpose.msra.mxu0 0
        %2414 = vmatprep.subr.bf16.mxu0 0
        %2415 = vmatpush1.bf16.xpose.msra.mxu0 0
        %2416 = vmatprep.subr.bf16.mxu0 0
        %2417 = vmatpush1.bf16.xpose.msra.mxu0 0
        %2418 = vmatprep.subr.bf16.mxu0 0
        %2419 = vmatpush1.bf16.xpose.msra.mxu0 0
        %2420 = vmatprep.subr.bf16.mxu0 0
        %2421 = vmatpush1.bf16.xpose.msra.mxu0 0
        %2422 = vmatprep.subr.bf16.mxu0 0
        %2423 = vmatpush1.bf16.xpose.msra.mxu0 0
        %2424 = vmatprep.subr.bf16.mxu0 0
        %2425 = vmatpush1.bf16.xpose.msra.mxu0 0
        %2426 = vmatprep.subr.bf16.mxu0 0
        %2427 = vmatpush1.bf16.xpose.msra.mxu0 %v2410
        %2428 = vmatprep.subr.bf16.mxu0 0
        %2429 = vmatpush2.bf16.xpose.msra.mxu0 0
        %2430 = vmatprep.subr.bf16.mxu0 0
        %2431 = vmatpush2.bf16.xpose.msra.mxu0 0
        %2432 = vmatprep.subr.bf16.mxu0 0
        %2433 = vmatpush2.bf16.xpose.msra.mxu0 0
        %2434 = vmatprep.subr.bf16.mxu0 0
        %2435 = vmatpush2.bf16.xpose.msra.mxu0 0
        %2436 = vmatprep.subr.bf16.mxu0 0
        %2437 = vmatpush2.bf16.xpose.msra.mxu0 0
        %2438 = vmatprep.subr.bf16.mxu0 0
        %2439 = vmatpush2.bf16.xpose.msra.mxu0 0
        %2440 = vmatprep.subr.bf16.mxu0 0
        %2441 = vmatpush2.bf16.xpose.msra.mxu0 0
        %2442 = vmatprep.subr.bf16.mxu0 0
        %2443 = vmatpush2.bf16.xpose.msra.mxu0 0
        %2444 = vmatprep.mubr.bf16.mxu0 0
        %2445 = vmatmul.mubr.bf16.gmra.mxu0 %v2407
        %v2446 = vpop.f32.mrf.mxu0
        %v2447 = vadd.f32 0.0, %v2446
        %v2448 = vpop.f32.mrf.mxu0
        %v2449 = vpop.f32.mrf.mxu0
        %v2450 = vpop.f32.mrf.mxu0
        %2451 = vdwg.mxu0
        %v2453 = vsel %vm2313, %v2012, 0
        %v2456 = vsel %vm2313, %v2162, 0
        %2458 = vmatprep.subr.bf16.mxu0 0
        %2459 = vmatpush1.bf16.xpose.msra.mxu0 0
        %2460 = vmatprep.subr.bf16.mxu0 0
        %2461 = vmatpush1.bf16.xpose.msra.mxu0 0
        %2462 = vmatprep.subr.bf16.mxu0 0
        %2463 = vmatpush1.bf16.xpose.msra.mxu0 0
        %2464 = vmatprep.subr.bf16.mxu0 0
        %2465 = vmatpush1.bf16.xpose.msra.mxu0 0
        %2466 = vmatprep.subr.bf16.mxu0 0
        %2467 = vmatpush1.bf16.xpose.msra.mxu0 0
        %2468 = vmatprep.subr.bf16.mxu0 0
        %2469 = vmatpush1.bf16.xpose.msra.mxu0 0
        %2470 = vmatprep.subr.bf16.mxu0 0
        %2471 = vmatpush1.bf16.xpose.msra.mxu0 0
        %2472 = vmatprep.subr.bf16.mxu0 0
        %2473 = vmatpush1.bf16.xpose.msra.mxu0 %v2456
        %2474 = vmatprep.subr.bf16.mxu0 0
        %2475 = vmatpush2.bf16.xpose.msra.mxu0 0
        %2476 = vmatprep.subr.bf16.mxu0 0
        %2477 = vmatpush2.bf16.xpose.msra.mxu0 0
        %2478 = vmatprep.subr.bf16.mxu0 0
        %2479 = vmatpush2.bf16.xpose.msra.mxu0 0
        %2480 = vmatprep.subr.bf16.mxu0 0
        %2481 = vmatpush2.bf16.xpose.msra.mxu0 0
        %2482 = vmatprep.subr.bf16.mxu0 0
        %2483 = vmatpush2.bf16.xpose.msra.mxu0 0
        %2484 = vmatprep.subr.bf16.mxu0 0
        %2485 = vmatpush2.bf16.xpose.msra.mxu0 0
        %2486 = vmatprep.subr.bf16.mxu0 0
        %2487 = vmatpush2.bf16.xpose.msra.mxu0 0
        %2488 = vmatprep.subr.bf16.mxu0 0
        %2489 = vmatpush2.bf16.xpose.msra.mxu0 0
        %2490 = vmatprep.mubr.bf16.mxu0 0
        %2491 = vmatmul.mubr.bf16.gmra.mxu0 %v2453
        %v2492 = vpop.f32.mrf.mxu0
        %v2493 = vadd.f32 0.0, %v2492
        %v2494 = vpop.f32.mrf.mxu0
        %v2495 = vpop.f32.mrf.mxu0
        %v2496 = vpop.f32.mrf.mxu0
        %2497 = vdwg.mxu0
        %vm2498 = vcmask 64512
        %v2499 = vsel %vm2498, %v2355, -inf
        %2500 = vmax.xlane.f32.xlu0 %v2499
        %v2501 = vpop.xlane.xlu0 %2500
        %v2502 = vsel %vm2498, %v2401, -inf
        %2503 = vmax.xlane.f32.xlu0 %v2502
        %v2504 = vpop.xlane.xlu0 %2503
        %v2505 = vsel %vm2498, %v2447, -inf
        %2506 = vmax.xlane.f32.xlu0 %v2505
        %v2507 = vpop.xlane.xlu0 %2506
        %v2508 = vsel %vm2498, %v2493, -inf
        %2509 = vmax.xlane.f32.xlu0 %v2508
        %v2510 = vpop.xlane.xlu0 %2509
        %v2511 = vsub.f32 %v2355, %v2501
        %v2512 = vsub.f32 %v2401, %v2504
        %v2513 = vsub.f32 %v2447, %v2507
        %v2514 = vsub.f32 %v2493, %v2510
        %v2515 = vmul.f32 %v2511, 1.442695
        %v2516 = vpow.pop %v2515
        %v2517 = vmul.f32 %v2512, 1.442695
        %v2518 = vpow.pop %v2517
        %v2519 = vmul.f32 %v2513, 1.442695
        %v2520 = vpow.pop %v2519
        %v2521 = vmul.f32 %v2514, 1.442695
        %v2522 = vpow.pop %v2521
        %v2523 = vsel %vm2498, %v2516, 0.0
        %2524 = vadd.xlane.f32.xlu0 %v2523
        %v2525 = vpop.xlane.xlu0 %2524
        %v2526 = vsel %vm2498, %v2518, 0.0
        %2527 = vadd.xlane.f32.xlu0 %v2526
        %v2528 = vpop.xlane.xlu0 %2527
        %v2529 = vsel %vm2498, %v2520, 0.0
        %2530 = vadd.xlane.f32.xlu0 %v2529
        %v2531 = vpop.xlane.xlu0 %2530
        %v2532 = vsel %vm2498, %v2522, 0.0
        %2533 = vadd.xlane.f32.xlu0 %v2532
        %v2534 = vpop.xlane.xlu0 %2533
        %v2535 = vrcp.pop %v2525
        %v2536 = vrcp.pop %v2528
        %v2537 = vrcp.pop %v2531
        %v2538 = vrcp.pop %v2534
        %v2539 = vmul.f32 %v2516, %v2535
        %v2540 = vmul.f32 %v2518, %v2536
        %v2541 = vmul.f32 %v2520, %v2537
        %v2542 = vmul.f32 %v2522, %v2538
        %v2543 = vpack.c.bf16 %v2539, %v2539
        %v2544 = vpack.c.bf16 %v2540, %v2540
        %v2545 = vpack.c.bf16 %v2541, %v2541
        %v2546 = vpack.c.bf16 %v2542, %v2542
        %v2548 = vsel %vm2498, %v2543, 0
        %vm2550 = vcmask 1043456
        %v2552 = vsel %vm2550, %v2309, 0
        %2554 = vmatprep.subr.bf16.mxu0 0
        %2555 = vmatpush1.bf16.msra.mxu0 0
        %2556 = vmatprep.subr.bf16.mxu0 0
        %2557 = vmatpush1.bf16.msra.mxu0 0
        %2558 = vmatprep.subr.bf16.mxu0 0
        %2559 = vmatpush1.bf16.msra.mxu0 0
        %2560 = vmatprep.subr.bf16.mxu0 0
        %2561 = vmatpush1.bf16.msra.mxu0 0
        %2562 = vmatprep.subr.bf16.mxu0 0
        %2563 = vmatpush1.bf16.msra.mxu0 0
        %2564 = vmatprep.subr.bf16.mxu0 0
        %2565 = vmatpush1.bf16.msra.mxu0 0
        %2566 = vmatprep.subr.bf16.mxu0 0
        %2567 = vmatpush1.bf16.msra.mxu0 0
        %2568 = vmatprep.subr.bf16.mxu0 0
        %2569 = vmatpush1.bf16.msra.mxu0 %v2552
        %2570 = vmatprep.subr.bf16.mxu0 0
        %2571 = vmatpush2.bf16.msra.mxu0 0
        %2572 = vmatprep.subr.bf16.mxu0 0
        %2573 = vmatpush2.bf16.msra.mxu0 0
        %2574 = vmatprep.subr.bf16.mxu0 0
        %2575 = vmatpush2.bf16.msra.mxu0 0
        %2576 = vmatprep.subr.bf16.mxu0 0
        %2577 = vmatpush2.bf16.msra.mxu0 0
        %2578 = vmatprep.subr.bf16.mxu0 0
        %2579 = vmatpush2.bf16.msra.mxu0 0
        %2580 = vmatprep.subr.bf16.mxu0 0
        %2581 = vmatpush2.bf16.msra.mxu0 0
        %2582 = vmatprep.subr.bf16.mxu0 0
        %2583 = vmatpush2.bf16.msra.mxu0 0
        %2584 = vmatprep.subr.bf16.mxu0 0
        %2585 = vmatpush2.bf16.msra.mxu0 0
        %2586 = vmatprep.mubr.bf16.mxu0 0
        %2587 = vmatmul.mubr.bf16.gmra.mxu0 %v2548
        %v2588 = vpop.f32.mrf.mxu0
        %v2589 = vadd.f32 0.0, %v2588
        %v2590 = vpop.f32.mrf.mxu0
        %v2591 = vpop.f32.mrf.mxu0
        %v2592 = vpop.f32.mrf.mxu0
        %2593 = vdwg.mxu0
        %v2595 = vsel %vm2498, %v2544, 0
        %v2598 = vsel %vm2550, %v2310, 0
        %2600 = vmatprep.subr.bf16.mxu0 0
        %2601 = vmatpush1.bf16.msra.mxu0 0
        %2602 = vmatprep.subr.bf16.mxu0 0
        %2603 = vmatpush1.bf16.msra.mxu0 0
        %2604 = vmatprep.subr.bf16.mxu0 0
        %2605 = vmatpush1.bf16.msra.mxu0 0
        %2606 = vmatprep.subr.bf16.mxu0 0
        %2607 = vmatpush1.bf16.msra.mxu0 0
        %2608 = vmatprep.subr.bf16.mxu0 0
        %2609 = vmatpush1.bf16.msra.mxu0 0
        %2610 = vmatprep.subr.bf16.mxu0 0
        %2611 = vmatpush1.bf16.msra.mxu0 0
        %2612 = vmatprep.subr.bf16.mxu0 0
        %2613 = vmatpush1.bf16.msra.mxu0 0
        %2614 = vmatprep.subr.bf16.mxu0 0
        %2615 = vmatpush1.bf16.msra.mxu0 %v2598
        %2616 = vmatprep.subr.bf16.mxu0 0
        %2617 = vmatpush2.bf16.msra.mxu0 0
        %2618 = vmatprep.subr.bf16.mxu0 0
        %2619 = vmatpush2.bf16.msra.mxu0 0
        %2620 = vmatprep.subr.bf16.mxu0 0
        %2621 = vmatpush2.bf16.msra.mxu0 0
        %2622 = vmatprep.subr.bf16.mxu0 0
        %2623 = vmatpush2.bf16.msra.mxu0 0
        %2624 = vmatprep.subr.bf16.mxu0 0
        %2625 = vmatpush2.bf16.msra.mxu0 0
        %2626 = vmatprep.subr.bf16.mxu0 0
        %2627 = vmatpush2.bf16.msra.mxu0 0
        %2628 = vmatprep.subr.bf16.mxu0 0
        %2629 = vmatpush2.bf16.msra.mxu0 0
        %2630 = vmatprep.subr.bf16.mxu0 0
        %2631 = vmatpush2.bf16.msra.mxu0 0
        %2632 = vmatprep.mubr.bf16.mxu0 0
        %2633 = vmatmul.mubr.bf16.gmra.mxu0 %v2595
        %v2634 = vpop.f32.mrf.mxu0
        %v2635 = vadd.f32 0.0, %v2634
        %v2636 = vpop.f32.mrf.mxu0
        %v2637 = vpop.f32.mrf.mxu0
        %v2638 = vpop.f32.mrf.mxu0
        %2639 = vdwg.mxu0
        %v2641 = vsel %vm2498, %v2545, 0
        %v2644 = vsel %vm2550, %v2311, 0
        %2646 = vmatprep.subr.bf16.mxu0 0
        %2647 = vmatpush1.bf16.msra.mxu0 0
        %2648 = vmatprep.subr.bf16.mxu0 0
        %2649 = vmatpush1.bf16.msra.mxu0 0
        %2650 = vmatprep.subr.bf16.mxu0 0
        %2651 = vmatpush1.bf16.msra.mxu0 0
        %2652 = vmatprep.subr.bf16.mxu0 0
        %2653 = vmatpush1.bf16.msra.mxu0 0
        %2654 = vmatprep.subr.bf16.mxu0 0
        %2655 = vmatpush1.bf16.msra.mxu0 0
        %2656 = vmatprep.subr.bf16.mxu0 0
        %2657 = vmatpush1.bf16.msra.mxu0 0
        %2658 = vmatprep.subr.bf16.mxu0 0
        %2659 = vmatpush1.bf16.msra.mxu0 0
        %2660 = vmatprep.subr.bf16.mxu0 0
        %2661 = vmatpush1.bf16.msra.mxu0 %v2644
        %2662 = vmatprep.subr.bf16.mxu0 0
        %2663 = vmatpush2.bf16.msra.mxu0 0
        %2664 = vmatprep.subr.bf16.mxu0 0
        %2665 = vmatpush2.bf16.msra.mxu0 0
        %2666 = vmatprep.subr.bf16.mxu0 0
        %2667 = vmatpush2.bf16.msra.mxu0 0
        %2668 = vmatprep.subr.bf16.mxu0 0
        %2669 = vmatpush2.bf16.msra.mxu0 0
        %2670 = vmatprep.subr.bf16.mxu0 0
        %2671 = vmatpush2.bf16.msra.mxu0 0
        %2672 = vmatprep.subr.bf16.mxu0 0
        %2673 = vmatpush2.bf16.msra.mxu0 0
        %2674 = vmatprep.subr.bf16.mxu0 0
        %2675 = vmatpush2.bf16.msra.mxu0 0
        %2676 = vmatprep.subr.bf16.mxu0 0
        %2677 = vmatpush2.bf16.msra.mxu0 0
        %2678 = vmatprep.mubr.bf16.mxu0 0
        %2679 = vmatmul.mubr.bf16.gmra.mxu0 %v2641
        %v2680 = vpop.f32.mrf.mxu0
        %v2681 = vadd.f32 0.0, %v2680
        %v2682 = vpop.f32.mrf.mxu0
        %v2683 = vpop.f32.mrf.mxu0
        %v2684 = vpop.f32.mrf.mxu0
        %2685 = vdwg.mxu0
        %v2687 = vsel %vm2498, %v2546, 0
        %v2690 = vsel %vm2550, %v2312, 0
        %2692 = vmatprep.subr.bf16.mxu0 0
        %2693 = vmatpush1.bf16.msra.mxu0 0
        %2694 = vmatprep.subr.bf16.mxu0 0
        %2695 = vmatpush1.bf16.msra.mxu0 0
        %2696 = vmatprep.subr.bf16.mxu0 0
        %2697 = vmatpush1.bf16.msra.mxu0 0
        %2698 = vmatprep.subr.bf16.mxu0 0
        %2699 = vmatpush1.bf16.msra.mxu0 0
        %2700 = vmatprep.subr.bf16.mxu0 0
        %2701 = vmatpush1.bf16.msra.mxu0 0
        %2702 = vmatprep.subr.bf16.mxu0 0
        %2703 = vmatpush1.bf16.msra.mxu0 0
        %2704 = vmatprep.subr.bf16.mxu0 0
        %2705 = vmatpush1.bf16.msra.mxu0 0
        %2706 = vmatprep.subr.bf16.mxu0 0
        %2707 = vmatpush1.bf16.msra.mxu0 %v2690
        %2708 = vmatprep.subr.bf16.mxu0 0
        %2709 = vmatpush2.bf16.msra.mxu0 0
        %2710 = vmatprep.subr.bf16.mxu0 0
        %2711 = vmatpush2.bf16.msra.mxu0 0
        %2712 = vmatprep.subr.bf16.mxu0 0
        %2713 = vmatpush2.bf16.msra.mxu0 0
        %2714 = vmatprep.subr.bf16.mxu0 0
        %2715 = vmatpush2.bf16.msra.mxu0 0
        %2716 = vmatprep.subr.bf16.mxu0 0
        %2717 = vmatpush2.bf16.msra.mxu0 0
        %2718 = vmatprep.subr.bf16.mxu0 0
        %2719 = vmatpush2.bf16.msra.mxu0 0
        %2720 = vmatprep.subr.bf16.mxu0 0
        %2721 = vmatpush2.bf16.msra.mxu0 0
        %2722 = vmatprep.subr.bf16.mxu0 0
        %2723 = vmatpush2.bf16.msra.mxu0 0
        %2724 = vmatprep.mubr.bf16.mxu0 0
        %2725 = vmatmul.mubr.bf16.gmra.mxu0 %v2687
        %v2726 = vpop.f32.mrf.mxu0
        %v2727 = vadd.f32 0.0, %v2726
        %v2728 = vpop.f32.mrf.mxu0
        %v2729 = vpop.f32.mrf.mxu0
        %v2730 = vpop.f32.mrf.mxu0
        %2731 = vdwg.mxu0
        %v2732 = vcombine.low %v2589, %v2681
        %v2733 = vcombine.high %v2589, %v2681
        %v2735 = vunpack.c.l.s4 1983009808
        %v2736 = vunpack.c.0.s8 %v2735
        %v2737 = vlaneseq
        %v2738 = vshrl.u32 %v2737, 7
        %v2739 = vsub.s32 %v2736, %v2738
        %v2740 = vrot.slane %v2732, %v2739
        %v2742 = vunpack.c.l.s4 1983009808
        %v2743 = vunpack.c.0.s8 %v2742
        %v2744 = vlaneseq
        %v2745 = vshrl.u32 %v2744, 7
        %v2746 = vsub.s32 %v2743, %v2745
        %v2747 = vrot.slane %v2733, %v2746
        %v2748 = vcombine.low %v2635, %v2727
        %v2749 = vcombine.high %v2635, %v2727
        %v2751 = vunpack.c.l.s4 1983009808
        %v2752 = vunpack.c.0.s8 %v2751
        %v2753 = vlaneseq
        %v2754 = vshrl.u32 %v2753, 7
        %v2755 = vsub.s32 %v2752, %v2754
        %v2756 = vrot.slane %v2748, %v2755
        %v2758 = vunpack.c.l.s4 1983009808
        %v2759 = vunpack.c.0.s8 %v2758
        %v2760 = vlaneseq
        %v2761 = vshrl.u32 %v2760, 7
        %v2762 = vsub.s32 %v2759, %v2761
        %v2763 = vrot.slane %v2749, %v2762
        %v2764 = vcombine.low %v2740, %v2756
        %v2765 = vcombine.high %v2740, %v2756
        %v2767 = vunpack.c.l.s4 1934713408
        %v2768 = vunpack.c.0.s8 %v2767
        %v2769 = vlaneseq
        %v2770 = vshrl.u32 %v2769, 7
        %v2771 = vsub.s32 %v2768, %v2770
        %v2772 = vrot.slane %v2764, %v2771
        %v2774 = vunpack.c.l.s4 1934713408
        %v2775 = vunpack.c.0.s8 %v2774
        %v2776 = vlaneseq
        %v2777 = vshrl.u32 %v2776, 7
        %v2778 = vsub.s32 %v2775, %v2777
        %v2779 = vrot.slane %v2765, %v2778
        %v2780 = vcombine.low %v2747, %v2763
        %v2781 = vcombine.high %v2747, %v2763
        %v2783 = vunpack.c.l.s4 1934713408
        %v2784 = vunpack.c.0.s8 %v2783
        %v2785 = vlaneseq
        %v2786 = vshrl.u32 %v2785, 7
        %v2787 = vsub.s32 %v2784, %v2786
        %v2788 = vrot.slane %v2780, %v2787
        %v2790 = vunpack.c.l.s4 1934713408
        %v2791 = vunpack.c.0.s8 %v2790
        %v2792 = vlaneseq
        %v2793 = vshrl.u32 %v2792, 7
        %v2794 = vsub.s32 %v2791, %v2793
        %v2795 = vrot.slane %v2781, %v2794
        %v2796 = vcombine.high %v2772, 0.0
        %v2797 = vcombine.high %v2779, 0.0
        %v2798 = vcombine.high %v2788, 0.0
        %v2799 = vcombine.high %v2795, 0.0
        %v2800 = vcombine.low %v2772, %v2779
        %v2802 = vunpack.c.l.s4 1983009808
        %v2803 = vunpack.c.0.s8 %v2802
        %v2804 = vlaneseq
        %v2805 = vshrl.u32 %v2804, 7
        %v2806 = vsub.s32 %v2803, %v2805
        %v2807 = vrot.slane %v2800, %v2806
        %v2808 = vcombine.low %v2796, %v2797
        %v2810 = vunpack.c.l.s4 1983009808
        %v2811 = vunpack.c.0.s8 %v2810
        %v2812 = vlaneseq
        %v2813 = vshrl.u32 %v2812, 7
        %v2814 = vsub.s32 %v2811, %v2813
        %v2815 = vrot.slane %v2808, %v2814
        %v2816 = vcombine.low %v2788, %v2795
        %v2818 = vunpack.c.l.s4 1983009808
        %v2819 = vunpack.c.0.s8 %v2818
        %v2820 = vlaneseq
        %v2821 = vshrl.u32 %v2820, 7
        %v2822 = vsub.s32 %v2819, %v2821
        %v2823 = vrot.slane %v2816, %v2822
        %v2824 = vcombine.low %v2798, %v2799
        %v2826 = vunpack.c.l.s4 1983009808
        %v2827 = vunpack.c.0.s8 %v2826
        %v2828 = vlaneseq
        %v2829 = vshrl.u32 %v2828, 7
        %v2830 = vsub.s32 %v2827, %v2829
        %v2831 = vrot.slane %v2824, %v2830
        %v2832 = vcombine.low %v2807, %v2815
        %v2833 = vcombine.high %v2807, %v2815
        %v2835 = vunpack.c.l.s4 1934713408
        %v2836 = vunpack.c.0.s8 %v2835
        %v2837 = vlaneseq
        %v2838 = vshrl.u32 %v2837, 7
        %v2839 = vsub.s32 %v2836, %v2838
        %v2840 = vrot.slane %v2832, %v2839
        %v2842 = vunpack.c.l.s4 1934713408
        %v2843 = vunpack.c.0.s8 %v2842
        %v2844 = vlaneseq
        %v2845 = vshrl.u32 %v2844, 7
        %v2846 = vsub.s32 %v2843, %v2845
        %v2847 = vrot.slane %v2833, %v2846
        %v2848 = vcombine.low %v2823, %v2831
        %v2849 = vcombine.high %v2823, %v2831
        %v2851 = vunpack.c.l.s4 1934713408
        %v2852 = vunpack.c.0.s8 %v2851
        %v2853 = vlaneseq
        %v2854 = vshrl.u32 %v2853, 7
        %v2855 = vsub.s32 %v2852, %v2854
        %v2856 = vrot.slane %v2848, %v2855
        %v2858 = vunpack.c.l.s4 1934713408
        %v2859 = vunpack.c.0.s8 %v2858
        %v2860 = vlaneseq
        %v2861 = vshrl.u32 %v2860, 7
        %v2862 = vsub.s32 %v2859, %v2861
        %v2863 = vrot.slane %v2849, %v2862
        %v2864 = vcombine.low %v2840, %v2856
        %v2865 = vcombine.high %v2840, %v2856
        %v2866 = vcombine.low %v2847, %v2863
        %v2867 = vcombine.high %v2847, %v2863
        %2869 = vrot.lane.b32.xlu0 %v2865, 32
        %v2870 = vpop.permute.xlu0 %2869
        %2873 = vrot.lane.b32.xlu0 %v2866, 64
        %v2874 = vpop.permute.xlu0 %2873
        %2877 = vrot.lane.b32.xlu0 %v2867, 96
        %v2878 = vpop.permute.xlu0 %2877
        %v2880 = vsel %vm2313, %v2864, %v2870
        %vm2881 = vcmask 523264
        %v2882 = vsel %vm2881, %v2880, %v2874
        %vm2883 = vcmask 785408
        %v2884 = vsel %vm2883, %v2882, %v2878
        %v2885 = vpack.c.bf16 %v2884, %v2884
        %v2886 = vld [vmem:[%s1241] sm:$0xf]
        %v2887 = vld [vmem:[%s1241 + $0x4] sm:$0xf]
        %v2888 = vld [vmem:[%s1241 + $0x8] sm:$0xf]
        %v2889 = vld [vmem:[%s1241 + $0xc] sm:$0xf]
        %v2890 = vld [vmem:[%s1241 + $0x10] sm:$0xf]
        %v2891 = vld [vmem:[%s1241 + $0x14] sm:$0xf]
        %v2892 = vld [vmem:[%s1241 + $0x18] sm:$0xf]
        %v2893 = vld [vmem:[%s1241 + $0x1c] sm:$0xf]
        %v2894 = vld [vmem:[%s1241 + $0x20] sm:$0xf]
        %v2895 = vld [vmem:[%s1241 + $0x24] sm:$0xf]
        %v2896 = vld [vmem:[%s1241 + $0x28] sm:$0xf]
        %v2897 = vld [vmem:[%s1241 + $0x2c] sm:$0xf]
        %v2898 = vld [vmem:[%s1241 + $0x30] sm:$0xf]
        %v2899 = vld [vmem:[%s1241 + $0x34] sm:$0xf]
        %v2900 = vld [vmem:[%s1241 + $0x38] sm:$0xf]
        %v2901 = vld [vmem:[%s1241 + $0x3c] sm:$0xf]
        %v2902 = vld [vmem:[%s1482] sm:$0x1]
        %v2904 = vlaneseq
        %v2905 = vshrl.u32 %v2904, 7
        %v2906 = vsub.s32 0, %v2905
        %v2907 = vrot.slane %v2902, %v2906
        %v2925 = vunpack.c.l.b16 %v2886
        %v2926 = vunpack.c.l.b16 %v2887
        %v2927 = vunpack.c.l.b16 %v2888
        %v2928 = vunpack.c.l.b16 %v2889
        %v2929 = vunpack.c.l.b16 %v2890
        %v2930 = vunpack.c.l.b16 %v2891
        %v2931 = vunpack.c.l.b16 %v2892
        %v2932 = vunpack.c.l.b16 %v2893
        %v2933 = vunpack.c.l.b16 %v2894
        %v2934 = vunpack.c.l.b16 %v2895
        %v2935 = vunpack.c.l.b16 %v2896
        %v2936 = vunpack.c.l.b16 %v2897
        %v2937 = vunpack.c.l.b16 %v2898
        %v2938 = vunpack.c.l.b16 %v2899
        %v2939 = vunpack.c.l.b16 %v2900
        %v2940 = vunpack.c.l.b16 %v2901
        %v2941 = vpack.c.b16 %v2926, %v2925
        %v2942 = vpack.c.b16 %v2928, %v2927
        %v2943 = vpack.c.b16 %v2930, %v2929
        %v2944 = vpack.c.b16 %v2932, %v2931
        %v2945 = vpack.c.b16 %v2934, %v2933
        %v2946 = vpack.c.b16 %v2936, %v2935
        %v2947 = vpack.c.b16 %v2938, %v2937
        %v2948 = vpack.c.b16 %v2940, %v2939
        %2957 = vmatprep.subr.bf16.mxu0 0
        %2958 = vmatpush1.bf16.msra.mxu0 %v2948
        %2959 = vmatprep.subr.bf16.mxu0 0
        %2960 = vmatpush1.bf16.msra.mxu0 %v2947
        %2961 = vmatprep.subr.bf16.mxu0 0
        %2962 = vmatpush1.bf16.msra.mxu0 %v2946
        %2963 = vmatprep.subr.bf16.mxu0 0
        %2964 = vmatpush1.bf16.msra.mxu0 %v2945
        %2965 = vmatprep.subr.bf16.mxu0 0
        %2966 = vmatpush1.bf16.msra.mxu0 %v2944
        %2967 = vmatprep.subr.bf16.mxu0 0
        %2968 = vmatpush1.bf16.msra.mxu0 %v2943
        %2969 = vmatprep.subr.bf16.mxu0 0
        %2970 = vmatpush1.bf16.msra.mxu0 %v2942
        %2971 = vmatprep.subr.bf16.mxu0 0
        %2972 = vmatpush1.bf16.msra.mxu0 %v2941
        %2973 = vmatprep.subr.bf16.mxu0 0
        %2974 = vmatpush2.bf16.msra.mxu0 0
        %2975 = vmatprep.subr.bf16.mxu0 0
        %2976 = vmatpush2.bf16.msra.mxu0 0
        %2977 = vmatprep.subr.bf16.mxu0 0
        %2978 = vmatpush2.bf16.msra.mxu0 0
        %2979 = vmatprep.subr.bf16.mxu0 0
        %2980 = vmatpush2.bf16.msra.mxu0 0
        %2981 = vmatprep.subr.bf16.mxu0 0
        %2982 = vmatpush2.bf16.msra.mxu0 0
        %2983 = vmatprep.subr.bf16.mxu0 0
        %2984 = vmatpush2.bf16.msra.mxu0 0
        %2985 = vmatprep.subr.bf16.mxu0 0
        %2986 = vmatpush2.bf16.msra.mxu0 0
        %2987 = vmatprep.subr.bf16.mxu0 0
        %2988 = vmatpush2.bf16.msra.mxu0 0
        %2989 = vmatprep.mubr.bf16.mxu0 0
        %2990 = vmatmul.mubr.bf16.gmra.mxu0 %v2885
        %v2991 = vpop.f32.mrf.mxu0
        %v2992 = vadd.f32 %v2907, %v2991
        %v2993 = vpop.f32.mrf.mxu0
        %v2994 = vpop.f32.mrf.mxu0
        %v2995 = vpop.f32.mrf.mxu0
        %2996 = vdwg.mxu0
        %v2997 = vadd.f32 %v2992, %v1526
        %2998 = vadd.xlane.f32.xlu0 %v2997
        %v2999 = vpop.xlane.xlu0 %2998
        %v3000 = vrcp.pop 128.0
        %v3001 = vmul.f32 %v2999, %v3000
        %v3002 = vsub.f32 %v2997, %v3001
        %v3003 = vmul.f32 %v3002, %v3002
        %3004 = vadd.xlane.f32.xlu0 %v3003
        %v3005 = vpop.xlane.xlu0 %3004
        %v3006 = vmul.f32 %v3005, %v3000
        %v3007 = vadd.f32 %v3006, 1e-12
        %v3008 = vrsqrt.pop %v3007
        %v3009 = vmul.f32 %v3002, %v3008
        %v3010 = vld [vmem:[%s1485] sm:$0x1]
        %v3012 = vlaneseq
        %v3013 = vshrl.u32 %v3012, 7
        %v3014 = vsub.s32 0, %v3013
        %v3015 = vrot.slane %v3010, %v3014
        %v3017 = vmul.f32 %v3009, %v3015
        %v3018 = vld [vmem:[%s1488] sm:$0x1]
        %v3020 = vlaneseq
        %v3021 = vshrl.u32 %v3020, 7
        %v3022 = vsub.s32 0, %v3021
        %v3023 = vrot.slane %v3018, %v3022
        %v3025 = vadd.f32 %v3017, %v3023
        %v3026 = vpack.c.bf16 %v3025, %v3025
        %v3027 = vpack.c.bf16 %v1527, %v1527
        %v3028 = vld [vmem:[%s1250] sm:$0xf]
        %v3029 = vld [vmem:[%s1250 + $0x4] sm:$0xf]
        %v3030 = vld [vmem:[%s1250 + $0x8] sm:$0xf]
        %v3031 = vld [vmem:[%s1250 + $0xc] sm:$0xf]
        %v3032 = vld [vmem:[%s1250 + $0x10] sm:$0xf]
        %v3033 = vld [vmem:[%s1250 + $0x14] sm:$0xf]
        %v3034 = vld [vmem:[%s1250 + $0x18] sm:$0xf]
        %v3035 = vld [vmem:[%s1250 + $0x1c] sm:$0xf]
        %v3036 = vld [vmem:[%s1250 + $0x20] sm:$0xf]
        %v3037 = vld [vmem:[%s1250 + $0x24] sm:$0xf]
        %v3038 = vld [vmem:[%s1250 + $0x28] sm:$0xf]
        %v3039 = vld [vmem:[%s1250 + $0x2c] sm:$0xf]
        %v3040 = vld [vmem:[%s1250 + $0x30] sm:$0xf]
        %v3041 = vld [vmem:[%s1250 + $0x34] sm:$0xf]
        %v3042 = vld [vmem:[%s1250 + $0x38] sm:$0xf]
        %v3043 = vld [vmem:[%s1250 + $0x3c] sm:$0xf]
        %v3044 = vld [vmem:[%s1491] sm:$0x1]
        %v3046 = vlaneseq
        %v3047 = vshrl.u32 %v3046, 7
        %v3048 = vsub.s32 0, %v3047
        %v3049 = vrot.slane %v3044, %v3048
        %v3067 = vunpack.c.l.b16 %v3028
        %v3068 = vunpack.c.l.b16 %v3029
        %v3069 = vunpack.c.l.b16 %v3030
        %v3070 = vunpack.c.l.b16 %v3031
        %v3071 = vunpack.c.l.b16 %v3032
        %v3072 = vunpack.c.l.b16 %v3033
        %v3073 = vunpack.c.l.b16 %v3034
        %v3074 = vunpack.c.l.b16 %v3035
        %v3075 = vunpack.c.l.b16 %v3036
        %v3076 = vunpack.c.l.b16 %v3037
        %v3077 = vunpack.c.l.b16 %v3038
        %v3078 = vunpack.c.l.b16 %v3039
        %v3079 = vunpack.c.l.b16 %v3040
        %v3080 = vunpack.c.l.b16 %v3041
        %v3081 = vunpack.c.l.b16 %v3042
        %v3082 = vunpack.c.l.b16 %v3043
        %v3083 = vpack.c.b16 %v3068, %v3067
        %v3084 = vpack.c.b16 %v3070, %v3069
        %v3085 = vpack.c.b16 %v3072, %v3071
        %v3086 = vpack.c.b16 %v3074, %v3073
        %v3087 = vpack.c.b16 %v3076, %v3075
        %v3088 = vpack.c.b16 %v3078, %v3077
        %v3089 = vpack.c.b16 %v3080, %v3079
        %v3090 = vpack.c.b16 %v3082, %v3081
        %3099 = vmatprep.subr.bf16.mxu0 0
        %3100 = vmatpush1.bf16.msra.mxu0 %v3090
        %3101 = vmatprep.subr.bf16.mxu0 0
        %3102 = vmatpush1.bf16.msra.mxu0 %v3089
        %3103 = vmatprep.subr.bf16.mxu0 0
        %3104 = vmatpush1.bf16.msra.mxu0 %v3088
        %3105 = vmatprep.subr.bf16.mxu0 0
        %3106 = vmatpush1.bf16.msra.mxu0 %v3087
        %3107 = vmatprep.subr.bf16.mxu0 0
        %3108 = vmatpush1.bf16.msra.mxu0 %v3086
        %3109 = vmatprep.subr.bf16.mxu0 0
        %3110 = vmatpush1.bf16.msra.mxu0 %v3085
        %3111 = vmatprep.subr.bf16.mxu0 0
        %3112 = vmatpush1.bf16.msra.mxu0 %v3084
        %3113 = vmatprep.subr.bf16.mxu0 0
        %3114 = vmatpush1.bf16.msra.mxu0 %v3083
        %3115 = vmatprep.subr.bf16.mxu0 0
        %3116 = vmatpush2.bf16.msra.mxu0 0
        %3117 = vmatprep.subr.bf16.mxu0 0
        %3118 = vmatpush2.bf16.msra.mxu0 0
        %3119 = vmatprep.subr.bf16.mxu0 0
        %3120 = vmatpush2.bf16.msra.mxu0 0
        %3121 = vmatprep.subr.bf16.mxu0 0
        %3122 = vmatpush2.bf16.msra.mxu0 0
        %3123 = vmatprep.subr.bf16.mxu0 0
        %3124 = vmatpush2.bf16.msra.mxu0 0
        %3125 = vmatprep.subr.bf16.mxu0 0
        %3126 = vmatpush2.bf16.msra.mxu0 0
        %3127 = vmatprep.subr.bf16.mxu0 0
        %3128 = vmatpush2.bf16.msra.mxu0 0
        %3129 = vmatprep.subr.bf16.mxu0 0
        %3130 = vmatpush2.bf16.msra.mxu0 0
        %3131 = vmatprep.mubr.bf16.mxu0 0
        %3132 = vmatmul.mubr.bf16.gmra.mxu0 %v3026
        %v3133 = vpop.f32.mrf.mxu0
        %v3134 = vadd.f32 %v3049, %v3133
        %v3135 = vpop.f32.mrf.mxu0
        %v3136 = vpop.f32.mrf.mxu0
        %v3137 = vpop.f32.mrf.mxu0
        %3138 = vdwg.mxu0
        %v3139 = vld [vmem:[%s1259] sm:$0xf]
        %v3140 = vld [vmem:[%s1259 + $0x4] sm:$0xf]
        %v3141 = vld [vmem:[%s1259 + $0x8] sm:$0xf]
        %v3142 = vld [vmem:[%s1259 + $0xc] sm:$0xf]
        %v3143 = vld [vmem:[%s1259 + $0x10] sm:$0xf]
        %v3144 = vld [vmem:[%s1259 + $0x14] sm:$0xf]
        %v3145 = vld [vmem:[%s1259 + $0x18] sm:$0xf]
        %v3146 = vld [vmem:[%s1259 + $0x1c] sm:$0xf]
        %v3147 = vld [vmem:[%s1259 + $0x20] sm:$0xf]
        %v3148 = vld [vmem:[%s1259 + $0x24] sm:$0xf]
        %v3149 = vld [vmem:[%s1259 + $0x28] sm:$0xf]
        %v3150 = vld [vmem:[%s1259 + $0x2c] sm:$0xf]
        %v3151 = vld [vmem:[%s1259 + $0x30] sm:$0xf]
        %v3152 = vld [vmem:[%s1259 + $0x34] sm:$0xf]
        %v3153 = vld [vmem:[%s1259 + $0x38] sm:$0xf]
        %v3154 = vld [vmem:[%s1259 + $0x3c] sm:$0xf]
        %v3155 = vld [vmem:[%s1494] sm:$0x1]
        %v3157 = vlaneseq
        %v3158 = vshrl.u32 %v3157, 7
        %v3159 = vsub.s32 0, %v3158
        %v3160 = vrot.slane %v3155, %v3159
        %v3178 = vunpack.c.l.b16 %v3139
        %v3179 = vunpack.c.l.b16 %v3140
        %v3180 = vunpack.c.l.b16 %v3141
        %v3181 = vunpack.c.l.b16 %v3142
        %v3182 = vunpack.c.l.b16 %v3143
        %v3183 = vunpack.c.l.b16 %v3144
        %v3184 = vunpack.c.l.b16 %v3145
        %v3185 = vunpack.c.l.b16 %v3146
        %v3186 = vunpack.c.l.b16 %v3147
        %v3187 = vunpack.c.l.b16 %v3148
        %v3188 = vunpack.c.l.b16 %v3149
        %v3189 = vunpack.c.l.b16 %v3150
        %v3190 = vunpack.c.l.b16 %v3151
        %v3191 = vunpack.c.l.b16 %v3152
        %v3192 = vunpack.c.l.b16 %v3153
        %v3193 = vunpack.c.l.b16 %v3154
        %v3194 = vpack.c.b16 %v3179, %v3178
        %v3195 = vpack.c.b16 %v3181, %v3180
        %v3196 = vpack.c.b16 %v3183, %v3182
        %v3197 = vpack.c.b16 %v3185, %v3184
        %v3198 = vpack.c.b16 %v3187, %v3186
        %v3199 = vpack.c.b16 %v3189, %v3188
        %v3200 = vpack.c.b16 %v3191, %v3190
        %v3201 = vpack.c.b16 %v3193, %v3192
        %3210 = vmatprep.subr.bf16.mxu0 0
        %3211 = vmatpush1.bf16.msra.mxu0 %v3201
        %3212 = vmatprep.subr.bf16.mxu0 0
        %3213 = vmatpush1.bf16.msra.mxu0 %v3200
        %3214 = vmatprep.subr.bf16.mxu0 0
        %3215 = vmatpush1.bf16.msra.mxu0 %v3199
        %3216 = vmatprep.subr.bf16.mxu0 0
        %3217 = vmatpush1.bf16.msra.mxu0 %v3198
        %3218 = vmatprep.subr.bf16.mxu0 0
        %3219 = vmatpush1.bf16.msra.mxu0 %v3197
        %3220 = vmatprep.subr.bf16.mxu0 0
        %3221 = vmatpush1.bf16.msra.mxu0 %v3196
        %3222 = vmatprep.subr.bf16.mxu0 0
        %3223 = vmatpush1.bf16.msra.mxu0 %v3195
        %3224 = vmatprep.subr.bf16.mxu0 0
        %3225 = vmatpush1.bf16.msra.mxu0 %v3194
        %3226 = vmatprep.subr.bf16.mxu0 0
        %3227 = vmatpush2.bf16.msra.mxu0 0
        %3228 = vmatprep.subr.bf16.mxu0 0
        %3229 = vmatpush2.bf16.msra.mxu0 0
        %3230 = vmatprep.subr.bf16.mxu0 0
        %3231 = vmatpush2.bf16.msra.mxu0 0
        %3232 = vmatprep.subr.bf16.mxu0 0
        %3233 = vmatpush2.bf16.msra.mxu0 0
        %3234 = vmatprep.subr.bf16.mxu0 0
        %3235 = vmatpush2.bf16.msra.mxu0 0
        %3236 = vmatprep.subr.bf16.mxu0 0
        %3237 = vmatpush2.bf16.msra.mxu0 0
        %3238 = vmatprep.subr.bf16.mxu0 0
        %3239 = vmatpush2.bf16.msra.mxu0 0
        %3240 = vmatprep.subr.bf16.mxu0 0
        %3241 = vmatpush2.bf16.msra.mxu0 0
        %3242 = vmatprep.mubr.bf16.mxu0 0
        %3243 = vmatmul.mubr.bf16.gmra.mxu0 %v3027
        %v3244 = vpop.f32.mrf.mxu0
        %v3245 = vadd.f32 %v3160, %v3244
        %v3246 = vpop.f32.mrf.mxu0
        %v3247 = vpop.f32.mrf.mxu0
        %v3248 = vpop.f32.mrf.mxu0
        %3249 = vdwg.mxu0
        %v3250 = vld [vmem:[%s1268] sm:$0xf]
        %v3251 = vld [vmem:[%s1268 + $0x4] sm:$0xf]
        %v3252 = vld [vmem:[%s1268 + $0x8] sm:$0xf]
        %v3253 = vld [vmem:[%s1268 + $0xc] sm:$0xf]
        %v3254 = vld [vmem:[%s1268 + $0x10] sm:$0xf]
        %v3255 = vld [vmem:[%s1268 + $0x14] sm:$0xf]
        %v3256 = vld [vmem:[%s1268 + $0x18] sm:$0xf]
        %v3257 = vld [vmem:[%s1268 + $0x1c] sm:$0xf]
        %v3258 = vld [vmem:[%s1268 + $0x20] sm:$0xf]
        %v3259 = vld [vmem:[%s1268 + $0x24] sm:$0xf]
        %v3260 = vld [vmem:[%s1268 + $0x28] sm:$0xf]
        %v3261 = vld [vmem:[%s1268 + $0x2c] sm:$0xf]
        %v3262 = vld [vmem:[%s1268 + $0x30] sm:$0xf]
        %v3263 = vld [vmem:[%s1268 + $0x34] sm:$0xf]
        %v3264 = vld [vmem:[%s1268 + $0x38] sm:$0xf]
        %v3265 = vld [vmem:[%s1268 + $0x3c] sm:$0xf]
        %v3266 = vld [vmem:[%s1497] sm:$0x1]
        %v3268 = vlaneseq
        %v3269 = vshrl.u32 %v3268, 7
        %v3270 = vsub.s32 0, %v3269
        %v3271 = vrot.slane %v3266, %v3270
        %v3289 = vunpack.c.l.b16 %v3250
        %v3290 = vunpack.c.l.b16 %v3251
        %v3291 = vunpack.c.l.b16 %v3252
        %v3292 = vunpack.c.l.b16 %v3253
        %v3293 = vunpack.c.l.b16 %v3254
        %v3294 = vunpack.c.l.b16 %v3255
        %v3295 = vunpack.c.l.b16 %v3256
        %v3296 = vunpack.c.l.b16 %v3257
        %v3297 = vunpack.c.l.b16 %v3258
        %v3298 = vunpack.c.l.b16 %v3259
        %v3299 = vunpack.c.l.b16 %v3260
        %v3300 = vunpack.c.l.b16 %v3261
        %v3301 = vunpack.c.l.b16 %v3262
        %v3302 = vunpack.c.l.b16 %v3263
        %v3303 = vunpack.c.l.b16 %v3264
        %v3304 = vunpack.c.l.b16 %v3265
        %v3305 = vpack.c.b16 %v3290, %v3289
        %v3306 = vpack.c.b16 %v3292, %v3291
        %v3307 = vpack.c.b16 %v3294, %v3293
        %v3308 = vpack.c.b16 %v3296, %v3295
        %v3309 = vpack.c.b16 %v3298, %v3297
        %v3310 = vpack.c.b16 %v3300, %v3299
        %v3311 = vpack.c.b16 %v3302, %v3301
        %v3312 = vpack.c.b16 %v3304, %v3303
        %3321 = vmatprep.subr.bf16.mxu0 0
        %3322 = vmatpush1.bf16.msra.mxu0 %v3312
        %3323 = vmatprep.subr.bf16.mxu0 0
        %3324 = vmatpush1.bf16.msra.mxu0 %v3311
        %3325 = vmatprep.subr.bf16.mxu0 0
        %3326 = vmatpush1.bf16.msra.mxu0 %v3310
        %3327 = vmatprep.subr.bf16.mxu0 0
        %3328 = vmatpush1.bf16.msra.mxu0 %v3309
        %3329 = vmatprep.subr.bf16.mxu0 0
        %3330 = vmatpush1.bf16.msra.mxu0 %v3308
        %3331 = vmatprep.subr.bf16.mxu0 0
        %3332 = vmatpush1.bf16.msra.mxu0 %v3307
        %3333 = vmatprep.subr.bf16.mxu0 0
        %3334 = vmatpush1.bf16.msra.mxu0 %v3306
        %3335 = vmatprep.subr.bf16.mxu0 0
        %3336 = vmatpush1.bf16.msra.mxu0 %v3305
        %3337 = vmatprep.subr.bf16.mxu0 0
        %3338 = vmatpush2.bf16.msra.mxu0 0
        %3339 = vmatprep.subr.bf16.mxu0 0
        %3340 = vmatpush2.bf16.msra.mxu0 0
        %3341 = vmatprep.subr.bf16.mxu0 0
        %3342 = vmatpush2.bf16.msra.mxu0 0
        %3343 = vmatprep.subr.bf16.mxu0 0
        %3344 = vmatpush2.bf16.msra.mxu0 0
        %3345 = vmatprep.subr.bf16.mxu0 0
        %3346 = vmatpush2.bf16.msra.mxu0 0
        %3347 = vmatprep.subr.bf16.mxu0 0
        %3348 = vmatpush2.bf16.msra.mxu0 0
        %3349 = vmatprep.subr.bf16.mxu0 0
        %3350 = vmatpush2.bf16.msra.mxu0 0
        %3351 = vmatprep.subr.bf16.mxu0 0
        %3352 = vmatpush2.bf16.msra.mxu0 0
        %3353 = vmatprep.mubr.bf16.mxu0 0
        %3354 = vmatmul.mubr.bf16.gmra.mxu0 %v3027
        %v3355 = vpop.f32.mrf.mxu0
        %v3356 = vadd.f32 %v3271, %v3355
        %v3357 = vpop.f32.mrf.mxu0
        %v3358 = vpop.f32.mrf.mxu0
        %v3359 = vpop.f32.mrf.mxu0
        %3360 = vdwg.mxu0
        %v3361 = vmul.f32 %v3134, 0.17677669
        %3363 = vrot.lane.b32.xlu0 %v3361, 96
        %v3364 = vpop.permute.xlu0 %3363
        %3366 = vrot.lane.b32.xlu0 %v3361, 64
        %v3367 = vpop.permute.xlu0 %3366
        %3369 = vrot.lane.b32.xlu0 %v3361, 32
        %v3370 = vpop.permute.xlu0 %3369
        %v3372 = vcombine.low %v3361, %v3367
        %v3373 = vcombine.high %v3361, %v3367
        %v3375 = vunpack.c.l.s4 1983009808
        %v3376 = vunpack.c.0.s8 %v3375
        %v3377 = vlaneseq
        %v3378 = vshrl.u32 %v3377, 7
        %v3379 = vsub.s32 %v3376, %v3378
        %v3380 = vrot.slane %v3372, %v3379
        %v3382 = vunpack.c.l.s4 1983009808
        %v3383 = vunpack.c.0.s8 %v3382
        %v3384 = vlaneseq
        %v3385 = vshrl.u32 %v3384, 7
        %v3386 = vsub.s32 %v3383, %v3385
        %v3387 = vrot.slane %v3373, %v3386
        %v3388 = vcombine.low %v3364, %v3370
        %v3389 = vcombine.high %v3364, %v3370
        %v3391 = vunpack.c.l.s4 1983009808
        %v3392 = vunpack.c.0.s8 %v3391
        %v3393 = vlaneseq
        %v3394 = vshrl.u32 %v3393, 7
        %v3395 = vsub.s32 %v3392, %v3394
        %v3396 = vrot.slane %v3388, %v3395
        %v3398 = vunpack.c.l.s4 1983009808
        %v3399 = vunpack.c.0.s8 %v3398
        %v3400 = vlaneseq
        %v3401 = vshrl.u32 %v3400, 7
        %v3402 = vsub.s32 %v3399, %v3401
        %v3403 = vrot.slane %v3389, %v3402
        %v3404 = vcombine.low %v3380, %v3396
        %v3405 = vcombine.high %v3380, %v3396
        %v3407 = vunpack.c.l.s4 1934713408
        %v3408 = vunpack.c.0.s8 %v3407
        %v3409 = vlaneseq
        %v3410 = vshrl.u32 %v3409, 7
        %v3411 = vsub.s32 %v3408, %v3410
        %v3412 = vrot.slane %v3404, %v3411
        %v3414 = vunpack.c.l.s4 1934713408
        %v3415 = vunpack.c.0.s8 %v3414
        %v3416 = vlaneseq
        %v3417 = vshrl.u32 %v3416, 7
        %v3418 = vsub.s32 %v3415, %v3417
        %v3419 = vrot.slane %v3405, %v3418
        %v3420 = vcombine.low %v3387, %v3403
        %v3421 = vcombine.high %v3387, %v3403
        %v3423 = vunpack.c.l.s4 1934713408
        %v3424 = vunpack.c.0.s8 %v3423
        %v3425 = vlaneseq
        %v3426 = vshrl.u32 %v3425, 7
        %v3427 = vsub.s32 %v3424, %v3426
        %v3428 = vrot.slane %v3420, %v3427
        %v3430 = vunpack.c.l.s4 1934713408
        %v3431 = vunpack.c.0.s8 %v3430
        %v3432 = vlaneseq
        %v3433 = vshrl.u32 %v3432, 7
        %v3434 = vsub.s32 %v3431, %v3433
        %v3435 = vrot.slane %v3421, %v3434
        %v3436 = vcombine.high %v3412, 0.0
        %v3437 = vcombine.high %v3419, 0.0
        %v3438 = vcombine.high %v3428, 0.0
        %v3439 = vcombine.high %v3435, 0.0
        %v3440 = vcombine.low %v3412, %v3419
        %v3442 = vunpack.c.l.s4 1983009808
        %v3443 = vunpack.c.0.s8 %v3442
        %v3444 = vlaneseq
        %v3445 = vshrl.u32 %v3444, 7
        %v3446 = vsub.s32 %v3443, %v3445
        %v3447 = vrot.slane %v3440, %v3446
        %v3448 = vcombine.low %v3436, %v3437
        %v3450 = vunpack.c.l.s4 1983009808
        %v3451 = vunpack.c.0.s8 %v3450
        %v3452 = vlaneseq
        %v3453 = vshrl.u32 %v3452, 7
        %v3454 = vsub.s32 %v3451, %v3453
        %v3455 = vrot.slane %v3448, %v3454
        %v3456 = vcombine.low %v3428, %v3435
        %v3458 = vunpack.c.l.s4 1983009808
        %v3459 = vunpack.c.0.s8 %v3458
        %v3460 = vlaneseq
        %v3461 = vshrl.u32 %v3460, 7
        %v3462 = vsub.s32 %v3459, %v3461
        %v3463 = vrot.slane %v3456, %v3462
        %v3464 = vcombine.low %v3438, %v3439
        %v3466 = vunpack.c.l.s4 1983009808
        %v3467 = vunpack.c.0.s8 %v3466
        %v3468 = vlaneseq
        %v3469 = vshrl.u32 %v3468, 7
        %v3470 = vsub.s32 %v3467, %v3469
        %v3471 = vrot.slane %v3464, %v3470
        %v3472 = vcombine.low %v3447, %v3455
        %v3473 = vcombine.high %v3447, %v3455
        %v3475 = vunpack.c.l.s4 1934713408
        %v3476 = vunpack.c.0.s8 %v3475
        %v3477 = vlaneseq
        %v3478 = vshrl.u32 %v3477, 7
        %v3479 = vsub.s32 %v3476, %v3478
        %v3480 = vrot.slane %v3472, %v3479
        %v3482 = vunpack.c.l.s4 1934713408
        %v3483 = vunpack.c.0.s8 %v3482
        %v3484 = vlaneseq
        %v3485 = vshrl.u32 %v3484, 7
        %v3486 = vsub.s32 %v3483, %v3485
        %v3487 = vrot.slane %v3473, %v3486
        %v3488 = vcombine.low %v3463, %v3471
        %v3489 = vcombine.high %v3463, %v3471
        %v3491 = vunpack.c.l.s4 1934713408
        %v3492 = vunpack.c.0.s8 %v3491
        %v3493 = vlaneseq
        %v3494 = vshrl.u32 %v3493, 7
        %v3495 = vsub.s32 %v3492, %v3494
        %v3496 = vrot.slane %v3488, %v3495
        %v3498 = vunpack.c.l.s4 1934713408
        %v3499 = vunpack.c.0.s8 %v3498
        %v3500 = vlaneseq
        %v3501 = vshrl.u32 %v3500, 7
        %v3502 = vsub.s32 %v3499, %v3501
        %v3503 = vrot.slane %v3489, %v3502
        %v3504 = vcombine.low %v3480, %v3496
        %v3505 = vcombine.high %v3480, %v3496
        %v3506 = vcombine.low %v3487, %v3503
        %v3507 = vcombine.high %v3487, %v3503
        %v3508 = vpack.c.bf16 %v3504, %v3504
        %v3509 = vpack.c.bf16 %v3505, %v3505
        %v3510 = vpack.c.bf16 %v3506, %v3506
        %v3511 = vpack.c.bf16 %v3507, %v3507
        %3513 = vrot.lane.b32.xlu0 %v3245, 96
        %v3514 = vpop.permute.xlu0 %3513
        %3516 = vrot.lane.b32.xlu0 %v3245, 64
        %v3517 = vpop.permute.xlu0 %3516
        %3519 = vrot.lane.b32.xlu0 %v3245, 32
        %v3520 = vpop.permute.xlu0 %3519
        %v3522 = vcombine.low %v3245, %v3517
        %v3523 = vcombine.high %v3245, %v3517
        %v3525 = vunpack.c.l.s4 1983009808
        %v3526 = vunpack.c.0.s8 %v3525
        %v3527 = vlaneseq
        %v3528 = vshrl.u32 %v3527, 7
        %v3529 = vsub.s32 %v3526, %v3528
        %v3530 = vrot.slane %v3522, %v3529
        %v3532 = vunpack.c.l.s4 1983009808
        %v3533 = vunpack.c.0.s8 %v3532
        %v3534 = vlaneseq
        %v3535 = vshrl.u32 %v3534, 7
        %v3536 = vsub.s32 %v3533, %v3535
        %v3537 = vrot.slane %v3523, %v3536
        %v3538 = vcombine.low %v3514, %v3520
        %v3539 = vcombine.high %v3514, %v3520
        %v3541 = vunpack.c.l.s4 1983009808
        %v3542 = vunpack.c.0.s8 %v3541
        %v3543 = vlaneseq
        %v3544 = vshrl.u32 %v3543, 7
        %v3545 = vsub.s32 %v3542, %v3544
        %v3546 = vrot.slane %v3538, %v3545
        %v3548 = vunpack.c.l.s4 1983009808
        %v3549 = vunpack.c.0.s8 %v3548
        %v3550 = vlaneseq
        %v3551 = vshrl.u32 %v3550, 7
        %v3552 = vsub.s32 %v3549, %v3551
        %v3553 = vrot.slane %v3539, %v3552
        %v3554 = vcombine.low %v3530, %v3546
        %v3555 = vcombine.high %v3530, %v3546
        %v3557 = vunpack.c.l.s4 1934713408
        %v3558 = vunpack.c.0.s8 %v3557
        %v3559 = vlaneseq
        %v3560 = vshrl.u32 %v3559, 7
        %v3561 = vsub.s32 %v3558, %v3560
        %v3562 = vrot.slane %v3554, %v3561
        %v3564 = vunpack.c.l.s4 1934713408
        %v3565 = vunpack.c.0.s8 %v3564
        %v3566 = vlaneseq
        %v3567 = vshrl.u32 %v3566, 7
        %v3568 = vsub.s32 %v3565, %v3567
        %v3569 = vrot.slane %v3555, %v3568
        %v3570 = vcombine.low %v3537, %v3553
        %v3571 = vcombine.high %v3537, %v3553
        %v3573 = vunpack.c.l.s4 1934713408
        %v3574 = vunpack.c.0.s8 %v3573
        %v3575 = vlaneseq
        %v3576 = vshrl.u32 %v3575, 7
        %v3577 = vsub.s32 %v3574, %v3576
        %v3578 = vrot.slane %v3570, %v3577
        %v3580 = vunpack.c.l.s4 1934713408
        %v3581 = vunpack.c.0.s8 %v3580
        %v3582 = vlaneseq
        %v3583 = vshrl.u32 %v3582, 7
        %v3584 = vsub.s32 %v3581, %v3583
        %v3585 = vrot.slane %v3571, %v3584
        %v3586 = vcombine.high %v3562, 0.0
        %v3587 = vcombine.high %v3569, 0.0
        %v3588 = vcombine.high %v3578, 0.0
        %v3589 = vcombine.high %v3585, 0.0
        %v3590 = vcombine.low %v3562, %v3569
        %v3592 = vunpack.c.l.s4 1983009808
        %v3593 = vunpack.c.0.s8 %v3592
        %v3594 = vlaneseq
        %v3595 = vshrl.u32 %v3594, 7
        %v3596 = vsub.s32 %v3593, %v3595
        %v3597 = vrot.slane %v3590, %v3596
        %v3598 = vcombine.low %v3586, %v3587
        %v3600 = vunpack.c.l.s4 1983009808
        %v3601 = vunpack.c.0.s8 %v3600
        %v3602 = vlaneseq
        %v3603 = vshrl.u32 %v3602, 7
        %v3604 = vsub.s32 %v3601, %v3603
        %v3605 = vrot.slane %v3598, %v3604
        %v3606 = vcombine.low %v3578, %v3585
        %v3608 = vunpack.c.l.s4 1983009808
        %v3609 = vunpack.c.0.s8 %v3608
        %v3610 = vlaneseq
        %v3611 = vshrl.u32 %v3610, 7
        %v3612 = vsub.s32 %v3609, %v3611
        %v3613 = vrot.slane %v3606, %v3612
        %v3614 = vcombine.low %v3588, %v3589
        %v3616 = vunpack.c.l.s4 1983009808
        %v3617 = vunpack.c.0.s8 %v3616
        %v3618 = vlaneseq
        %v3619 = vshrl.u32 %v3618, 7
        %v3620 = vsub.s32 %v3617, %v3619
        %v3621 = vrot.slane %v3614, %v3620
        %v3622 = vcombine.low %v3597, %v3605
        %v3623 = vcombine.high %v3597, %v3605
        %v3625 = vunpack.c.l.s4 1934713408
        %v3626 = vunpack.c.0.s8 %v3625
        %v3627 = vlaneseq
        %v3628 = vshrl.u32 %v3627, 7
        %v3629 = vsub.s32 %v3626, %v3628
        %v3630 = vrot.slane %v3622, %v3629
        %v3632 = vunpack.c.l.s4 1934713408
        %v3633 = vunpack.c.0.s8 %v3632
        %v3634 = vlaneseq
        %v3635 = vshrl.u32 %v3634, 7
        %v3636 = vsub.s32 %v3633, %v3635
        %v3637 = vrot.slane %v3623, %v3636
        %v3638 = vcombine.low %v3613, %v3621
        %v3639 = vcombine.high %v3613, %v3621
        %v3641 = vunpack.c.l.s4 1934713408
        %v3642 = vunpack.c.0.s8 %v3641
        %v3643 = vlaneseq
        %v3644 = vshrl.u32 %v3643, 7
        %v3645 = vsub.s32 %v3642, %v3644
        %v3646 = vrot.slane %v3638, %v3645
        %v3648 = vunpack.c.l.s4 1934713408
        %v3649 = vunpack.c.0.s8 %v3648
        %v3650 = vlaneseq
        %v3651 = vshrl.u32 %v3650, 7
        %v3652 = vsub.s32 %v3649, %v3651
        %v3653 = vrot.slane %v3639, %v3652
        %v3654 = vcombine.low %v3630, %v3646
        %v3655 = vcombine.high %v3630, %v3646
        %v3656 = vcombine.low %v3637, %v3653
        %v3657 = vcombine.high %v3637, %v3653
        %v3658 = vpack.c.bf16 %v3654, %v3654
        %v3659 = vpack.c.bf16 %v3655, %v3655
        %v3660 = vpack.c.bf16 %v3656, %v3656
        %v3661 = vpack.c.bf16 %v3657, %v3657
        %3663 = vrot.lane.b32.xlu0 %v3356, 96
        %v3664 = vpop.permute.xlu0 %3663
        %3666 = vrot.lane.b32.xlu0 %v3356, 64
        %v3667 = vpop.permute.xlu0 %3666
        %3669 = vrot.lane.b32.xlu0 %v3356, 32
        %v3670 = vpop.permute.xlu0 %3669
        %v3672 = vcombine.low %v3356, %v3667
        %v3673 = vcombine.high %v3356, %v3667
        %v3675 = vunpack.c.l.s4 1983009808
        %v3676 = vunpack.c.0.s8 %v3675
        %v3677 = vlaneseq
        %v3678 = vshrl.u32 %v3677, 7
        %v3679 = vsub.s32 %v3676, %v3678
        %v3680 = vrot.slane %v3672, %v3679
        %v3682 = vunpack.c.l.s4 1983009808
        %v3683 = vunpack.c.0.s8 %v3682
        %v3684 = vlaneseq
        %v3685 = vshrl.u32 %v3684, 7
        %v3686 = vsub.s32 %v3683, %v3685
        %v3687 = vrot.slane %v3673, %v3686
        %v3688 = vcombine.low %v3664, %v3670
        %v3689 = vcombine.high %v3664, %v3670
        %v3691 = vunpack.c.l.s4 1983009808
        %v3692 = vunpack.c.0.s8 %v3691
        %v3693 = vlaneseq
        %v3694 = vshrl.u32 %v3693, 7
        %v3695 = vsub.s32 %v3692, %v3694
        %v3696 = vrot.slane %v3688, %v3695
        %v3698 = vunpack.c.l.s4 1983009808
        %v3699 = vunpack.c.0.s8 %v3698
        %v3700 = vlaneseq
        %v3701 = vshrl.u32 %v3700, 7
        %v3702 = vsub.s32 %v3699, %v3701
        %v3703 = vrot.slane %v3689, %v3702
        %v3704 = vcombine.low %v3680, %v3696
        %v3705 = vcombine.high %v3680, %v3696
        %v3707 = vunpack.c.l.s4 1934713408
        %v3708 = vunpack.c.0.s8 %v3707
        %v3709 = vlaneseq
        %v3710 = vshrl.u32 %v3709, 7
        %v3711 = vsub.s32 %v3708, %v3710
        %v3712 = vrot.slane %v3704, %v3711
        %v3714 = vunpack.c.l.s4 1934713408
        %v3715 = vunpack.c.0.s8 %v3714
        %v3716 = vlaneseq
        %v3717 = vshrl.u32 %v3716, 7
        %v3718 = vsub.s32 %v3715, %v3717
        %v3719 = vrot.slane %v3705, %v3718
        %v3720 = vcombine.low %v3687, %v3703
        %v3721 = vcombine.high %v3687, %v3703
        %v3723 = vunpack.c.l.s4 1934713408
        %v3724 = vunpack.c.0.s8 %v3723
        %v3725 = vlaneseq
        %v3726 = vshrl.u32 %v3725, 7
        %v3727 = vsub.s32 %v3724, %v3726
        %v3728 = vrot.slane %v3720, %v3727
        %v3730 = vunpack.c.l.s4 1934713408
        %v3731 = vunpack.c.0.s8 %v3730
        %v3732 = vlaneseq
        %v3733 = vshrl.u32 %v3732, 7
        %v3734 = vsub.s32 %v3731, %v3733
        %v3735 = vrot.slane %v3721, %v3734
        %v3736 = vcombine.high %v3712, 0.0
        %v3737 = vcombine.high %v3719, 0.0
        %v3738 = vcombine.high %v3728, 0.0
        %v3739 = vcombine.high %v3735, 0.0
        %v3740 = vcombine.low %v3712, %v3719
        %v3742 = vunpack.c.l.s4 1983009808
        %v3743 = vunpack.c.0.s8 %v3742
        %v3744 = vlaneseq
        %v3745 = vshrl.u32 %v3744, 7
        %v3746 = vsub.s32 %v3743, %v3745
        %v3747 = vrot.slane %v3740, %v3746
        %v3748 = vcombine.low %v3736, %v3737
        %v3750 = vunpack.c.l.s4 1983009808
        %v3751 = vunpack.c.0.s8 %v3750
        %v3752 = vlaneseq
        %v3753 = vshrl.u32 %v3752, 7
        %v3754 = vsub.s32 %v3751, %v3753
        %v3755 = vrot.slane %v3748, %v3754
        %v3756 = vcombine.low %v3728, %v3735
        %v3758 = vunpack.c.l.s4 1983009808
        %v3759 = vunpack.c.0.s8 %v3758
        %v3760 = vlaneseq
        %v3761 = vshrl.u32 %v3760, 7
        %v3762 = vsub.s32 %v3759, %v3761
        %v3763 = vrot.slane %v3756, %v3762
        %v3764 = vcombine.low %v3738, %v3739
        %v3766 = vunpack.c.l.s4 1983009808
        %v3767 = vunpack.c.0.s8 %v3766
        %v3768 = vlaneseq
        %v3769 = vshrl.u32 %v3768, 7
        %v3770 = vsub.s32 %v3767, %v3769
        %v3771 = vrot.slane %v3764, %v3770
        %v3772 = vcombine.low %v3747, %v3755
        %v3773 = vcombine.high %v3747, %v3755
        %v3775 = vunpack.c.l.s4 1934713408
        %v3776 = vunpack.c.0.s8 %v3775
        %v3777 = vlaneseq
        %v3778 = vshrl.u32 %v3777, 7
        %v3779 = vsub.s32 %v3776, %v3778
        %v3780 = vrot.slane %v3772, %v3779
        %v3782 = vunpack.c.l.s4 1934713408
        %v3783 = vunpack.c.0.s8 %v3782
        %v3784 = vlaneseq
        %v3785 = vshrl.u32 %v3784, 7
        %v3786 = vsub.s32 %v3783, %v3785
        %v3787 = vrot.slane %v3773, %v3786
        %v3788 = vcombine.low %v3763, %v3771
        %v3789 = vcombine.high %v3763, %v3771
        %v3791 = vunpack.c.l.s4 1934713408
        %v3792 = vunpack.c.0.s8 %v3791
        %v3793 = vlaneseq
        %v3794 = vshrl.u32 %v3793, 7
        %v3795 = vsub.s32 %v3792, %v3794
        %v3796 = vrot.slane %v3788, %v3795
        %v3798 = vunpack.c.l.s4 1934713408
        %v3799 = vunpack.c.0.s8 %v3798
        %v3800 = vlaneseq
        %v3801 = vshrl.u32 %v3800, 7
        %v3802 = vsub.s32 %v3799, %v3801
        %v3803 = vrot.slane %v3789, %v3802
        %v3804 = vcombine.low %v3780, %v3796
        %v3805 = vcombine.high %v3780, %v3796
        %v3806 = vcombine.low %v3787, %v3803
        %v3807 = vcombine.high %v3787, %v3803
        %v3808 = vpack.c.bf16 %v3804, %v3804
        %v3809 = vpack.c.bf16 %v3805, %v3805
        %v3810 = vpack.c.bf16 %v3806, %v3806
        %v3811 = vpack.c.bf16 %v3807, %v3807
        %v3813 = vsel %vm2313, %v3508, 0
        %v3816 = vsel %vm2313, %v3658, 0
        %3818 = vmatprep.subr.bf16.mxu0 0
        %3819 = vmatpush1.bf16.xpose.msra.mxu0 0
        %3820 = vmatprep.subr.bf16.mxu0 0
        %3821 = vmatpush1.bf16.xpose.msra.mxu0 0
        %3822 = vmatprep.subr.bf16.mxu0 0
        %3823 = vmatpush1.bf16.xpose.msra.mxu0 0
        %3824 = vmatprep.subr.bf16.mxu0 0
        %3825 = vmatpush1.bf16.xpose.msra.mxu0 0
        %3826 = vmatprep.subr.bf16.mxu0 0
        %3827 = vmatpush1.bf16.xpose.msra.mxu0 0
        %3828 = vmatprep.subr.bf16.mxu0 0
        %3829 = vmatpush1.bf16.xpose.msra.mxu0 0
        %3830 = vmatprep.subr.bf16.mxu0 0
        %3831 = vmatpush1.bf16.xpose.msra.mxu0 0
        %3832 = vmatprep.subr.bf16.mxu0 0
        %3833 = vmatpush1.bf16.xpose.msra.mxu0 %v3816
        %3834 = vmatprep.subr.bf16.mxu0 0
        %3835 = vmatpush2.bf16.xpose.msra.mxu0 0
        %3836 = vmatprep.subr.bf16.mxu0 0
        %3837 = vmatpush2.bf16.xpose.msra.mxu0 0
        %3838 = vmatprep.subr.bf16.mxu0 0
        %3839 = vmatpush2.bf16.xpose.msra.mxu0 0
        %3840 = vmatprep.subr.bf16.mxu0 0
        %3841 = vmatpush2.bf16.xpose.msra.mxu0 0
        %3842 = vmatprep.subr.bf16.mxu0 0
        %3843 = vmatpush2.bf16.xpose.msra.mxu0 0
        %3844 = vmatprep.subr.bf16.mxu0 0
        %3845 = vmatpush2.bf16.xpose.msra.mxu0 0
        %3846 = vmatprep.subr.bf16.mxu0 0
        %3847 = vmatpush2.bf16.xpose.msra.mxu0 0
        %3848 = vmatprep.subr.bf16.mxu0 0
        %3849 = vmatpush2.bf16.xpose.msra.mxu0 0
        %3850 = vmatprep.mubr.bf16.mxu0 0
        %3851 = vmatmul.mubr.bf16.gmra.mxu0 %v3813
        %v3852 = vpop.f32.mrf.mxu0
        %v3853 = vadd.f32 0.0, %v3852
        %v3854 = vpop.f32.mrf.mxu0
        %v3855 = vpop.f32.mrf.mxu0
        %v3856 = vpop.f32.mrf.mxu0
        %3857 = vdwg.mxu0
        %v3859 = vsel %vm2313, %v3509, 0
        %v3862 = vsel %vm2313, %v3659, 0
        %3864 = vmatprep.subr.bf16.mxu0 0
        %3865 = vmatpush1.bf16.xpose.msra.mxu0 0
        %3866 = vmatprep.subr.bf16.mxu0 0
        %3867 = vmatpush1.bf16.xpose.msra.mxu0 0
        %3868 = vmatprep.subr.bf16.mxu0 0
        %3869 = vmatpush1.bf16.xpose.msra.mxu0 0
        %3870 = vmatprep.subr.bf16.mxu0 0
        %3871 = vmatpush1.bf16.xpose.msra.mxu0 0
        %3872 = vmatprep.subr.bf16.mxu0 0
        %3873 = vmatpush1.bf16.xpose.msra.mxu0 0
        %3874 = vmatprep.subr.bf16.mxu0 0
        %3875 = vmatpush1.bf16.xpose.msra.mxu0 0
        %3876 = vmatprep.subr.bf16.mxu0 0
        %3877 = vmatpush1.bf16.xpose.msra.mxu0 0
        %3878 = vmatprep.subr.bf16.mxu0 0
        %3879 = vmatpush1.bf16.xpose.msra.mxu0 %v3862
        %3880 = vmatprep.subr.bf16.mxu0 0
        %3881 = vmatpush2.bf16.xpose.msra.mxu0 0
        %3882 = vmatprep.subr.bf16.mxu0 0
        %3883 = vmatpush2.bf16.xpose.msra.mxu0 0
        %3884 = vmatprep.subr.bf16.mxu0 0
        %3885 = vmatpush2.bf16.xpose.msra.mxu0 0
        %3886 = vmatprep.subr.bf16.mxu0 0
        %3887 = vmatpush2.bf16.xpose.msra.mxu0 0
        %3888 = vmatprep.subr.bf16.mxu0 0
        %3889 = vmatpush2.bf16.xpose.msra.mxu0 0
        %3890 = vmatprep.subr.bf16.mxu0 0
        %3891 = vmatpush2.bf16.xpose.msra.mxu0 0
        %3892 = vmatprep.subr.bf16.mxu0 0
        %3893 = vmatpush2.bf16.xpose.msra.mxu0 0
        %3894 = vmatprep.subr.bf16.mxu0 0
        %3895 = vmatpush2.bf16.xpose.msra.mxu0 0
        %3896 = vmatprep.mubr.bf16.mxu0 0
        %3897 = vmatmul.mubr.bf16.gmra.mxu0 %v3859
        %v3898 = vpop.f32.mrf.mxu0
        %v3899 = vadd.f32 0.0, %v3898
        %v3900 = vpop.f32.mrf.mxu0
        %v3901 = vpop.f32.mrf.mxu0
        %v3902 = vpop.f32.mrf.mxu0
        %3903 = vdwg.mxu0
        %v3905 = vsel %vm2313, %v3510, 0
        %v3908 = vsel %vm2313, %v3660, 0
        %3910 = vmatprep.subr.bf16.mxu0 0
        %3911 = vmatpush1.bf16.xpose.msra.mxu0 0
        %3912 = vmatprep.subr.bf16.mxu0 0
        %3913 = vmatpush1.bf16.xpose.msra.mxu0 0
        %3914 = vmatprep.subr.bf16.mxu0 0
        %3915 = vmatpush1.bf16.xpose.msra.mxu0 0
        %3916 = vmatprep.subr.bf16.mxu0 0
        %3917 = vmatpush1.bf16.xpose.msra.mxu0 0
        %3918 = vmatprep.subr.bf16.mxu0 0
        %3919 = vmatpush1.bf16.xpose.msra.mxu0 0
        %3920 = vmatprep.subr.bf16.mxu0 0
        %3921 = vmatpush1.bf16.xpose.msra.mxu0 0
        %3922 = vmatprep.subr.bf16.mxu0 0
        %3923 = vmatpush1.bf16.xpose.msra.mxu0 0
        %3924 = vmatprep.subr.bf16.mxu0 0
        %3925 = vmatpush1.bf16.xpose.msra.mxu0 %v3908
        %3926 = vmatprep.subr.bf16.mxu0 0
        %3927 = vmatpush2.bf16.xpose.msra.mxu0 0
        %3928 = vmatprep.subr.bf16.mxu0 0
        %3929 = vmatpush2.bf16.xpose.msra.mxu0 0
        %3930 = vmatprep.subr.bf16.mxu0 0
        %3931 = vmatpush2.bf16.xpose.msra.mxu0 0
        %3932 = vmatprep.subr.bf16.mxu0 0
        %3933 = vmatpush2.bf16.xpose.msra.mxu0 0
        %3934 = vmatprep.subr.bf16.mxu0 0
        %3935 = vmatpush2.bf16.xpose.msra.mxu0 0
        %3936 = vmatprep.subr.bf16.mxu0 0
        %3937 = vmatpush2.bf16.xpose.msra.mxu0 0
        %3938 = vmatprep.subr.bf16.mxu0 0
        %3939 = vmatpush2.bf16.xpose.msra.mxu0 0
        %3940 = vmatprep.subr.bf16.mxu0 0
        %3941 = vmatpush2.bf16.xpose.msra.mxu0 0
        %3942 = vmatprep.mubr.bf16.mxu0 0
        %3943 = vmatmul.mubr.bf16.gmra.mxu0 %v3905
        %v3944 = vpop.f32.mrf.mxu0
        %v3945 = vadd.f32 0.0, %v3944
        %v3946 = vpop.f32.mrf.mxu0
        %v3947 = vpop.f32.mrf.mxu0
        %v3948 = vpop.f32.mrf.mxu0
        %3949 = vdwg.mxu0
        %v3951 = vsel %vm2313, %v3511, 0
        %v3954 = vsel %vm2313, %v3661, 0
        %3956 = vmatprep.subr.bf16.mxu0 0
        %3957 = vmatpush1.bf16.xpose.msra.mxu0 0
        %3958 = vmatprep.subr.bf16.mxu0 0
        %3959 = vmatpush1.bf16.xpose.msra.mxu0 0
        %3960 = vmatprep.subr.bf16.mxu0 0
        %3961 = vmatpush1.bf16.xpose.msra.mxu0 0
        %3962 = vmatprep.subr.bf16.mxu0 0
        %3963 = vmatpush1.bf16.xpose.msra.mxu0 0
        %3964 = vmatprep.subr.bf16.mxu0 0
        %3965 = vmatpush1.bf16.xpose.msra.mxu0 0
        %3966 = vmatprep.subr.bf16.mxu0 0
        %3967 = vmatpush1.bf16.xpose.msra.mxu0 0
        %3968 = vmatprep.subr.bf16.mxu0 0
        %3969 = vmatpush1.bf16.xpose.msra.mxu0 0
        %3970 = vmatprep.subr.bf16.mxu0 0
        %3971 = vmatpush1.bf16.xpose.msra.mxu0 %v3954
        %3972 = vmatprep.subr.bf16.mxu0 0
        %3973 = vmatpush2.bf16.xpose.msra.mxu0 0
        %3974 = vmatprep.subr.bf16.mxu0 0
        %3975 = vmatpush2.bf16.xpose.msra.mxu0 0
        %3976 = vmatprep.subr.bf16.mxu0 0
        %3977 = vmatpush2.bf16.xpose.msra.mxu0 0
        %3978 = vmatprep.subr.bf16.mxu0 0
        %3979 = vmatpush2.bf16.xpose.msra.mxu0 0
        %3980 = vmatprep.subr.bf16.mxu0 0
        %3981 = vmatpush2.bf16.xpose.msra.mxu0 0
        %3982 = vmatprep.subr.bf16.mxu0 0
        %3983 = vmatpush2.bf16.xpose.msra.mxu0 0
        %3984 = vmatprep.subr.bf16.mxu0 0
        %3985 = vmatpush2.bf16.xpose.msra.mxu0 0
        %3986 = vmatprep.subr.bf16.mxu0 0
        %3987 = vmatpush2.bf16.xpose.msra.mxu0 0
        %3988 = vmatprep.mubr.bf16.mxu0 0
        %3989 = vmatmul.mubr.bf16.gmra.mxu0 %v3951
        %v3990 = vpop.f32.mrf.mxu0
        %v3991 = vadd.f32 0.0, %v3990
        %v3992 = vpop.f32.mrf.mxu0
        %v3993 = vpop.f32.mrf.mxu0
        %v3994 = vpop.f32.mrf.mxu0
        %3995 = vdwg.mxu0
        %v3996 = vsel %vm2498, %v3853, -inf
        %3997 = vmax.xlane.f32.xlu0 %v3996
        %v3998 = vpop.xlane.xlu0 %3997
        %v3999 = vsel %vm2498, %v3899, -inf
        %4000 = vmax.xlane.f32.xlu0 %v3999
        %v4001 = vpop.xlane.xlu0 %4000
        %v4002 = vsel %vm2498, %v3945, -inf
        %4003 = vmax.xlane.f32.xlu0 %v4002
        %v4004 = vpop.xlane.xlu0 %4003
        %v4005 = vsel %vm2498, %v3991, -inf
        %4006 = vmax.xlane.f32.xlu0 %v4005
        %v4007 = vpop.xlane.xlu0 %4006
        %v4008 = vsub.f32 %v3853, %v3998
        %v4009 = vsub.f32 %v3899, %v4001
        %v4010 = vsub.f32 %v3945, %v4004
        %v4011 = vsub.f32 %v3991, %v4007
        %v4012 = vmul.f32 %v4008, 1.442695
        %v4013 = vpow.pop %v4012
        %v4014 = vmul.f32 %v4009, 1.442695
        %v4015 = vpow.pop %v4014
        %v4016 = vmul.f32 %v4010, 1.442695
        %v4017 = vpow.pop %v4016
        %v4018 = vmul.f32 %v4011, 1.442695
        %v4019 = vpow.pop %v4018
        %v4020 = vsel %vm2498, %v4013, 0.0
        %4021 = vadd.xlane.f32.xlu0 %v4020
        %v4022 = vpop.xlane.xlu0 %4021
        %v4023 = vsel %vm2498, %v4015, 0.0
        %4024 = vadd.xlane.f32.xlu0 %v4023
        %v4025 = vpop.xlane.xlu0 %4024
        %v4026 = vsel %vm2498, %v4017, 0.0
        %4027 = vadd.xlane.f32.xlu0 %v4026
        %v4028 = vpop.xlane.xlu0 %4027
        %v4029 = vsel %vm2498, %v4019, 0.0
        %4030 = vadd.xlane.f32.xlu0 %v4029
        %v4031 = vpop.xlane.xlu0 %4030
        %v4032 = vrcp.pop %v4022
        %v4033 = vrcp.pop %v4025
        %v4034 = vrcp.pop %v4028
        %v4035 = vrcp.pop %v4031
        %v4036 = vmul.f32 %v4013, %v4032
        %v4037 = vmul.f32 %v4015, %v4033
        %v4038 = vmul.f32 %v4017, %v4034
        %v4039 = vmul.f32 %v4019, %v4035
        %v4040 = vpack.c.bf16 %v4036, %v4036
        %v4041 = vpack.c.bf16 %v4037, %v4037
        %v4042 = vpack.c.bf16 %v4038, %v4038
        %v4043 = vpack.c.bf16 %v4039, %v4039
        %v4045 = vsel %vm2498, %v4040, 0
        %v4048 = vsel %vm2550, %v3808, 0
        %4050 = vmatprep.subr.bf16.mxu0 0
        %4051 = vmatpush1.bf16.msra.mxu0 0
        %4052 = vmatprep.subr.bf16.mxu0 0
        %4053 = vmatpush1.bf16.msra.mxu0 0
        %4054 = vmatprep.subr.bf16.mxu0 0
        %4055 = vmatpush1.bf16.msra.mxu0 0
        %4056 = vmatprep.subr.bf16.mxu0 0
        %4057 = vmatpush1.bf16.msra.mxu0 0
        %4058 = vmatprep.subr.bf16.mxu0 0
        %4059 = vmatpush1.bf16.msra.mxu0 0
        %4060 = vmatprep.subr.bf16.mxu0 0
        %4061 = vmatpush1.bf16.msra.mxu0 0
        %4062 = vmatprep.subr.bf16.mxu0 0
        %4063 = vmatpush1.bf16.msra.mxu0 0
        %4064 = vmatprep.subr.bf16.mxu0 0
        %4065 = vmatpush1.bf16.msra.mxu0 %v4048
        %4066 = vmatprep.subr.bf16.mxu0 0
        %4067 = vmatpush2.bf16.msra.mxu0 0
        %4068 = vmatprep.subr.bf16.mxu0 0
        %4069 = vmatpush2.bf16.msra.mxu0 0
        %4070 = vmatprep.subr.bf16.mxu0 0
        %4071 = vmatpush2.bf16.msra.mxu0 0
        %4072 = vmatprep.subr.bf16.mxu0 0
        %4073 = vmatpush2.bf16.msra.mxu0 0
        %4074 = vmatprep.subr.bf16.mxu0 0
        %4075 = vmatpush2.bf16.msra.mxu0 0
        %4076 = vmatprep.subr.bf16.mxu0 0
        %4077 = vmatpush2.bf16.msra.mxu0 0
        %4078 = vmatprep.subr.bf16.mxu0 0
        %4079 = vmatpush2.bf16.msra.mxu0 0
        %4080 = vmatprep.subr.bf16.mxu0 0
        %4081 = vmatpush2.bf16.msra.mxu0 0
        %4082 = vmatprep.mubr.bf16.mxu0 0
        %4083 = vmatmul.mubr.bf16.gmra.mxu0 %v4045
        %v4084 = vpop.f32.mrf.mxu0
        %v4085 = vadd.f32 0.0, %v4084
        %v4086 = vpop.f32.mrf.mxu0
        %v4087 = vpop.f32.mrf.mxu0
        %v4088 = vpop.f32.mrf.mxu0
        %4089 = vdwg.mxu0
        %v4091 = vsel %vm2498, %v4041, 0
        %v4094 = vsel %vm2550, %v3809, 0
        %4096 = vmatprep.subr.bf16.mxu0 0
        %4097 = vmatpush1.bf16.msra.mxu0 0
        %4098 = vmatprep.subr.bf16.mxu0 0
        %4099 = vmatpush1.bf16.msra.mxu0 0
        %4100 = vmatprep.subr.bf16.mxu0 0
        %4101 = vmatpush1.bf16.msra.mxu0 0
        %4102 = vmatprep.subr.bf16.mxu0 0
        %4103 = vmatpush1.bf16.msra.mxu0 0
        %4104 = vmatprep.subr.bf16.mxu0 0
        %4105 = vmatpush1.bf16.msra.mxu0 0
        %4106 = vmatprep.subr.bf16.mxu0 0
        %4107 = vmatpush1.bf16.msra.mxu0 0
        %4108 = vmatprep.subr.bf16.mxu0 0
        %4109 = vmatpush1.bf16.msra.mxu0 0
        %4110 = vmatprep.subr.bf16.mxu0 0
        %4111 = vmatpush1.bf16.msra.mxu0 %v4094
        %4112 = vmatprep.subr.bf16.mxu0 0
        %4113 = vmatpush2.bf16.msra.mxu0 0
        %4114 = vmatprep.subr.bf16.mxu0 0
        %4115 = vmatpush2.bf16.msra.mxu0 0
        %4116 = vmatprep.subr.bf16.mxu0 0
        %4117 = vmatpush2.bf16.msra.mxu0 0
        %4118 = vmatprep.subr.bf16.mxu0 0
        %4119 = vmatpush2.bf16.msra.mxu0 0
        %4120 = vmatprep.subr.bf16.mxu0 0
        %4121 = vmatpush2.bf16.msra.mxu0 0
        %4122 = vmatprep.subr.bf16.mxu0 0
        %4123 = vmatpush2.bf16.msra.mxu0 0
        %4124 = vmatprep.subr.bf16.mxu0 0
        %4125 = vmatpush2.bf16.msra.mxu0 0
        %4126 = vmatprep.subr.bf16.mxu0 0
        %4127 = vmatpush2.bf16.msra.mxu0 0
        %4128 = vmatprep.mubr.bf16.mxu0 0
        %4129 = vmatmul.mubr.bf16.gmra.mxu0 %v4091
        %v4130 = vpop.f32.mrf.mxu0
        %v4131 = vadd.f32 0.0, %v4130
        %v4132 = vpop.f32.mrf.mxu0
        %v4133 = vpop.f32.mrf.mxu0
        %v4134 = vpop.f32.mrf.mxu0
        %4135 = vdwg.mxu0
        %v4137 = vsel %vm2498, %v4042, 0
        %v4140 = vsel %vm2550, %v3810, 0
        %4142 = vmatprep.subr.bf16.mxu0 0
        %4143 = vmatpush1.bf16.msra.mxu0 0
        %4144 = vmatprep.subr.bf16.mxu0 0
        %4145 = vmatpush1.bf16.msra.mxu0 0
        %4146 = vmatprep.subr.bf16.mxu0 0
        %4147 = vmatpush1.bf16.msra.mxu0 0
        %4148 = vmatprep.subr.bf16.mxu0 0
        %4149 = vmatpush1.bf16.msra.mxu0 0
        %4150 = vmatprep.subr.bf16.mxu0 0
        %4151 = vmatpush1.bf16.msra.mxu0 0
        %4152 = vmatprep.subr.bf16.mxu0 0
        %4153 = vmatpush1.bf16.msra.mxu0 0
        %4154 = vmatprep.subr.bf16.mxu0 0
        %4155 = vmatpush1.bf16.msra.mxu0 0
        %4156 = vmatprep.subr.bf16.mxu0 0
        %4157 = vmatpush1.bf16.msra.mxu0 %v4140
        %4158 = vmatprep.subr.bf16.mxu0 0
        %4159 = vmatpush2.bf16.msra.mxu0 0
        %4160 = vmatprep.subr.bf16.mxu0 0
        %4161 = vmatpush2.bf16.msra.mxu0 0
        %4162 = vmatprep.subr.bf16.mxu0 0
        %4163 = vmatpush2.bf16.msra.mxu0 0
        %4164 = vmatprep.subr.bf16.mxu0 0
        %4165 = vmatpush2.bf16.msra.mxu0 0
        %4166 = vmatprep.subr.bf16.mxu0 0
        %4167 = vmatpush2.bf16.msra.mxu0 0
        %4168 = vmatprep.subr.bf16.mxu0 0
        %4169 = vmatpush2.bf16.msra.mxu0 0
        %4170 = vmatprep.subr.bf16.mxu0 0
        %4171 = vmatpush2.bf16.msra.mxu0 0
        %4172 = vmatprep.subr.bf16.mxu0 0
        %4173 = vmatpush2.bf16.msra.mxu0 0
        %4174 = vmatprep.mubr.bf16.mxu0 0
        %4175 = vmatmul.mubr.bf16.gmra.mxu0 %v4137
        %v4176 = vpop.f32.mrf.mxu0
        %v4177 = vadd.f32 0.0, %v4176
        %v4178 = vpop.f32.mrf.mxu0
        %v4179 = vpop.f32.mrf.mxu0
        %v4180 = vpop.f32.mrf.mxu0
        %4181 = vdwg.mxu0
        %v4183 = vsel %vm2498, %v4043, 0
        %v4186 = vsel %vm2550, %v3811, 0
        %4188 = vmatprep.subr.bf16.mxu0 0
        %4189 = vmatpush1.bf16.msra.mxu0 0
        %4190 = vmatprep.subr.bf16.mxu0 0
        %4191 = vmatpush1.bf16.msra.mxu0 0
        %4192 = vmatprep.subr.bf16.mxu0 0
        %4193 = vmatpush1.bf16.msra.mxu0 0
        %4194 = vmatprep.subr.bf16.mxu0 0
        %4195 = vmatpush1.bf16.msra.mxu0 0
        %4196 = vmatprep.subr.bf16.mxu0 0
        %4197 = vmatpush1.bf16.msra.mxu0 0
        %4198 = vmatprep.subr.bf16.mxu0 0
        %4199 = vmatpush1.bf16.msra.mxu0 0
        %4200 = vmatprep.subr.bf16.mxu0 0
        %4201 = vmatpush1.bf16.msra.mxu0 0
        %4202 = vmatprep.subr.bf16.mxu0 0
        %4203 = vmatpush1.bf16.msra.mxu0 %v4186
        %4204 = vmatprep.subr.bf16.mxu0 0
        %4205 = vmatpush2.bf16.msra.mxu0 0
        %4206 = vmatprep.subr.bf16.mxu0 0
        %4207 = vmatpush2.bf16.msra.mxu0 0
        %4208 = vmatprep.subr.bf16.mxu0 0
        %4209 = vmatpush2.bf16.msra.mxu0 0
        %4210 = vmatprep.subr.bf16.mxu0 0
        %4211 = vmatpush2.bf16.msra.mxu0 0
        %4212 = vmatprep.subr.bf16.mxu0 0
        %4213 = vmatpush2.bf16.msra.mxu0 0
        %4214 = vmatprep.subr.bf16.mxu0 0
        %4215 = vmatpush2.bf16.msra.mxu0 0
        %4216 = vmatprep.subr.bf16.mxu0 0
        %4217 = vmatpush2.bf16.msra.mxu0 0
        %4218 = vmatprep.subr.bf16.mxu0 0
        %4219 = vmatpush2.bf16.msra.mxu0 0
        %4220 = vmatprep.mubr.bf16.mxu0 0
        %4221 = vmatmul.mubr.bf16.gmra.mxu0 %v4183
        %v4222 = vpop.f32.mrf.mxu0
        %v4223 = vadd.f32 0.0, %v4222
        %v4224 = vpop.f32.mrf.mxu0
        %v4225 = vpop.f32.mrf.mxu0
        %v4226 = vpop.f32.mrf.mxu0
        %4227 = vdwg.mxu0
        %v4228 = vcombine.low %v4085, %v4177
        %v4229 = vcombine.high %v4085, %v4177
        %v4231 = vunpack.c.l.s4 1983009808
        %v4232 = vunpack.c.0.s8 %v4231
        %v4233 = vlaneseq
        %v4234 = vshrl.u32 %v4233, 7
        %v4235 = vsub.s32 %v4232, %v4234
        %v4236 = vrot.slane %v4228, %v4235
        %v4238 = vunpack.c.l.s4 1983009808
        %v4239 = vunpack.c.0.s8 %v4238
        %v4240 = vlaneseq
        %v4241 = vshrl.u32 %v4240, 7
        %v4242 = vsub.s32 %v4239, %v4241
        %v4243 = vrot.slane %v4229, %v4242
        %v4244 = vcombine.low %v4131, %v4223
        %v4245 = vcombine.high %v4131, %v4223
        %v4247 = vunpack.c.l.s4 1983009808
        %v4248 = vunpack.c.0.s8 %v4247
        %v4249 = vlaneseq
        %v4250 = vshrl.u32 %v4249, 7
        %v4251 = vsub.s32 %v4248, %v4250
        %v4252 = vrot.slane %v4244, %v4251
        %v4254 = vunpack.c.l.s4 1983009808
        %v4255 = vunpack.c.0.s8 %v4254
        %v4256 = vlaneseq
        %v4257 = vshrl.u32 %v4256, 7
        %v4258 = vsub.s32 %v4255, %v4257
        %v4259 = vrot.slane %v4245, %v4258
        %v4260 = vcombine.low %v4236, %v4252
        %v4261 = vcombine.high %v4236, %v4252
        %v4263 = vunpack.c.l.s4 1934713408
        %v4264 = vunpack.c.0.s8 %v4263
        %v4265 = vlaneseq
        %v4266 = vshrl.u32 %v4265, 7
        %v4267 = vsub.s32 %v4264, %v4266
        %v4268 = vrot.slane %v4260, %v4267
        %v4270 = vunpack.c.l.s4 1934713408
        %v4271 = vunpack.c.0.s8 %v4270
        %v4272 = vlaneseq
        %v4273 = vshrl.u32 %v4272, 7
        %v4274 = vsub.s32 %v4271, %v4273
        %v4275 = vrot.slane %v4261, %v4274
        %v4276 = vcombine.low %v4243, %v4259
        %v4277 = vcombine.high %v4243, %v4259
        %v4279 = vunpack.c.l.s4 1934713408
        %v4280 = vunpack.c.0.s8 %v4279
        %v4281 = vlaneseq
        %v4282 = vshrl.u32 %v4281, 7
        %v4283 = vsub.s32 %v4280, %v4282
        %v4284 = vrot.slane %v4276, %v4283
        %v4286 = vunpack.c.l.s4 1934713408
        %v4287 = vunpack.c.0.s8 %v4286
        %v4288 = vlaneseq
        %v4289 = vshrl.u32 %v4288, 7
        %v4290 = vsub.s32 %v4287, %v4289
        %v4291 = vrot.slane %v4277, %v4290
        %v4292 = vcombine.high %v4268, 0.0
        %v4293 = vcombine.high %v4275, 0.0
        %v4294 = vcombine.high %v4284, 0.0
        %v4295 = vcombine.high %v4291, 0.0
        %v4296 = vcombine.low %v4268, %v4275
        %v4298 = vunpack.c.l.s4 1983009808
        %v4299 = vunpack.c.0.s8 %v4298
        %v4300 = vlaneseq
        %v4301 = vshrl.u32 %v4300, 7
        %v4302 = vsub.s32 %v4299, %v4301
        %v4303 = vrot.slane %v4296, %v4302
        %v4304 = vcombine.low %v4292, %v4293
        %v4306 = vunpack.c.l.s4 1983009808
        %v4307 = vunpack.c.0.s8 %v4306
        %v4308 = vlaneseq
        %v4309 = vshrl.u32 %v4308, 7
        %v4310 = vsub.s32 %v4307, %v4309
        %v4311 = vrot.slane %v4304, %v4310
        %v4312 = vcombine.low %v4284, %v4291
        %v4314 = vunpack.c.l.s4 1983009808
        %v4315 = vunpack.c.0.s8 %v4314
        %v4316 = vlaneseq
        %v4317 = vshrl.u32 %v4316, 7
        %v4318 = vsub.s32 %v4315, %v4317
        %v4319 = vrot.slane %v4312, %v4318
        %v4320 = vcombine.low %v4294, %v4295
        %v4322 = vunpack.c.l.s4 1983009808
        %v4323 = vunpack.c.0.s8 %v4322
        %v4324 = vlaneseq
        %v4325 = vshrl.u32 %v4324, 7
        %v4326 = vsub.s32 %v4323, %v4325
        %v4327 = vrot.slane %v4320, %v4326
        %v4328 = vcombine.low %v4303, %v4311
        %v4329 = vcombine.high %v4303, %v4311
        %v4331 = vunpack.c.l.s4 1934713408
        %v4332 = vunpack.c.0.s8 %v4331
        %v4333 = vlaneseq
        %v4334 = vshrl.u32 %v4333, 7
        %v4335 = vsub.s32 %v4332, %v4334
        %v4336 = vrot.slane %v4328, %v4335
        %v4338 = vunpack.c.l.s4 1934713408
        %v4339 = vunpack.c.0.s8 %v4338
        %v4340 = vlaneseq
        %v4341 = vshrl.u32 %v4340, 7
        %v4342 = vsub.s32 %v4339, %v4341
        %v4343 = vrot.slane %v4329, %v4342
        %v4344 = vcombine.low %v4319, %v4327
        %v4345 = vcombine.high %v4319, %v4327
        %v4347 = vunpack.c.l.s4 1934713408
        %v4348 = vunpack.c.0.s8 %v4347
        %v4349 = vlaneseq
        %v4350 = vshrl.u32 %v4349, 7
        %v4351 = vsub.s32 %v4348, %v4350
        %v4352 = vrot.slane %v4344, %v4351
        %v4354 = vunpack.c.l.s4 1934713408
        %v4355 = vunpack.c.0.s8 %v4354
        %v4356 = vlaneseq
        %v4357 = vshrl.u32 %v4356, 7
        %v4358 = vsub.s32 %v4355, %v4357
        %v4359 = vrot.slane %v4345, %v4358
        %v4360 = vcombine.low %v4336, %v4352
        %v4361 = vcombine.high %v4336, %v4352
        %v4362 = vcombine.low %v4343, %v4359
        %v4363 = vcombine.high %v4343, %v4359
        %4365 = vrot.lane.b32.xlu0 %v4361, 32
        %v4366 = vpop.permute.xlu0 %4365
        %4369 = vrot.lane.b32.xlu0 %v4362, 64
        %v4370 = vpop.permute.xlu0 %4369
        %4373 = vrot.lane.b32.xlu0 %v4363, 96
        %v4374 = vpop.permute.xlu0 %4373
        %v4376 = vsel %vm2313, %v4360, %v4366
        %v4377 = vsel %vm2881, %v4376, %v4370
        %v4378 = vsel %vm2883, %v4377, %v4374
        %v4379 = vpack.c.bf16 %v4378, %v4378
        %v4380 = vld [vmem:[%s1277] sm:$0xf]
        %v4381 = vld [vmem:[%s1277 + $0x4] sm:$0xf]
        %v4382 = vld [vmem:[%s1277 + $0x8] sm:$0xf]
        %v4383 = vld [vmem:[%s1277 + $0xc] sm:$0xf]
        %v4384 = vld [vmem:[%s1277 + $0x10] sm:$0xf]
        %v4385 = vld [vmem:[%s1277 + $0x14] sm:$0xf]
        %v4386 = vld [vmem:[%s1277 + $0x18] sm:$0xf]
        %v4387 = vld [vmem:[%s1277 + $0x1c] sm:$0xf]
        %v4388 = vld [vmem:[%s1277 + $0x20] sm:$0xf]
        %v4389 = vld [vmem:[%s1277 + $0x24] sm:$0xf]
        %v4390 = vld [vmem:[%s1277 + $0x28] sm:$0xf]
        %v4391 = vld [vmem:[%s1277 + $0x2c] sm:$0xf]
        %v4392 = vld [vmem:[%s1277 + $0x30] sm:$0xf]
        %v4393 = vld [vmem:[%s1277 + $0x34] sm:$0xf]
        %v4394 = vld [vmem:[%s1277 + $0x38] sm:$0xf]
        %v4395 = vld [vmem:[%s1277 + $0x3c] sm:$0xf]
        %v4396 = vld [vmem:[%s1500] sm:$0x1]
        %v4398 = vlaneseq
        %v4399 = vshrl.u32 %v4398, 7
        %v4400 = vsub.s32 0, %v4399
        %v4401 = vrot.slane %v4396, %v4400
        %v4419 = vunpack.c.l.b16 %v4380
        %v4420 = vunpack.c.l.b16 %v4381
        %v4421 = vunpack.c.l.b16 %v4382
        %v4422 = vunpack.c.l.b16 %v4383
        %v4423 = vunpack.c.l.b16 %v4384
        %v4424 = vunpack.c.l.b16 %v4385
        %v4425 = vunpack.c.l.b16 %v4386
        %v4426 = vunpack.c.l.b16 %v4387
        %v4427 = vunpack.c.l.b16 %v4388
        %v4428 = vunpack.c.l.b16 %v4389
        %v4429 = vunpack.c.l.b16 %v4390
        %v4430 = vunpack.c.l.b16 %v4391
        %v4431 = vunpack.c.l.b16 %v4392
        %v4432 = vunpack.c.l.b16 %v4393
        %v4433 = vunpack.c.l.b16 %v4394
        %v4434 = vunpack.c.l.b16 %v4395
        %v4435 = vpack.c.b16 %v4420, %v4419
        %v4436 = vpack.c.b16 %v4422, %v4421
        %v4437 = vpack.c.b16 %v4424, %v4423
        %v4438 = vpack.c.b16 %v4426, %v4425
        %v4439 = vpack.c.b16 %v4428, %v4427
        %v4440 = vpack.c.b16 %v4430, %v4429
        %v4441 = vpack.c.b16 %v4432, %v4431
        %v4442 = vpack.c.b16 %v4434, %v4433
        %4451 = vmatprep.subr.bf16.mxu0 0
        %4452 = vmatpush1.bf16.msra.mxu0 %v4442
        %4453 = vmatprep.subr.bf16.mxu0 0
        %4454 = vmatpush1.bf16.msra.mxu0 %v4441
        %4455 = vmatprep.subr.bf16.mxu0 0
        %4456 = vmatpush1.bf16.msra.mxu0 %v4440
        %4457 = vmatprep.subr.bf16.mxu0 0
        %4458 = vmatpush1.bf16.msra.mxu0 %v4439
        %4459 = vmatprep.subr.bf16.mxu0 0
        %4460 = vmatpush1.bf16.msra.mxu0 %v4438
        %4461 = vmatprep.subr.bf16.mxu0 0
        %4462 = vmatpush1.bf16.msra.mxu0 %v4437
        %4463 = vmatprep.subr.bf16.mxu0 0
        %4464 = vmatpush1.bf16.msra.mxu0 %v4436
        %4465 = vmatprep.subr.bf16.mxu0 0
        %4466 = vmatpush1.bf16.msra.mxu0 %v4435
        %4467 = vmatprep.subr.bf16.mxu0 0
        %4468 = vmatpush2.bf16.msra.mxu0 0
        %4469 = vmatprep.subr.bf16.mxu0 0
        %4470 = vmatpush2.bf16.msra.mxu0 0
        %4471 = vmatprep.subr.bf16.mxu0 0
        %4472 = vmatpush2.bf16.msra.mxu0 0
        %4473 = vmatprep.subr.bf16.mxu0 0
        %4474 = vmatpush2.bf16.msra.mxu0 0
        %4475 = vmatprep.subr.bf16.mxu0 0
        %4476 = vmatpush2.bf16.msra.mxu0 0
        %4477 = vmatprep.subr.bf16.mxu0 0
        %4478 = vmatpush2.bf16.msra.mxu0 0
        %4479 = vmatprep.subr.bf16.mxu0 0
        %4480 = vmatpush2.bf16.msra.mxu0 0
        %4481 = vmatprep.subr.bf16.mxu0 0
        %4482 = vmatpush2.bf16.msra.mxu0 0
        %4483 = vmatprep.mubr.bf16.mxu0 0
        %4484 = vmatmul.mubr.bf16.gmra.mxu0 %v4379
        %v4485 = vpop.f32.mrf.mxu0
        %v4486 = vadd.f32 %v4401, %v4485
        %v4487 = vpop.f32.mrf.mxu0
        %v4488 = vpop.f32.mrf.mxu0
        %v4489 = vpop.f32.mrf.mxu0
        %4490 = vdwg.mxu0
        %v4491 = vadd.f32 %v4486, %v3025
        %4492 = vadd.xlane.f32.xlu0 %v4491
        %v4493 = vpop.xlane.xlu0 %4492
        %v4494 = vmul.f32 %v4493, %v3000
        %v4495 = vsub.f32 %v4491, %v4494
        %v4496 = vmul.f32 %v4495, %v4495
        %4497 = vadd.xlane.f32.xlu0 %v4496
        %v4498 = vpop.xlane.xlu0 %4497
        %v4499 = vmul.f32 %v4498, %v3000
        %v4500 = vadd.f32 %v4499, 1e-12
        %v4501 = vrsqrt.pop %v4500
        %v4502 = vmul.f32 %v4495, %v4501
        %v4503 = vld [vmem:[%s1503] sm:$0x1]
        %v4505 = vlaneseq
        %v4506 = vshrl.u32 %v4505, 7
        %v4507 = vsub.s32 0, %v4506
        %v4508 = vrot.slane %v4503, %v4507
        %v4510 = vmul.f32 %v4502, %v4508
        %v4511 = vld [vmem:[%s1506] sm:$0x1]
        %v4513 = vlaneseq
        %v4514 = vshrl.u32 %v4513, 7
        %v4515 = vsub.s32 0, %v4514
        %v4516 = vrot.slane %v4511, %v4515
        %v4518 = vadd.f32 %v4510, %v4516
        %v4519 = vpack.c.bf16 %v4518, %v4518
        %v4520 = vld [vmem:[%s1286] sm:$0xf]
        %v4521 = vld [vmem:[%s1286 + $0x4] sm:$0xf]
        %v4522 = vld [vmem:[%s1286 + $0x8] sm:$0xf]
        %v4523 = vld [vmem:[%s1286 + $0xc] sm:$0xf]
        %v4524 = vld [vmem:[%s1286 + $0x10] sm:$0xf]
        %v4525 = vld [vmem:[%s1286 + $0x14] sm:$0xf]
        %v4526 = vld [vmem:[%s1286 + $0x18] sm:$0xf]
        %v4527 = vld [vmem:[%s1286 + $0x1c] sm:$0xf]
        %v4528 = vld [vmem:[%s1286 + $0x20] sm:$0xf]
        %v4529 = vld [vmem:[%s1286 + $0x24] sm:$0xf]
        %v4530 = vld [vmem:[%s1286 + $0x28] sm:$0xf]
        %v4531 = vld [vmem:[%s1286 + $0x2c] sm:$0xf]
        %v4532 = vld [vmem:[%s1286 + $0x30] sm:$0xf]
        %v4533 = vld [vmem:[%s1286 + $0x34] sm:$0xf]
        %v4534 = vld [vmem:[%s1286 + $0x38] sm:$0xf]
        %v4535 = vld [vmem:[%s1286 + $0x3c] sm:$0xf]
        %v4536 = vld [vmem:[%s1509] sm:$0x1]
        %v4538 = vlaneseq
        %v4539 = vshrl.u32 %v4538, 7
        %v4540 = vsub.s32 0, %v4539
        %v4541 = vrot.slane %v4536, %v4540
        %v4559 = vunpack.c.l.b16 %v4520
        %v4560 = vunpack.c.l.b16 %v4521
        %v4561 = vunpack.c.l.b16 %v4522
        %v4562 = vunpack.c.l.b16 %v4523
        %v4563 = vunpack.c.l.b16 %v4524
        %v4564 = vunpack.c.l.b16 %v4525
        %v4565 = vunpack.c.l.b16 %v4526
        %v4566 = vunpack.c.l.b16 %v4527
        %v4567 = vunpack.c.l.b16 %v4528
        %v4568 = vunpack.c.l.b16 %v4529
        %v4569 = vunpack.c.l.b16 %v4530
        %v4570 = vunpack.c.l.b16 %v4531
        %v4571 = vunpack.c.l.b16 %v4532
        %v4572 = vunpack.c.l.b16 %v4533
        %v4573 = vunpack.c.l.b16 %v4534
        %v4574 = vunpack.c.l.b16 %v4535
        %v4575 = vpack.c.b16 %v4560, %v4559
        %v4576 = vpack.c.b16 %v4562, %v4561
        %v4577 = vpack.c.b16 %v4564, %v4563
        %v4578 = vpack.c.b16 %v4566, %v4565
        %v4579 = vpack.c.b16 %v4568, %v4567
        %v4580 = vpack.c.b16 %v4570, %v4569
        %v4581 = vpack.c.b16 %v4572, %v4571
        %v4582 = vpack.c.b16 %v4574, %v4573
        %4591 = vmatprep.subr.bf16.mxu0 0
        %4592 = vmatpush1.bf16.msra.mxu0 %v4582
        %4593 = vmatprep.subr.bf16.mxu0 0
        %4594 = vmatpush1.bf16.msra.mxu0 %v4581
        %4595 = vmatprep.subr.bf16.mxu0 0
        %4596 = vmatpush1.bf16.msra.mxu0 %v4580
        %4597 = vmatprep.subr.bf16.mxu0 0
        %4598 = vmatpush1.bf16.msra.mxu0 %v4579
        %4599 = vmatprep.subr.bf16.mxu0 0
        %4600 = vmatpush1.bf16.msra.mxu0 %v4578
        %4601 = vmatprep.subr.bf16.mxu0 0
        %4602 = vmatpush1.bf16.msra.mxu0 %v4577
        %4603 = vmatprep.subr.bf16.mxu0 0
        %4604 = vmatpush1.bf16.msra.mxu0 %v4576
        %4605 = vmatprep.subr.bf16.mxu0 0
        %4606 = vmatpush1.bf16.msra.mxu0 %v4575
        %4607 = vmatprep.subr.bf16.mxu0 0
        %4608 = vmatpush2.bf16.msra.mxu0 0
        %4609 = vmatprep.subr.bf16.mxu0 0
        %4610 = vmatpush2.bf16.msra.mxu0 0
        %4611 = vmatprep.subr.bf16.mxu0 0
        %4612 = vmatpush2.bf16.msra.mxu0 0
        %4613 = vmatprep.subr.bf16.mxu0 0
        %4614 = vmatpush2.bf16.msra.mxu0 0
        %4615 = vmatprep.subr.bf16.mxu0 0
        %4616 = vmatpush2.bf16.msra.mxu0 0
        %4617 = vmatprep.subr.bf16.mxu0 0
        %4618 = vmatpush2.bf16.msra.mxu0 0
        %4619 = vmatprep.subr.bf16.mxu0 0
        %4620 = vmatpush2.bf16.msra.mxu0 0
        %4621 = vmatprep.subr.bf16.mxu0 0
        %4622 = vmatpush2.bf16.msra.mxu0 0
        %4623 = vmatprep.mubr.bf16.mxu0 0
        %4624 = vmatmul.mubr.bf16.gmra.mxu0 %v4519
        %v4625 = vpop.f32.mrf.mxu0
        %v4626 = vadd.f32 %v4541, %v4625
        %v4627 = vpop.f32.mrf.mxu0
        %v4628 = vpop.f32.mrf.mxu0
        %v4629 = vpop.f32.mrf.mxu0
        %4630 = vdwg.mxu0
        %v4631 = vmax.f32 %v4626, 0.0
        %v4632 = vpack.c.bf16 %v4631, %v4631
        %v4633 = vld [vmem:[%s1295] sm:$0xf]
        %v4634 = vld [vmem:[%s1295 + $0x4] sm:$0xf]
        %v4635 = vld [vmem:[%s1295 + $0x8] sm:$0xf]
        %v4636 = vld [vmem:[%s1295 + $0xc] sm:$0xf]
        %v4637 = vld [vmem:[%s1295 + $0x10] sm:$0xf]
        %v4638 = vld [vmem:[%s1295 + $0x14] sm:$0xf]
        %v4639 = vld [vmem:[%s1295 + $0x18] sm:$0xf]
        %v4640 = vld [vmem:[%s1295 + $0x1c] sm:$0xf]
        %v4641 = vld [vmem:[%s1295 + $0x20] sm:$0xf]
        %v4642 = vld [vmem:[%s1295 + $0x24] sm:$0xf]
        %v4643 = vld [vmem:[%s1295 + $0x28] sm:$0xf]
        %v4644 = vld [vmem:[%s1295 + $0x2c] sm:$0xf]
        %v4645 = vld [vmem:[%s1295 + $0x30] sm:$0xf]
        %v4646 = vld [vmem:[%s1295 + $0x34] sm:$0xf]
        %v4647 = vld [vmem:[%s1295 + $0x38] sm:$0xf]
        %v4648 = vld [vmem:[%s1295 + $0x3c] sm:$0xf]
        %v4649 = vld [vmem:[%s1512] sm:$0x1]
        %v4651 = vlaneseq
        %v4652 = vshrl.u32 %v4651, 7
        %v4653 = vsub.s32 0, %v4652
        %v4654 = vrot.slane %v4649, %v4653
        %v4672 = vunpack.c.l.b16 %v4633
        %v4673 = vunpack.c.l.b16 %v4634
        %v4674 = vunpack.c.l.b16 %v4635
        %v4675 = vunpack.c.l.b16 %v4636
        %v4676 = vunpack.c.l.b16 %v4637
        %v4677 = vunpack.c.l.b16 %v4638
        %v4678 = vunpack.c.l.b16 %v4639
        %v4679 = vunpack.c.l.b16 %v4640
        %v4680 = vunpack.c.l.b16 %v4641
        %v4681 = vunpack.c.l.b16 %v4642
        %v4682 = vunpack.c.l.b16 %v4643
        %v4683 = vunpack.c.l.b16 %v4644
        %v4684 = vunpack.c.l.b16 %v4645
        %v4685 = vunpack.c.l.b16 %v4646
        %v4686 = vunpack.c.l.b16 %v4647
        %v4687 = vunpack.c.l.b16 %v4648
        %v4688 = vpack.c.b16 %v4673, %v4672
        %v4689 = vpack.c.b16 %v4675, %v4674
        %v4690 = vpack.c.b16 %v4677, %v4676
        %v4691 = vpack.c.b16 %v4679, %v4678
        %v4692 = vpack.c.b16 %v4681, %v4680
        %v4693 = vpack.c.b16 %v4683, %v4682
        %v4694 = vpack.c.b16 %v4685, %v4684
        %v4695 = vpack.c.b16 %v4687, %v4686
        %4704 = vmatprep.subr.bf16.mxu0 0
        %4705 = vmatpush1.bf16.msra.mxu0 %v4695
        %4706 = vmatprep.subr.bf16.mxu0 0
        %4707 = vmatpush1.bf16.msra.mxu0 %v4694
        %4708 = vmatprep.subr.bf16.mxu0 0
        %4709 = vmatpush1.bf16.msra.mxu0 %v4693
        %4710 = vmatprep.subr.bf16.mxu0 0
        %4711 = vmatpush1.bf16.msra.mxu0 %v4692
        %4712 = vmatprep.subr.bf16.mxu0 0
        %4713 = vmatpush1.bf16.msra.mxu0 %v4691
        %4714 = vmatprep.subr.bf16.mxu0 0
        %4715 = vmatpush1.bf16.msra.mxu0 %v4690
        %4716 = vmatprep.subr.bf16.mxu0 0
        %4717 = vmatpush1.bf16.msra.mxu0 %v4689
        %4718 = vmatprep.subr.bf16.mxu0 0
        %4719 = vmatpush1.bf16.msra.mxu0 %v4688
        %4720 = vmatprep.subr.bf16.mxu0 0
        %4721 = vmatpush2.bf16.msra.mxu0 0
        %4722 = vmatprep.subr.bf16.mxu0 0
        %4723 = vmatpush2.bf16.msra.mxu0 0
        %4724 = vmatprep.subr.bf16.mxu0 0
        %4725 = vmatpush2.bf16.msra.mxu0 0
        %4726 = vmatprep.subr.bf16.mxu0 0
        %4727 = vmatpush2.bf16.msra.mxu0 0
        %4728 = vmatprep.subr.bf16.mxu0 0
        %4729 = vmatpush2.bf16.msra.mxu0 0
        %4730 = vmatprep.subr.bf16.mxu0 0
        %4731 = vmatpush2.bf16.msra.mxu0 0
        %4732 = vmatprep.subr.bf16.mxu0 0
        %4733 = vmatpush2.bf16.msra.mxu0 0
        %4734 = vmatprep.subr.bf16.mxu0 0
        %4735 = vmatpush2.bf16.msra.mxu0 0
        %4736 = vmatprep.mubr.bf16.mxu0 0
        %4737 = vmatmul.mubr.bf16.gmra.mxu0 %v4632
        %v4738 = vpop.f32.mrf.mxu0
        %v4739 = vadd.f32 %v4654, %v4738
        %v4740 = vpop.f32.mrf.mxu0
        %v4741 = vpop.f32.mrf.mxu0
        %v4742 = vpop.f32.mrf.mxu0
        %4743 = vdwg.mxu0
        %v4744 = vadd.f32 %v4739, %v4518
        %4745 = vadd.xlane.f32.xlu0 %v4744
        %v4746 = vpop.xlane.xlu0 %4745
        %v4747 = vmul.f32 %v4746, %v3000
        %v4748 = vsub.f32 %v4744, %v4747
        %v4749 = vmul.f32 %v4748, %v4748
        %4750 = vadd.xlane.f32.xlu0 %v4749
        %v4751 = vpop.xlane.xlu0 %4750
        %v4752 = vmul.f32 %v4751, %v3000
        %v4753 = vadd.f32 %v4752, 1e-12
        %v4754 = vrsqrt.pop %v4753
        %v4755 = vmul.f32 %v4748, %v4754
        %v4756 = vld [vmem:[%s1515] sm:$0x1]
        %v4758 = vlaneseq
        %v4759 = vshrl.u32 %v4758, 7
        %v4760 = vsub.s32 0, %v4759
        %v4761 = vrot.slane %v4756, %v4760
        %v4763 = vmul.f32 %v4755, %v4761
        %v4764 = vld [vmem:[%s1518] sm:$0x1]
        %v4766 = vlaneseq
        %v4767 = vshrl.u32 %v4766, 7
        %v4768 = vsub.s32 0, %v4767
        %v4769 = vrot.slane %v4764, %v4768
        %v4771 = vadd.f32 %v4763, %v4769
        %4772 = vst [vmem:[%s1470] sm:$0xff] %v4771
        %s4773 = sand.u32 %s811, 1
        %s4774 = scalar_lea.sflag [#allocation4], %s4773
        %s4775 = sand.u32 %s811, 1
        %s4776 = smul.addr %s4775, 8
        %s4777 = scalar_lea.vmem [#allocation22], %s4776
        // Predicated region
        $region185: #{tpu_custom_call.1} parent=131 // pred_check
          %p4778 = pneg %p821
        $region186: #{tpu_custom_call.1} parent=131 // pred_check_branch
          %4780 = sbr.rel (%p4778) target = $region188
        $region187: #{tpu_custom_call.1} parent=131 // pred_region
          %s4782 = ssub.s32 128, 128
          %4783 = vsyncadd %s4774, %s4782
          %s4784 = smul.addr %s67, 128
          %s4785 = scalar_lea.hbm %s28, %s4784
          %s4787 = sshll.u32 %s4777, 4
          %s4788 = int_to_ptr.vmem [resolvable:$true] %s4787
          %4790 = dma.vmem_to_hbm [thread:$0]  %s4788, 128, %s4785, %s4774
        $region188: #{tpu_custom_call.1} parent=131 // pred_fallthru
          _
      $region132: #{tpu_custom_call.1} parent=5 // pred_fallthru
        _
      %p4791 = scmp.le.s32.totalorder 2, %s58
      // Predicated region
      $region189: #{tpu_custom_call.1} parent=5 // pred_check
        %p4792 = pneg %p4791
      $region190: #{tpu_custom_call.1} parent=5 // pred_check_branch
        %4794 = sbr.rel (%p4792) target = $region192
      $region191: #{tpu_custom_call.1} parent=5 // pred_region
        %s4795 = ssub.s32 %s58, 2
        // Predicated region
        $region193: #{tpu_custom_call.1} parent=191 // pred_check
          %p4796 = pneg %p827
        $region194: #{tpu_custom_call.1} parent=191 // pred_check_branch
          %4798 = sbr.rel (%p4796) target = $region196
        $region195: #{tpu_custom_call.1} parent=191 // pred_region
          %s4799 = sand.u32 %s812, 1
          %s4800 = scalar_lea.sflag [#allocation4], %s4799
          %s4801 = sand.u32 %s812, 1
          %s4802 = smul.addr %s4801, 8
          %s4803 = scalar_lea.vmem [#allocation22], %s4802
          %4804 = dma.done %s4800, 128
        $region196: #{tpu_custom_call.1} parent=191 // pred_fallthru
          _
      $region192: #{tpu_custom_call.1} parent=5 // pred_fallthru
        _
    $region6: #{tpu_custom_call.1} parent=1 // loop_footer
      %s62 = sadd.s32 1, %s58
    $region7: #{tpu_custom_call.1} parent=1 // loop_footer_branch
      %57 = sbr.rel target = $region3
    $region8: #{tpu_custom_call.1} parent=1 // loop_exit
      _
    %4805 = vsyncpa [#allocation3], 1
    %s4806 = scalar_lea.sflag [#allocation3], 1
    %4807 = vsyncpa %s4806, 1
    %4808 = vsyncpa [#allocation6], 1
    %s4809 = scalar_lea.sflag [#allocation6], 1
    %4810 = vsyncpa %s4809, 1
    %4811 = vsyncpa [#allocation9], 1
    %s4812 = scalar_lea.sflag [#allocation9], 1
    %4813 = vsyncpa %s4812, 1
    %4814 = vsyncpa [#allocation12], 1
    %s4815 = scalar_lea.sflag [#allocation12], 1
    %4816 = vsyncpa %s4815, 1
    %4817 = vsyncpa [#allocation15], 1
    %s4818 = scalar_lea.sflag [#allocation15], 1
    %4819 = vsyncpa %s4818, 1
    %4820 = vsyncpa [#allocation18], 1
    %s4821 = scalar_lea.sflag [#allocation18], 1
    %4822 = vsyncpa %s4821, 1
    %4823 = vsyncpa [#allocation21], 1
    %s4824 = scalar_lea.sflag [#allocation21], 1
    %4825 = vsyncpa %s4824, 1
    %4826 = vsyncpa [#allocation4], 1
    %s4827 = scalar_lea.sflag [#allocation4], 1
    %4828 = vsyncpa %s4827, 1

</llo_original>
